<compile_context>
chip_gen: v6e
topology: v6e:2x2x1
jax: 0.10.0
libtpu: 0.0.40
codegen_flags: <defaults>
</compile_context>

<pallas_src>
import functools
import math

import jax
import jax.numpy as jnp
from jax.experimental import pallas as pl
from jax.experimental.pallas import tpu as pltpu

LN_EPS = 1e-5                     # torch.nn.LayerNorm default
_MM_DTYPE = jnp.bfloat16          # MXU operand dtype (f32 accumulation)


# ----------------------------- in-kernel math -----------------------------

def _layernorm(x, w, b):
    # x: (..., d); w, b: (1, d).  Matches torch LayerNorm (biased variance).
    mean = jnp.mean(x, axis=-1, keepdims=True)
    xc = x - mean
    var = jnp.mean(xc * xc, axis=-1, keepdims=True)
    inv = jax.lax.rsqrt(var + LN_EPS)
    return xc * inv * w + b


def _erf(x):
    # Eigen / XLA single-precision rational approximation of erf
    # (|err| ~ 1e-7), built only from mul/add/clamp + one reciprocal.
    x = jnp.clip(x, -4.0, 4.0)
    x2 = x * x
    p = x2 * (-2.72614225801306e-10) + 2.77068142495902e-08
    p = x2 * p + (-2.10102402082508e-06)
    p = x2 * p + (-5.69250639462346e-05)
    p = x2 * p + (-7.34990630326855e-04)
    p = x2 * p + (-2.95459980854025e-03)
    p = x2 * p + (-1.60960333262415e-02)
    p = x * p
    q = x2 * (-1.45660718464996e-05) + (-2.13374055278905e-04)
    q = x2 * q + (-1.68282697438203e-03)
    q = x2 * q + (-7.37332916720468e-03)
    q = x2 * q + (-1.42647390514189e-02)
    # divide -> reciprocal + multiply (EUP slot, frees the VALU slot).
    return p * pl.reciprocal(q, approx=False)


def _gelu_exact(x):
    # torch nn.GELU() default (erf formulation).
    return 0.5 * x * (1.0 + _erf(x * (1.0 / math.sqrt(2.0))))


def _bmm(a, b):
    """Batched matmul (G, M, K) @ (G, K, N) -> (G, M, N), f32 accumulation."""
    return jax.lax.dot_general(
        a.astype(_MM_DTYPE), b.astype(_MM_DTYPE),
        dimension_numbers=(((2,), (1,)), ((0,), (0,))),
        preferred_element_type=jnp.float32)


def _bmm_nt(a, b):
    """Batched matmul, rhs transposed: (G, M, K) @ (G, N, K) -> (G, M, N)."""
    return jax.lax.dot_general(
        a.astype(_MM_DTYPE), b.astype(_MM_DTYPE),
        dimension_numbers=(((2,), (2,)), ((0,), (0,))),
        preferred_element_type=jnp.float32)


# ------------------------------- fused kernel ------------------------------

def vit_kernel(patches_ref, pe_w_ref, pe_b_ref, cls_ref, pos_ref,
               ln1w_ref, ln1b_ref, wqkv_ref, wo_ref, bo_ref,
               ln2w_ref, ln2b_ref, w1_ref, b1_ref, w2_ref, b2_ref,
               nw_ref, nb_ref, o_ref, x_sc,
               *, heads, dim_head, scale):
    layer = pl.program_id(0)
    depth = pl.num_programs(0)
    B, Nt, D = x_sc.shape
    BH = B * heads
    dh3 = 3 * dim_head

    # ---- step 0: patch embedding (Conv2d k=s=patch) + cls token + pos emb --
    @pl.when(layer == 0)
    def _embed():
        pw = jnp.broadcast_to(pe_w_ref[...][None], (B,) + pe_w_ref.shape)
        emb = _bmm(patches_ref[...], pw) + pe_b_ref[...]          # (B, N, D) f32
        cls = jnp.broadcast_to(cls_ref[...], (B, 1, D))
        tok = jnp.concatenate([cls, emb], axis=1)                 # (B, Nt, D)
        x_sc[...] = tok + pos_ref[...]
        # TODO(synk): nn.Dropout (emb_dropout / dropout) with p=0.0 / eval
        # mode is the identity; omitted.

    # ---------------- transformer layer `layer` (runs every step) ----------
    x = x_sc[...]                                                 # (B, Nt, D) f32

    # -- pre-norm multi-head self-attention + residual --
    # bf16 cast BEFORE the per-head broadcast (half-size replicated copy).
    xn = _layernorm(x, ln1w_ref[0], ln1b_ref[0]).astype(_MM_DTYPE)
    xh = jnp.broadcast_to(xn[:, None], (B, heads, Nt, D)).reshape(BH, Nt, D)
    wqkv = jnp.broadcast_to(wqkv_ref[...], (B, heads, D, dh3)).reshape(BH, D, dh3)
    qkv = _bmm(xh, wqkv)                                          # (BH, Nt, 3*dh) f32
    q = qkv[:, :, 0:dim_head] * scale                             # scale folded into q
    k = qkv[:, :, dim_head:2 * dim_head]
    v = qkv[:, :, 2 * dim_head:dh3]

    s = _bmm_nt(q, k)                                             # (BH, Nt, Nt)
    s = s - jnp.max(s, axis=-1, keepdims=True)
    e = jnp.exp(s)
    p = e * pl.reciprocal(jnp.sum(e, axis=-1, keepdims=True), approx=True)
    o = _bmm(p, v)                                                # (BH, Nt, dh)

    # Per-head output projection, summed over heads
    # (== concat(heads) @ Wo since Wo is block-partitioned by head rows).
    wo = jnp.broadcast_to(wo_ref[...], (B, heads, dim_head, D)).reshape(BH, dim_head, D)
    ph = _bmm(o, wo).reshape(B, heads, Nt, D)
    x = x + jnp.sum(ph, axis=1) + bo_ref[0]                       # residual

    # -- pre-norm MLP (Linear -> GELU -> Linear) + residual --
    xn2 = _layernorm(x, ln2w_ref[0], ln2b_ref[0]).astype(_MM_DTYPE)
    w1 = jnp.broadcast_to(w1_ref[...], (B,) + w1_ref.shape[1:])
    h = _bmm(xn2, w1) + b1_ref[0]                                 # (B, Nt, mlp) f32
    g = _gelu_exact(h).astype(_MM_DTYPE)
    w2 = jnp.broadcast_to(w2_ref[...], (B,) + w2_ref.shape[1:])
    x = x + _bmm(g, w2) + b2_ref[0]

    x_sc[...] = x                                                 # carry to next layer

    # ---- last step: drop the cls token, final LayerNorm (row-wise, so ----
    # ---- slice-then-norm == norm-then-slice) ------------------------------
    @pl.when(layer == depth - 1)
    def _final():
        o_ref[...] = _layernorm(x[:, 1:, :], nw_ref[...], nb_ref[...])


# --------------------------------- wrapper ---------------------------------

def vit_forward(img, params, cfg):
    B, C, H, W = img.shape
    ph = pw = cfg["patch"]
    Hp, Wp = H // ph, W // pw
    N = Hp * Wp
    Nt = N + 1
    D = cfg["dim"]
    heads, dim_head = cfg["heads"], cfg["dim_head"]
    depth = cfg["depth"]
    P = C * ph * pw

    # --- layout glue (plain JAX, one-time): Conv2d(k=s=patch) == patches ---
    # Flatten order (C, ph, pw) matches the Conv2d weight layout (D, C, ph, pw).
    patches = img.reshape(B, C, Hp, ph, Wp, pw)
    patches = patches.transpose(0, 2, 4, 1, 3, 5).reshape(B, N, P)

    # --- stack per-layer weights with a leading `depth` axis ----------------
    def stack(name):
        return jnp.stack([l[name] for l in params["layers"]], axis=0)

    def bf16(a):                                # MXU operands: half the DMA
        return a.astype(jnp.bfloat16)

    # to_qkv weight (stored (D, 3*inner), columns = [q|k|v] x head-major x dh)
    # -> per-head layout (depth, heads, D, 3*dim_head) with [q|k|v] per head.
    wqkv = stack("wqkv")
    wqkv_h = wqkv.reshape(depth, D, 3, heads, dim_head)
    wqkv_h = wqkv_h.transpose(0, 3, 1, 2, 4).reshape(depth, heads, D, 3 * dim_head)
    # to_out weight (stored (inner, D), rows head-major) -> (depth, heads, dh, D)
    wo_h = stack("wo").reshape(depth, heads, dim_head, D)

    args = [
        bf16(patches), bf16(params["pe_w"]), params["pe_b"],
        params["cls_token"], params["pos_embedding"],
        stack("ln1_w"), stack("ln1_b"), bf16(wqkv_h), bf16(wo_h), stack("bo"),
        stack("ln2_w"), stack("ln2_b"),
        bf16(stack("w1")), stack("b1"), bf16(stack("w2")), stack("b2"),
        params["norm_w"], params["norm_b"],
    ]

    def const_spec(a):                       # whole array, resident across layers
        nd = a.ndim
        return pl.BlockSpec(a.shape, lambda l, nd=nd: (0,) * nd)

    def layer_spec(a):                       # stream layer `l`'s slice
        nd = a.ndim
        return pl.BlockSpec((1,) + a.shape[1:],
                            lambda l, nd=nd: (l,) + (0,) * (nd - 1))

    in_specs = ([const_spec(a) for a in args[:5]]
                + [layer_spec(a) for a in args[5:16]]
                + [const_spec(a) for a in args[16:]])

    kernel = functools.partial(
        vit_kernel, heads=heads, dim_head=dim_head, scale=dim_head ** (-0.5))

    return pl.pallas_call(
        kernel,
        out_shape=jax.ShapeDtypeStruct((B, N, D), jnp.float32),
        grid_spec=pltpu.PrefetchScalarGridSpec(
            num_scalar_prefetch=0,
            grid=(depth,),
            in_specs=in_specs,
            out_specs=pl.BlockSpec((B, N, D), lambda l: (0, 0, 0)),
            scratch_shapes=[pltpu.VMEM((B, Nt, D), jnp.float32)]),
        compiler_params=pltpu.CompilerParams(
            dimension_semantics=("arbitrary",),     # layer loop carries state
            vmem_limit_bytes=64 * 1024 * 1024),
    )(*args)


# --------------------------- parameter init --------------------------------

def init_params(key, cfg):
    C, p, D = cfg["channels"], cfg["patch"], cfg["dim"]
    heads, dim_head, mlp = cfg["heads"], cfg["dim_head"], cfg["mlp_dim"]
    inner = heads * dim_head
    N = (cfg["image"] // p) ** 2
    P = C * p * p

    def normal(k, shape, scale=0.02):
        return scale * jax.random.normal(k, shape, jnp.float32)

    keys = jax.random.split(key, 4 + cfg["depth"])
    params = {
        "pe_w": normal(keys[0], (P, D)),          # Conv2d weight, flattened & transposed
        "pe_b": jnp.zeros((1, D), jnp.float32),   # Conv2d bias
        "cls_token": normal(keys[1], (1, 1, D), 1.0),
        "pos_embedding": normal(keys[2], (1, N + 1, D), 1.0),
        "norm_w": jnp.ones((1, D), jnp.float32),
        "norm_b": jnp.zeros((1, D), jnp.float32),
        "layers": [],
    }
    for i in range(cfg["depth"]):
        lk = jax.random.split(keys[4 + i], 4)
        params["layers"].append({
            "ln1_w": jnp.ones((1, D), jnp.float32),
            "ln1_b": jnp.zeros((1, D), jnp.float32),
            "wqkv": normal(lk[0], (D, 3 * inner)),      # qkv_bias=False
            "wo": normal(lk[1], (inner, D)),
            "bo": jnp.zeros((1, D), jnp.float32),
            "ln2_w": jnp.ones((1, D), jnp.float32),
            "ln2_b": jnp.zeros((1, D), jnp.float32),
            "w1": normal(lk[2], (D, mlp)),
            "b1": jnp.zeros((1, mlp), jnp.float32),
            "w2": normal(lk[3], (mlp, D)),
            "b2": jnp.zeros((1, D), jnp.float32),
        })
    return params


# --------------------------------- main -------------------------------------

if __name__ == "__main__":
    cfg = dict(image=16, patch=8, dim=32, depth=2, heads=4, dim_head=8,
               mlp_dim=64, channels=4)

    key = jax.random.PRNGKey(0)
    pkey, xkey = jax.random.split(key)
    params = init_params(pkey, cfg)

    img = jax.random.normal(
        xkey, (2, cfg["channels"], cfg["image"], cfg["image"]), jnp.float32)

    out = vit_forward(img, params, cfg)
    out = jax.block_until_ready(out)

    num_patches = (cfg["image"] // cfg["patch"]) ** 2
    assert out.shape == (2, num_patches, cfg["dim"]), out.shape
    assert bool(jnp.all(jnp.isfinite(out)))
    print("KERNEL_OK")
</pallas_src>

<mosaic_0001>
module attributes {stable_mosaic.version = 11 : i64} {
  func.func @vit_kernel(%arg0: i32, %arg1: memref<2x4x256xbf16, #tpu.memory_space<vmem>>, %arg2: memref<256x32xbf16, #tpu.memory_space<vmem>>, %arg3: memref<1x32xf32, #tpu.memory_space<vmem>>, %arg4: memref<1x1x32xf32, #tpu.memory_space<vmem>>, %arg5: memref<1x5x32xf32, #tpu.memory_space<vmem>>, %arg6: memref<1x1x32xf32, #tpu.memory_space<vmem>>, %arg7: memref<1x1x32xf32, #tpu.memory_space<vmem>>, %arg8: memref<1x4x32x24xbf16, #tpu.memory_space<vmem>>, %arg9: memref<1x4x8x32xbf16, #tpu.memory_space<vmem>>, %arg10: memref<1x1x32xf32, #tpu.memory_space<vmem>>, %arg11: memref<1x1x32xf32, #tpu.memory_space<vmem>>, %arg12: memref<1x1x32xf32, #tpu.memory_space<vmem>>, %arg13: memref<1x32x64xbf16, #tpu.memory_space<vmem>>, %arg14: memref<1x1x64xf32, #tpu.memory_space<vmem>>, %arg15: memref<1x64x32xbf16, #tpu.memory_space<vmem>>, %arg16: memref<1x1x32xf32, #tpu.memory_space<vmem>>, %arg17: memref<1x32xf32, #tpu.memory_space<vmem>>, %arg18: memref<1x32xf32, #tpu.memory_space<vmem>>, %arg19: memref<2x4x32xf32, #tpu.memory_space<vmem>>, %arg20: memref<2x5x32xf32, #tpu.memory_space<vmem>>) attributes {dimension_semantics = [#tpu.dimension_semantics<arbitrary>], iteration_bounds = array<i64: 2>, scalar_prefetch = 0 : i64, scratch_operands = 1 : i64, tpu.core_type = #tpu.core_type<tc>, window_params = [{pipeline_mode = #tpu.pipeline_mode<synchronous>, transform_indices = @transform_0, window_bounds = array<i64: 2, 4, 256>}, {pipeline_mode = #tpu.pipeline_mode<synchronous>, transform_indices = @transform_1, window_bounds = array<i64: 256, 32>}, {pipeline_mode = #tpu.pipeline_mode<synchronous>, transform_indices = @transform_2, window_bounds = array<i64: 1, 32>}, {pipeline_mode = #tpu.pipeline_mode<synchronous>, transform_indices = @transform_3, window_bounds = array<i64: 1, 1, 32>}, {pipeline_mode = #tpu.pipeline_mode<synchronous>, transform_indices = @transform_4, window_bounds = array<i64: 1, 5, 32>}, {transform_indices = @transform_5, window_bounds = array<i64: 1, 1, 32>}, {transform_indices = @transform_6, window_bounds = array<i64: 1, 1, 32>}, {transform_indices = @transform_7, window_bounds = array<i64: 1, 4, 32, 24>}, {transform_indices = @transform_8, window_bounds = array<i64: 1, 4, 8, 32>}, {transform_indices = @transform_9, window_bounds = array<i64: 1, 1, 32>}, {transform_indices = @transform_10, window_bounds = array<i64: 1, 1, 32>}, {transform_indices = @transform_11, window_bounds = array<i64: 1, 1, 32>}, {transform_indices = @transform_12, window_bounds = array<i64: 1, 32, 64>}, {transform_indices = @transform_13, window_bounds = array<i64: 1, 1, 64>}, {transform_indices = @transform_14, window_bounds = array<i64: 1, 64, 32>}, {transform_indices = @transform_15, window_bounds = array<i64: 1, 1, 32>}, {pipeline_mode = #tpu.pipeline_mode<synchronous>, transform_indices = @transform_16, window_bounds = array<i64: 1, 32>}, {pipeline_mode = #tpu.pipeline_mode<synchronous>, transform_indices = @transform_17, window_bounds = array<i64: 1, 32>}, {pipeline_mode = #tpu.pipeline_mode<synchronous>, transform_indices = @transform_18, window_bounds = array<i64: 2, 4, 32>}]} {
    %c0_i32 = arith.constant 0 : i32
    %0 = arith.cmpi eq, %arg0, %c0_i32 : i32
    %1 = arith.extui %0 : i1 to i32
    %c0_i32_0 = arith.constant 0 : i32
    %2 = arith.cmpi ne, %1, %c0_i32_0 : i32
    scf.if %2 {
      %c0_78 = arith.constant 0 : index
      %c0_79 = arith.constant 0 : index
      %173 = vector.load %arg2[%c0_78, %c0_79] : memref<256x32xbf16, #tpu.memory_space<vmem>>, vector<256x32xbf16>
      %174 = vector.shape_cast %173 : vector<256x32xbf16> to vector<1x256x32xbf16>
      %175 = vector.shape_cast %174 : vector<1x256x32xbf16> to vector<1x256x32xbf16>
      %176 = vector.broadcast %175 : vector<1x256x32xbf16> to vector<2x256x32xbf16>
      %c0_80 = arith.constant 0 : index
      %c0_81 = arith.constant 0 : index
      %c0_82 = arith.constant 0 : index
      %177 = vector.load %arg1[%c0_80, %c0_81, %c0_82] : memref<2x4x256xbf16, #tpu.memory_space<vmem>>, vector<2x4x256xbf16>
      %cst_83 = arith.constant dense<0.000000e+00> : vector<2x4x32xf32>
      %178 = tpu.matmul %177, %176, %cst_83 {dimension_numbers = #tpu.dot_dimension_numbers<[2], [1], [1], [2], [0, 0, 0, 1, 1, 2], [0], [0]>} : vector<2x4x256xbf16>, vector<2x256x32xbf16>, vector<2x4x32xf32> -> vector<2x4x32xf32>
      %c0_84 = arith.constant 0 : index
      %c0_85 = arith.constant 0 : index
      %179 = vector.load %arg3[%c0_84, %c0_85] : memref<1x32xf32, #tpu.memory_space<vmem>>, vector<1x32xf32>
      %180 = vector.shape_cast %179 : vector<1x32xf32> to vector<1x1x32xf32>
      %181 = vector.broadcast %180 : vector<1x1x32xf32> to vector<2x4x32xf32>
      %182 = arith.addf %178, %181 : vector<2x4x32xf32>
      %c0_86 = arith.constant 0 : index
      %c0_87 = arith.constant 0 : index
      %c0_88 = arith.constant 0 : index
      %183 = vector.load %arg4[%c0_86, %c0_87, %c0_88] : memref<1x1x32xf32, #tpu.memory_space<vmem>>, vector<1x1x32xf32>
      %184 = vector.shape_cast %183 : vector<1x1x32xf32> to vector<1x1x32xf32>
      %185 = vector.broadcast %184 : vector<1x1x32xf32> to vector<2x1x32xf32>
      %186 = tpu.concatenate %185, %182 in 1 : vector<2x1x32xf32>, vector<2x4x32xf32> -> vector<2x5x32xf32>
      %c0_89 = arith.constant 0 : index
      %c0_90 = arith.constant 0 : index
      %c0_91 = arith.constant 0 : index
      %187 = vector.load %arg5[%c0_89, %c0_90, %c0_91] : memref<1x5x32xf32, #tpu.memory_space<vmem>>, vector<1x5x32xf32>
      %188 = vector.broadcast %187 : vector<1x5x32xf32> to vector<2x5x32xf32>
      %189 = arith.addf %186, %188 : vector<2x5x32xf32>
      %c0_92 = arith.constant 0 : index
      %c0_93 = arith.constant 0 : index
      %c0_94 = arith.constant 0 : index
      %190 = vector.load %arg20[%c0_92, %c0_93, %c0_94] : memref<2x5x32xf32, #tpu.memory_space<vmem>>, vector<2x5x32xf32>
      tpu.vector_store %arg20[%c0_92, %c0_93, %c0_94], %189 {strides = array<i32>} : memref<2x5x32xf32, #tpu.memory_space<vmem>>, vector<2x5x32xf32>,
    } else {
    }
    %c0 = arith.constant 0 : index
    %c0_1 = arith.constant 0 : index
    %c0_2 = arith.constant 0 : index
    %3 = vector.load %arg20[%c0, %c0_1, %c0_2] : memref<2x5x32xf32, #tpu.memory_space<vmem>>, vector<2x5x32xf32>
    %c0_3 = arith.constant 0 : index
    %c0_4 = arith.constant 0 : index
    %c0_5 = arith.constant 0 : index
    %4 = vector.load %arg6[%c0_3, %c0_4, %c0_5] : memref<1x1x32xf32, #tpu.memory_space<vmem>>, vector<1x1x32xf32>
    %5 = vector.shape_cast %4 : vector<1x1x32xf32> to vector<1x32xf32>
    %c0_6 = arith.constant 0 : index
    %c0_7 = arith.constant 0 : index
    %c0_8 = arith.constant 0 : index
    %6 = vector.load %arg7[%c0_6, %c0_7, %c0_8] : memref<1x1x32xf32, #tpu.memory_space<vmem>>, vector<1x1x32xf32>
    %7 = vector.shape_cast %6 : vector<1x1x32xf32> to vector<1x32xf32>
    %cst = arith.constant dense<0.000000e+00> : vector<2x5xf32>
    %8 = vector.multi_reduction <add>, %3, %cst [2] : vector<2x5x32xf32> to vector<2x5xf32>
    %9 = vector.shape_cast %8 : vector<2x5xf32> to vector<2x5x1xf32>
    %cst_9 = arith.constant 3.200000e+01 : f32
    %10 = vector.broadcast %cst_9 : f32 to vector<2x5x1xf32>
    %11 = arith.divf %9, %10 : vector<2x5x1xf32>
    %12 = vector.broadcast %11 : vector<2x5x1xf32> to vector<2x5x32xf32>
    %13 = arith.subf %3, %12 : vector<2x5x32xf32>
    %14 = arith.mulf %13, %13 : vector<2x5x32xf32>
    %cst_10 = arith.constant dense<0.000000e+00> : vector<2x5xf32>
    %15 = vector.multi_reduction <add>, %14, %cst_10 [2] : vector<2x5x32xf32> to vector<2x5xf32>
    %16 = vector.shape_cast %15 : vector<2x5xf32> to vector<2x5x1xf32>
    %cst_11 = arith.constant 3.200000e+01 : f32
    %17 = vector.broadcast %cst_11 : f32 to vector<2x5x1xf32>
    %18 = arith.divf %16, %17 : vector<2x5x1xf32>
    %cst_12 = arith.constant 9.99999974E-6 : f32
    %19 = vector.broadcast %cst_12 : f32 to vector<2x5x1xf32>
    %20 = arith.addf %18, %19 : vector<2x5x1xf32>
    %21 = math.rsqrt %20 : vector<2x5x1xf32>
    %22 = vector.broadcast %21 : vector<2x5x1xf32> to vector<2x5x32xf32>
    %23 = arith.mulf %13, %22 : vector<2x5x32xf32>
    %24 = vector.shape_cast %5 : vector<1x32xf32> to vector<1x1x32xf32>
    %25 = vector.broadcast %24 : vector<1x1x32xf32> to vector<2x5x32xf32>
    %26 = arith.mulf %23, %25 : vector<2x5x32xf32>
    %27 = vector.shape_cast %7 : vector<1x32xf32> to vector<1x1x32xf32>
    %28 = vector.broadcast %27 : vector<1x1x32xf32> to vector<2x5x32xf32>
    %29 = arith.addf %26, %28 : vector<2x5x32xf32>
    %30 = arith.truncf %29 : vector<2x5x32xf32> to vector<2x5x32xbf16>
    %31 = vector.shape_cast %30 : vector<2x5x32xbf16> to vector<2x1x5x32xbf16>
    %32 = vector.shape_cast %31 : vector<2x1x5x32xbf16> to vector<2x1x5x32xbf16>
    %33 = vector.broadcast %32 : vector<2x1x5x32xbf16> to vector<2x4x5x32xbf16>
    %34 = vector.shape_cast %33 : vector<2x4x5x32xbf16> to vector<8x5x32xbf16>
    %c0_13 = arith.constant 0 : index
    %c0_14 = arith.constant 0 : index
    %c0_15 = arith.constant 0 : index
    %c0_16 = arith.constant 0 : index
    %35 = vector.load %arg8[%c0_13, %c0_14, %c0_15, %c0_16] : memref<1x4x32x24xbf16, #tpu.memory_space<vmem>>, vector<1x4x32x24xbf16>
    %36 = vector.shape_cast %35 : vector<1x4x32x24xbf16> to vector<1x4x32x24xbf16>
    %37 = vector.broadcast %36 : vector<1x4x32x24xbf16> to vector<2x4x32x24xbf16>
    %38 = vector.shape_cast %37 : vector<2x4x32x24xbf16> to vector<8x32x24xbf16>
    %cst_17 = arith.constant dense<0.000000e+00> : vector<8x5x24xf32>
    %39 = tpu.matmul %34, %38, %cst_17 {dimension_numbers = #tpu.dot_dimension_numbers<[2], [1], [1], [2], [0, 0, 0, 1, 1, 2], [0], [0]>} : vector<8x5x32xbf16>, vector<8x32x24xbf16>, vector<8x5x24xf32> -> vector<8x5x24xf32>
    %40 = vector.extract_strided_slice %39 {offsets = [0, 0, 0], sizes = [8, 5, 8], strides = [1, 1, 1]} : vector<8x5x24xf32> to vector<8x5x8xf32>
    %cst_18 = arith.constant 0.353553385 : f32
    %41 = vector.broadcast %cst_18 : f32 to vector<8x5x8xf32>
    %42 = arith.mulf %40, %41 : vector<8x5x8xf32>
    %43 = vector.extract_strided_slice %39 {offsets = [0, 0, 8], sizes = [8, 5, 8], strides = [1, 1, 1]} : vector<8x5x24xf32> to vector<8x5x8xf32>
    %44 = vector.extract_strided_slice %39 {offsets = [0, 0, 16], sizes = [8, 5, 8], strides = [1, 1, 1]} : vector<8x5x24xf32> to vector<8x5x8xf32>
    %45 = arith.truncf %42 : vector<8x5x8xf32> to vector<8x5x8xbf16>
    %46 = arith.truncf %43 : vector<8x5x8xf32> to vector<8x5x8xbf16>
    %cst_19 = arith.constant dense<0.000000e+00> : vector<8x5x5xf32>
    %47 = tpu.matmul %45, %46, %cst_19 {dimension_numbers = #tpu.dot_dimension_numbers<[2], [2], [1], [1], [0, 0, 0, 1, 1, 1], [0], [0]>} : vector<8x5x8xbf16>, vector<8x5x8xbf16>, vector<8x5x5xf32> -> vector<8x5x5xf32>
    %cst_20 = arith.constant dense<0xFF800000> : vector<8x5xf32>
    %48 = vector.multi_reduction <maximumf>, %47, %cst_20 [2] : vector<8x5x5xf32> to vector<8x5xf32>
    %49 = vector.shape_cast %48 : vector<8x5xf32> to vector<8x5x1xf32>
    %50 = vector.broadcast %49 : vector<8x5x1xf32> to vector<8x5x5xf32>
    %51 = arith.subf %47, %50 : vector<8x5x5xf32>
    %52 = math.exp %51 : vector<8x5x5xf32>
    %cst_21 = arith.constant dense<0.000000e+00> : vector<8x5xf32>
    %53 = vector.multi_reduction <add>, %52, %cst_21 [2] : vector<8x5x5xf32> to vector<8x5xf32>
    %54 = vector.shape_cast %53 : vector<8x5xf32> to vector<8x5x1xf32>
    %55 = tpu.reciprocal %54 {approx = true} : vector<8x5x1xf32> -> vector<8x5x1xf32>
    %56 = vector.broadcast %55 : vector<8x5x1xf32> to vector<8x5x5xf32>
    %57 = arith.mulf %52, %56 : vector<8x5x5xf32>
    %58 = arith.truncf %57 : vector<8x5x5xf32> to vector<8x5x5xbf16>
    %59 = arith.truncf %44 : vector<8x5x8xf32> to vector<8x5x8xbf16>
    %cst_22 = arith.constant dense<0.000000e+00> : vector<8x5x8xf32>
    %60 = tpu.matmul %58, %59, %cst_22 {dimension_numbers = #tpu.dot_dimension_numbers<[2], [1], [1], [2], [0, 0, 0, 1, 1, 2], [0], [0]>} : vector<8x5x5xbf16>, vector<8x5x8xbf16>, vector<8x5x8xf32> -> vector<8x5x8xf32>
    %c0_23 = arith.constant 0 : index
    %c0_24 = arith.constant 0 : index
    %c0_25 = arith.constant 0 : index
    %c0_26 = arith.constant 0 : index
    %61 = vector.load %arg9[%c0_23, %c0_24, %c0_25, %c0_26] : memref<1x4x8x32xbf16, #tpu.memory_space<vmem>>, vector<1x4x8x32xbf16>
    %62 = vector.shape_cast %61 : vector<1x4x8x32xbf16> to vector<1x4x8x32xbf16>
    %63 = vector.broadcast %62 : vector<1x4x8x32xbf16> to vector<2x4x8x32xbf16>
    %64 = vector.shape_cast %63 : vector<2x4x8x32xbf16> to vector<8x8x32xbf16>
    %65 = arith.truncf %60 : vector<8x5x8xf32> to vector<8x5x8xbf16>
    %cst_27 = arith.constant dense<0.000000e+00> : vector<8x5x32xf32>
    %66 = tpu.matmul %65, %64, %cst_27 {dimension_numbers = #tpu.dot_dimension_numbers<[2], [1], [1], [2], [0, 0, 0, 1, 1, 2], [0], [0]>} : vector<8x5x8xbf16>, vector<8x8x32xbf16>, vector<8x5x32xf32> -> vector<8x5x32xf32>
    %67 = vector.shape_cast %66 : vector<8x5x32xf32> to vector<2x4x5x32xf32>
    %cst_28 = arith.constant dense<0.000000e+00> : vector<2x5x32xf32>
    %68 = vector.multi_reduction <add>, %67, %cst_28 [1] : vector<2x4x5x32xf32> to vector<2x5x32xf32>
    %69 = arith.addf %3, %68 : vector<2x5x32xf32>
    %c0_29 = arith.constant 0 : index
    %c0_30 = arith.constant 0 : index
    %c0_31 = arith.constant 0 : index
    %70 = vector.load %arg10[%c0_29, %c0_30, %c0_31] : memref<1x1x32xf32, #tpu.memory_space<vmem>>, vector<1x1x32xf32>
    %71 = vector.shape_cast %70 : vector<1x1x32xf32> to vector<1x32xf32>
    %72 = vector.shape_cast %71 : vector<1x32xf32> to vector<1x1x32xf32>
    %73 = vector.broadcast %72 : vector<1x1x32xf32> to vector<2x5x32xf32>
    %74 = arith.addf %69, %73 : vector<2x5x32xf32>
    %c0_32 = arith.constant 0 : index
    %c0_33 = arith.constant 0 : index
    %c0_34 = arith.constant 0 : index
    %75 = vector.load %arg11[%c0_32, %c0_33, %c0_34] : memref<1x1x32xf32, #tpu.memory_space<vmem>>, vector<1x1x32xf32>
    %76 = vector.shape_cast %75 : vector<1x1x32xf32> to vector<1x32xf32>
    %c0_35 = arith.constant 0 : index
    %c0_36 = arith.constant 0 : index
    %c0_37 = arith.constant 0 : index
    %77 = vector.load %arg12[%c0_35, %c0_36, %c0_37] : memref<1x1x32xf32, #tpu.memory_space<vmem>>, vector<1x1x32xf32>
    %78 = vector.shape_cast %77 : vector<1x1x32xf32> to vector<1x32xf32>
    %cst_38 = arith.constant dense<0.000000e+00> : vector<2x5xf32>
    %79 = vector.multi_reduction <add>, %74, %cst_38 [2] : vector<2x5x32xf32> to vector<2x5xf32>
    %80 = vector.shape_cast %79 : vector<2x5xf32> to vector<2x5x1xf32>
    %cst_39 = arith.constant 3.200000e+01 : f32
    %81 = vector.broadcast %cst_39 : f32 to vector<2x5x1xf32>
    %82 = arith.divf %80, %81 : vector<2x5x1xf32>
    %83 = vector.broadcast %82 : vector<2x5x1xf32> to vector<2x5x32xf32>
    %84 = arith.subf %74, %83 : vector<2x5x32xf32>
    %85 = arith.mulf %84, %84 : vector<2x5x32xf32>
    %cst_40 = arith.constant dense<0.000000e+00> : vector<2x5xf32>
    %86 = vector.multi_reduction <add>, %85, %cst_40 [2] : vector<2x5x32xf32> to vector<2x5xf32>
    %87 = vector.shape_cast %86 : vector<2x5xf32> to vector<2x5x1xf32>
    %cst_41 = arith.constant 3.200000e+01 : f32
    %88 = vector.broadcast %cst_41 : f32 to vector<2x5x1xf32>
    %89 = arith.divf %87, %88 : vector<2x5x1xf32>
    %cst_42 = arith.constant 9.99999974E-6 : f32
    %90 = vector.broadcast %cst_42 : f32 to vector<2x5x1xf32>
    %91 = arith.addf %89, %90 : vector<2x5x1xf32>
    %92 = math.rsqrt %91 : vector<2x5x1xf32>
    %93 = vector.broadcast %92 : vector<2x5x1xf32> to vector<2x5x32xf32>
    %94 = arith.mulf %84, %93 : vector<2x5x32xf32>
    %95 = vector.shape_cast %76 : vector<1x32xf32> to vector<1x1x32xf32>
    %96 = vector.broadcast %95 : vector<1x1x32xf32> to vector<2x5x32xf32>
    %97 = arith.mulf %94, %96 : vector<2x5x32xf32>
    %98 = vector.shape_cast %78 : vector<1x32xf32> to vector<1x1x32xf32>
    %99 = vector.broadcast %98 : vector<1x1x32xf32> to vector<2x5x32xf32>
    %100 = arith.addf %97, %99 : vector<2x5x32xf32>
    %101 = arith.truncf %100 : vector<2x5x32xf32> to vector<2x5x32xbf16>
    %c0_43 = arith.constant 0 : index
    %c0_44 = arith.constant 0 : index
    %c0_45 = arith.constant 0 : index
    %102 = vector.load %arg13[%c0_43, %c0_44, %c0_45] : memref<1x32x64xbf16, #tpu.memory_space<vmem>>, vector<1x32x64xbf16>
    %103 = vector.shape_cast %102 : vector<1x32x64xbf16> to vector<1x32x64xbf16>
    %104 = vector.broadcast %103 : vector<1x32x64xbf16> to vector<2x32x64xbf16>
    %cst_46 = arith.constant dense<0.000000e+00> : vector<2x5x64xf32>
    %105 = tpu.matmul %101, %104, %cst_46 {dimension_numbers = #tpu.dot_dimension_numbers<[2], [1], [1], [2], [0, 0, 0, 1, 1, 2], [0], [0]>} : vector<2x5x32xbf16>, vector<2x32x64xbf16>, vector<2x5x64xf32> -> vector<2x5x64xf32>
    %c0_47 = arith.constant 0 : index
    %c0_48 = arith.constant 0 : index
    %c0_49 = arith.constant 0 : index
    %106 = vector.load %arg14[%c0_47, %c0_48, %c0_49] : memref<1x1x64xf32, #tpu.memory_space<vmem>>, vector<1x1x64xf32>
    %107 = vector.shape_cast %106 : vector<1x1x64xf32> to vector<1x64xf32>
    %108 = vector.shape_cast %107 : vector<1x64xf32> to vector<1x1x64xf32>
    %109 = vector.broadcast %108 : vector<1x1x64xf32> to vector<2x5x64xf32>
    %110 = arith.addf %105, %109 : vector<2x5x64xf32>
    %cst_50 = arith.constant 5.000000e-01 : f32
    %111 = vector.broadcast %cst_50 : f32 to vector<2x5x64xf32>
    %112 = arith.mulf %111, %110 : vector<2x5x64xf32>
    %cst_51 = arith.constant 0.707106769 : f32
    %113 = vector.broadcast %cst_51 : f32 to vector<2x5x64xf32>
    %114 = arith.mulf %110, %113 : vector<2x5x64xf32>
    %cst_52 = arith.constant -4.000000e+00 : f32
    %cst_53 = arith.constant 4.000000e+00 : f32
    %115 = vector.broadcast %cst_52 : f32 to vector<2x5x64xf32>
    %116 = arith.maximumf %115, %114 : vector<2x5x64xf32>
    %117 = vector.broadcast %cst_53 : f32 to vector<2x5x64xf32>
    %118 = arith.minimumf %117, %116 : vector<2x5x64xf32>
    %119 = arith.mulf %118, %118 : vector<2x5x64xf32>
    %cst_54 = arith.constant -2.72614237E-10 : f32
    %120 = vector.broadcast %cst_54 : f32 to vector<2x5x64xf32>
    %121 = arith.mulf %119, %120 : vector<2x5x64xf32>
    %cst_55 = arith.constant 2.77068146E-8 : f32
    %122 = vector.broadcast %cst_55 : f32 to vector<2x5x64xf32>
    %123 = arith.addf %121, %122 : vector<2x5x64xf32>
    %124 = arith.mulf %119, %123 : vector<2x5x64xf32>
    %cst_56 = arith.constant -2.10102394E-6 : f32
    %125 = vector.broadcast %cst_56 : f32 to vector<2x5x64xf32>
    %126 = arith.addf %124, %125 : vector<2x5x64xf32>
    %127 = arith.mulf %119, %126 : vector<2x5x64xf32>
    %cst_57 = arith.constant -5.69250624E-5 : f32
    %128 = vector.broadcast %cst_57 : f32 to vector<2x5x64xf32>
    %129 = arith.addf %127, %128 : vector<2x5x64xf32>
    %130 = arith.mulf %119, %129 : vector<2x5x64xf32>
    %cst_58 = arith.constant -7.34990637E-4 : f32
    %131 = vector.broadcast %cst_58 : f32 to vector<2x5x64xf32>
    %132 = arith.addf %130, %131 : vector<2x5x64xf32>
    %133 = arith.mulf %119, %132 : vector<2x5x64xf32>
    %cst_59 = arith.constant -2.954600e-03 : f32
    %134 = vector.broadcast %cst_59 : f32 to vector<2x5x64xf32>
    %135 = arith.addf %133, %134 : vector<2x5x64xf32>
    %136 = arith.mulf %119, %135 : vector<2x5x64xf32>
    %cst_60 = arith.constant -0.0160960332 : f32
    %137 = vector.broadcast %cst_60 : f32 to vector<2x5x64xf32>
    %138 = arith.addf %136, %137 : vector<2x5x64xf32>
    %139 = arith.mulf %118, %138 : vector<2x5x64xf32>
    %cst_61 = arith.constant -1.45660715E-5 : f32
    %140 = vector.broadcast %cst_61 : f32 to vector<2x5x64xf32>
    %141 = arith.mulf %119, %140 : vector<2x5x64xf32>
    %cst_62 = arith.constant -2.13374049E-4 : f32
    %142 = vector.broadcast %cst_62 : f32 to vector<2x5x64xf32>
    %143 = arith.addf %141, %142 : vector<2x5x64xf32>
    %144 = arith.mulf %119, %143 : vector<2x5x64xf32>
    %cst_63 = arith.constant -0.00168282702 : f32
    %145 = vector.broadcast %cst_63 : f32 to vector<2x5x64xf32>
    %146 = arith.addf %144, %145 : vector<2x5x64xf32>
    %147 = arith.mulf %119, %146 : vector<2x5x64xf32>
    %cst_64 = arith.constant -0.00737332925 : f32
    %148 = vector.broadcast %cst_64 : f32 to vector<2x5x64xf32>
    %149 = arith.addf %147, %148 : vector<2x5x64xf32>
    %150 = arith.mulf %119, %149 : vector<2x5x64xf32>
    %cst_65 = arith.constant -0.0142647391 : f32
    %151 = vector.broadcast %cst_65 : f32 to vector<2x5x64xf32>
    %152 = arith.addf %150, %151 : vector<2x5x64xf32>
    %153 = tpu.reciprocal %152 : vector<2x5x64xf32> -> vector<2x5x64xf32>
    %154 = arith.mulf %139, %153 : vector<2x5x64xf32>
    %cst_66 = arith.constant 1.000000e+00 : f32
    %155 = vector.broadcast %cst_66 : f32 to vector<2x5x64xf32>
    %156 = arith.addf %155, %154 : vector<2x5x64xf32>
    %157 = arith.mulf %112, %156 : vector<2x5x64xf32>
    %158 = arith.truncf %157 : vector<2x5x64xf32> to vector<2x5x64xbf16>
    %c0_67 = arith.constant 0 : index
    %c0_68 = arith.constant 0 : index
    %c0_69 = arith.constant 0 : index
    %159 = vector.load %arg15[%c0_67, %c0_68, %c0_69] : memref<1x64x32xbf16, #tpu.memory_space<vmem>>, vector<1x64x32xbf16>
    %160 = vector.shape_cast %159 : vector<1x64x32xbf16> to vector<1x64x32xbf16>
    %161 = vector.broadcast %160 : vector<1x64x32xbf16> to vector<2x64x32xbf16>
    %cst_70 = arith.constant dense<0.000000e+00> : vector<2x5x32xf32>
    %162 = tpu.matmul %158, %161, %cst_70 {dimension_numbers = #tpu.dot_dimension_numbers<[2], [1], [1], [2], [0, 0, 0, 1, 1, 2], [0], [0]>} : vector<2x5x64xbf16>, vector<2x64x32xbf16>, vector<2x5x32xf32> -> vector<2x5x32xf32>
    %163 = arith.addf %74, %162 : vector<2x5x32xf32>
    %c0_71 = arith.constant 0 : index
    %c0_72 = arith.constant 0 : index
    %c0_73 = arith.constant 0 : index
    %164 = vector.load %arg16[%c0_71, %c0_72, %c0_73] : memref<1x1x32xf32, #tpu.memory_space<vmem>>, vector<1x1x32xf32>
    %165 = vector.shape_cast %164 : vector<1x1x32xf32> to vector<1x32xf32>
    %166 = vector.shape_cast %165 : vector<1x32xf32> to vector<1x1x32xf32>
    %167 = vector.broadcast %166 : vector<1x1x32xf32> to vector<2x5x32xf32>
    %168 = arith.addf %163, %167 : vector<2x5x32xf32>
    %c0_74 = arith.constant 0 : index
    %c0_75 = arith.constant 0 : index
    %c0_76 = arith.constant 0 : index
    %169 = vector.load %arg20[%c0_74, %c0_75, %c0_76] : memref<2x5x32xf32, #tpu.memory_space<vmem>>, vector<2x5x32xf32>
    tpu.vector_store %arg20[%c0_74, %c0_75, %c0_76], %168 {strides = array<i32>} : memref<2x5x32xf32, #tpu.memory_space<vmem>>, vector<2x5x32xf32>,
    %c1_i32 = arith.constant 1 : i32
    %170 = arith.cmpi eq, %arg0, %c1_i32 : i32
    %171 = arith.extui %170 : i1 to i32
    %c0_i32_77 = arith.constant 0 : i32
    %172 = arith.cmpi ne, %171, %c0_i32_77 : i32
    scf.if %172 {
      %173 = vector.extract_strided_slice %168 {offsets = [0, 1, 0], sizes = [2, 4, 32], strides = [1, 1, 1]} : vector<2x5x32xf32> to vector<2x4x32xf32>
      %c0_78 = arith.constant 0 : index
      %c0_79 = arith.constant 0 : index
      %174 = vector.load %arg17[%c0_78, %c0_79] : memref<1x32xf32, #tpu.memory_space<vmem>>, vector<1x32xf32>
      %c0_80 = arith.constant 0 : index
      %c0_81 = arith.constant 0 : index
      %175 = vector.load %arg18[%c0_80, %c0_81] : memref<1x32xf32, #tpu.memory_space<vmem>>, vector<1x32xf32>
      %cst_82 = arith.constant dense<0.000000e+00> : vector<2x4xf32>
      %176 = vector.multi_reduction <add>, %173, %cst_82 [2] : vector<2x4x32xf32> to vector<2x4xf32>
      %177 = vector.shape_cast %176 : vector<2x4xf32> to vector<2x4x1xf32>
      %cst_83 = arith.constant 3.200000e+01 : f32
      %178 = vector.broadcast %cst_83 : f32 to vector<2x4x1xf32>
      %179 = arith.divf %177, %178 : vector<2x4x1xf32>
      %180 = vector.broadcast %179 : vector<2x4x1xf32> to vector<2x4x32xf32>
      %181 = arith.subf %173, %180 : vector<2x4x32xf32>
      %182 = arith.mulf %181, %181 : vector<2x4x32xf32>
      %cst_84 = arith.constant dense<0.000000e+00> : vector<2x4xf32>
      %183 = vector.multi_reduction <add>, %182, %cst_84 [2] : vector<2x4x32xf32> to vector<2x4xf32>
      %184 = vector.shape_cast %183 : vector<2x4xf32> to vector<2x4x1xf32>
      %cst_85 = arith.constant 3.200000e+01 : f32
      %185 = vector.broadcast %cst_85 : f32 to vector<2x4x1xf32>
      %186 = arith.divf %184, %185 : vector<2x4x1xf32>
      %cst_86 = arith.constant 9.99999974E-6 : f32
      %187 = vector.broadcast %cst_86 : f32 to vector<2x4x1xf32>
      %188 = arith.addf %186, %187 : vector<2x4x1xf32>
      %189 = math.rsqrt %188 : vector<2x4x1xf32>
      %190 = vector.broadcast %189 : vector<2x4x1xf32> to vector<2x4x32xf32>
      %191 = arith.mulf %181, %190 : vector<2x4x32xf32>
      %192 = vector.shape_cast %174 : vector<1x32xf32> to vector<1x1x32xf32>
      %193 = vector.broadcast %192 : vector<1x1x32xf32> to vector<2x4x32xf32>
      %194 = arith.mulf %191, %193 : vector<2x4x32xf32>
      %195 = vector.shape_cast %175 : vector<1x32xf32> to vector<1x1x32xf32>
      %196 = vector.broadcast %195 : vector<1x1x32xf32> to vector<2x4x32xf32>
      %197 = arith.addf %194, %196 : vector<2x4x32xf32>
      %c0_87 = arith.constant 0 : index
      %c0_88 = arith.constant 0 : index
      %c0_89 = arith.constant 0 : index
      %198 = vector.load %arg19[%c0_87, %c0_88, %c0_89] : memref<2x4x32xf32, #tpu.memory_space<vmem>>, vector<2x4x32xf32>
      tpu.vector_store %arg19[%c0_87, %c0_88, %c0_89], %197 {strides = array<i32>} : memref<2x4x32xf32, #tpu.memory_space<vmem>>, vector<2x4x32xf32>,
    } else {
    }
    return
  }
  func.func @transform_0(%arg0: i32) -> (i32, i32, i32) {
    %c0_i32 = arith.constant 0 : i32
    %c0_i32_0 = arith.constant 0 : i32
    %c0_i32_1 = arith.constant 0 : i32
    %c0_i32_2 = arith.constant 0 : i32
    return %c0_i32, %c0_i32_0, %c0_i32_1 : i32, i32, i32
  }
  func.func @transform_1(%arg0: i32) -> (i32, i32) {
    %c0_i32 = arith.constant 0 : i32
    %c0_i32_0 = arith.constant 0 : i32
    %c0_i32_1 = arith.constant 0 : i32
    return %c0_i32, %c0_i32_0 : i32, i32
  }
  func.func @transform_2(%arg0: i32) -> (i32, i32) {
    %c0_i32 = arith.constant 0 : i32
    %c0_i32_0 = arith.constant 0 : i32
    %c0_i32_1 = arith.constant 0 : i32
    return %c0_i32, %c0_i32_0 : i32, i32
  }
  func.func @transform_3(%arg0: i32) -> (i32, i32, i32) {
    %c0_i32 = arith.constant 0 : i32
    %c0_i32_0 = arith.constant 0 : i32
    %c0_i32_1 = arith.constant 0 : i32
    %c0_i32_2 = arith.constant 0 : i32
    return %c0_i32, %c0_i32_0, %c0_i32_1 : i32, i32, i32
  }
  func.func @transform_4(%arg0: i32) -> (i32, i32, i32) {
    %c0_i32 = arith.constant 0 : i32
    %c0_i32_0 = arith.constant 0 : i32
    %c0_i32_1 = arith.constant 0 : i32
    %c0_i32_2 = arith.constant 0 : i32
    return %c0_i32, %c0_i32_0, %c0_i32_1 : i32, i32, i32
  }
  func.func @transform_5(%arg0: i32) -> (i32, i32, i32) {
    %c0_i32 = arith.constant 0 : i32
    %c0_i32_0 = arith.constant 0 : i32
    %c0_i32_1 = arith.constant 0 : i32
    return %arg0, %c0_i32, %c0_i32_0 : i32, i32, i32
  }
  func.func @transform_6(%arg0: i32) -> (i32, i32, i32) {
    %c0_i32 = arith.constant 0 : i32
    %c0_i32_0 = arith.constant 0 : i32
    %c0_i32_1 = arith.constant 0 : i32
    return %arg0, %c0_i32, %c0_i32_0 : i32, i32, i32
  }
  func.func @transform_7(%arg0: i32) -> (i32, i32, i32, i32) {
    %c0_i32 = arith.constant 0 : i32
    %c0_i32_0 = arith.constant 0 : i32
    %c0_i32_1 = arith.constant 0 : i32
    %c0_i32_2 = arith.constant 0 : i32
    return %arg0, %c0_i32, %c0_i32_0, %c0_i32_1 : i32, i32, i32, i32
  }
  func.func @transform_8(%arg0: i32) -> (i32, i32, i32, i32) {
    %c0_i32 = arith.constant 0 : i32
    %c0_i32_0 = arith.constant 0 : i32
    %c0_i32_1 = arith.constant 0 : i32
    %c0_i32_2 = arith.constant 0 : i32
    return %arg0, %c0_i32, %c0_i32_0, %c0_i32_1 : i32, i32, i32, i32
  }
  func.func @transform_9(%arg0: i32) -> (i32, i32, i32) {
    %c0_i32 = arith.constant 0 : i32
    %c0_i32_0 = arith.constant 0 : i32
    %c0_i32_1 = arith.constant 0 : i32
    return %arg0, %c0_i32, %c0_i32_0 : i32, i32, i32
  }
  func.func @transform_10(%arg0: i32) -> (i32, i32, i32) {
    %c0_i32 = arith.constant 0 : i32
    %c0_i32_0 = arith.constant 0 : i32
    %c0_i32_1 = arith.constant 0 : i32
    return %arg0, %c0_i32, %c0_i32_0 : i32, i32, i32
  }
  func.func @transform_11(%arg0: i32) -> (i32, i32, i32) {
    %c0_i32 = arith.constant 0 : i32
    %c0_i32_0 = arith.constant 0 : i32
    %c0_i32_1 = arith.constant 0 : i32
    return %arg0, %c0_i32, %c0_i32_0 : i32, i32, i32
  }
  func.func @transform_12(%arg0: i32) -> (i32, i32, i32) {
    %c0_i32 = arith.constant 0 : i32
    %c0_i32_0 = arith.constant 0 : i32
    %c0_i32_1 = arith.constant 0 : i32
    return %arg0, %c0_i32, %c0_i32_0 : i32, i32, i32
  }
  func.func @transform_13(%arg0: i32) -> (i32, i32, i32) {
    %c0_i32 = arith.constant 0 : i32
    %c0_i32_0 = arith.constant 0 : i32
    %c0_i32_1 = arith.constant 0 : i32
    return %arg0, %c0_i32, %c0_i32_0 : i32, i32, i32
  }
  func.func @transform_14(%arg0: i32) -> (i32, i32, i32) {
    %c0_i32 = arith.constant 0 : i32
    %c0_i32_0 = arith.constant 0 : i32
    %c0_i32_1 = arith.constant 0 : i32
    return %arg0, %c0_i32, %c0_i32_0 : i32, i32, i32
  }
  func.func @transform_15(%arg0: i32) -> (i32, i32, i32) {
    %c0_i32 = arith.constant 0 : i32
    %c0_i32_0 = arith.constant 0 : i32
    %c0_i32_1 = arith.constant 0 : i32
    return %arg0, %c0_i32, %c0_i32_0 : i32, i32, i32
  }
  func.func @transform_16(%arg0: i32) -> (i32, i32) {
    %c0_i32 = arith.constant 0 : i32
    %c0_i32_0 = arith.constant 0 : i32
    %c0_i32_1 = arith.constant 0 : i32
    return %c0_i32, %c0_i32_0 : i32, i32
  }
  func.func @transform_17(%arg0: i32) -> (i32, i32) {
    %c0_i32 = arith.constant 0 : i32
    %c0_i32_0 = arith.constant 0 : i32
    %c0_i32_1 = arith.constant 0 : i32
    return %c0_i32, %c0_i32_0 : i32, i32
  }
  func.func @transform_18(%arg0: i32) -> (i32, i32, i32) {
    %c0_i32 = arith.constant 0 : i32
    %c0_i32_0 = arith.constant 0 : i32
    %c0_i32_1 = arith.constant 0 : i32
    %c0_i32_2 = arith.constant 0 : i32
    return %c0_i32, %c0_i32_0, %c0_i32_1 : i32, i32, i32
  }
}

</mosaic_0001>

<llo_original>
// kernel: tpu_custom_call.1
$region0: #{tpu_custom_call.1}
  #allocation0 [shape = 'u32[]', space=smem, size = 0x4, offset = 0x4, fixed_abs, tag = 'smem constant byte address 0x4 - core index']
  #allocation1 [shape = 'u32[144,128]{1,0:T(1,128)}', space=vmem, size = 0x12000, scoped, tag = 'internal scratch']
  #allocation2 [shape = 'f32[2,5,32]{2,1,0:T(8,128)}', space=vmem, size = 0x2000, scoped, tag = 'scratch operand']
  %s0 = inlined_call_operand.vmem [shape: bf16[2,4,256], index: 0, kind: input, shape index: {}]
  %s1 = inlined_call_operand.vmem [shape: bf16[256,32], index: 1, kind: input, shape index: {}]
  %s2 = inlined_call_operand.vmem [shape: f32[1,32], index: 2, kind: input, shape index: {}]
  %s3 = inlined_call_operand.vmem [shape: f32[1,1,32], index: 3, kind: input, shape index: {}]
  %s4 = inlined_call_operand.vmem [shape: f32[1,5,32], index: 4, kind: input, shape index: {}]
  %s5 = inlined_call_operand.vmem [shape: f32[2,1,32], index: 5, kind: input, shape index: {}]
  %s6 = inlined_call_operand.vmem [shape: f32[2,1,32], index: 6, kind: input, shape index: {}]
  %s7 = inlined_call_operand.vmem [shape: bf16[2,4,32,24], index: 7, kind: input, shape index: {}]
  %s8 = inlined_call_operand.vmem [shape: bf16[2,4,8,32], index: 8, kind: input, shape index: {}]
  %s9 = inlined_call_operand.vmem [shape: f32[2,1,32], index: 9, kind: input, shape index: {}]
  %s10 = inlined_call_operand.vmem [shape: f32[2,1,32], index: 10, kind: input, shape index: {}]
  %s11 = inlined_call_operand.vmem [shape: f32[2,1,32], index: 11, kind: input, shape index: {}]
  %s12 = inlined_call_operand.vmem [shape: bf16[2,32,64], index: 12, kind: input, shape index: {}]
  %s13 = inlined_call_operand.vmem [shape: f32[2,1,64], index: 13, kind: input, shape index: {}]
  %s14 = inlined_call_operand.vmem [shape: bf16[2,64,32], index: 14, kind: input, shape index: {}]
  %s15 = inlined_call_operand.vmem [shape: f32[2,1,32], index: 15, kind: input, shape index: {}]
  %s16 = inlined_call_operand.vmem [shape: f32[1,32], index: 16, kind: input, shape index: {}]
  %s17 = inlined_call_operand.vmem [shape: f32[1,32], index: 17, kind: input, shape index: {}]
  %s18 = inlined_call_operand.hbm [shape: f32[2,4,32], index: 18, kind: output, shape index: {}]
  %s19 = sld [smem:[#allocation0]]
  $region113: #{tpu_custom_call.1} parent=0
    _
  %s21 = ssub.s32 1, %s19
  %s22 = scalar_select 0, %s21, %s19
  $region1: #{tpu_custom_call.1} parent=0
    #allocation3 [shape = 'u8[4096]{0}', space=vmem, size = 0x1000, scoped, tag = 'output window, operand 0, single buffered']
    #allocation4 [shape = 's32[2]{0}', space=sflag, size = 0x8, scoped, tag = 'scoped memory for tpu_custom_call.1']
    %23 = vsyncpa [#allocation4], 0
    loop: start=0, step=1, limit=4
    $region2: #{tpu_custom_call.1} parent=1 // loop_pre_header
      _
    $region3: #{tpu_custom_call.1} parent=1 // loop_header
      %s25 = sphi 0, %s29
      %p26 = scmp.ge.s32.totalorder %s25, 4
      %s33 = sphi 0, %s33
      %s35 = sphi 0, %s33
      %s36 = sphi 0, %s35
      %s50 = sphi 0, %s36
      %s54 = sphi 0, %s54
      %s56 = sphi 0, %s54
      %s57 = sphi 0, %s56
      %s71 = sphi 0, %s57
      %s75 = sphi 0, %s75
      %s77 = sphi 0, %s75
      %s78 = sphi 0, %s77
      %s92 = sphi 0, %s78
      %s96 = sphi 0, %s96
      %s98 = sphi 0, %s96
      %s99 = sphi 0, %s98
      %s113 = sphi 0, %s99
      %s117 = sphi 0, %s117
      %s119 = sphi 0, %s117
      %s120 = sphi 0, %s119
      %s134 = sphi 0, %s120
      %s140 = sphi 0, %s142
      %s143 = sphi 0, %s140
      %s144 = sphi 0, %s143
      %s160 = sphi 0, %s144
      %s166 = sphi 0, %s168
      %s169 = sphi 0, %s166
      %s170 = sphi 0, %s169
      %s186 = sphi 0, %s170
      %s192 = sphi 0, %s194
      %s195 = sphi 0, %s192
      %s196 = sphi 0, %s195
      %s212 = sphi 0, %s196
      %s218 = sphi 0, %s220
      %s221 = sphi 0, %s218
      %s222 = sphi 0, %s221
      %s238 = sphi 0, %s222
      %s244 = sphi 0, %s246
      %s247 = sphi 0, %s244
      %s248 = sphi 0, %s247
      %s264 = sphi 0, %s248
      %s270 = sphi 0, %s272
      %s273 = sphi 0, %s270
      %s274 = sphi 0, %s273
      %s290 = sphi 0, %s274
      %s296 = sphi 0, %s298
      %s299 = sphi 0, %s296
      %s300 = sphi 0, %s299
      %s316 = sphi 0, %s300
      %s322 = sphi 0, %s324
      %s325 = sphi 0, %s322
      %s326 = sphi 0, %s325
      %s342 = sphi 0, %s326
      %s348 = sphi 0, %s350
      %s351 = sphi 0, %s348
      %s352 = sphi 0, %s351
      %s368 = sphi 0, %s352
      %s374 = sphi 0, %s376
      %s377 = sphi 0, %s374
      %s378 = sphi 0, %s377
      %s394 = sphi 0, %s378
      %s400 = sphi 0, %s402
      %s403 = sphi 0, %s400
      %s404 = sphi 0, %s403
      %s420 = sphi 0, %s404
      %s424 = sphi 0, %s424
      %s426 = sphi 0, %s424
      %s427 = sphi 0, %s426
      %s441 = sphi 0, %s427
      %s445 = sphi 0, %s445
      %s447 = sphi 0, %s445
      %s448 = sphi 0, %s447
      %s462 = sphi 0, %s448
      %s466 = sphi 0, %s466
      %s468 = sphi 0, %s466
      %s469 = sphi 0, %s468
      %s483 = sphi 0, %s469
    $region4: #{tpu_custom_call.1} parent=1 // loop_header_branch
      %28 = sbr.rel (%p26) target = $region8
    $region5: #{tpu_custom_call.1} parent=1 // loop_body
      %s30 = ssub.s32 %s25, 1
      %s31 = ssub.s32 %s25, 2
      %s32 = sadd.s32 %s25, 1
      %s34 = sadd.s32 %s33, 1
      %p37 = scmp.eq.s32.totalorder %s25, 1
      %p38 = scmp.ne.s32.totalorder %s33, %s35
      %p39 = scmp.eq.s32.totalorder %s25, 0
      %p40 = por %p38, %p39
      %p41 = scmp.ne.s32.totalorder %s33, %s35
      %p42 = scmp.eq.s32.totalorder %s30, 1
      %p43 = por %p41, %p42
      %p44 = scmp.ne.s32.totalorder %s35, %s36
      %p45 = scmp.eq.s32.totalorder %s30, 0
      %p46 = por %p44, %p45
      %p47 = scmp.ne.s32.totalorder %s35, %s36
      %p48 = scmp.eq.s32.totalorder %s31, 1
      %p49 = por %p47, %p48
      %p51 = scmp.ne.s32.totalorder %s36, %s50
      %p52 = scmp.eq.s32.totalorder %s31, 0
      %p53 = por %p51, %p52
      %s55 = sadd.s32 %s54, 1
      %p58 = scmp.eq.s32.totalorder %s25, 1
      %p59 = scmp.ne.s32.totalorder %s54, %s56
      %p60 = scmp.eq.s32.totalorder %s25, 0
      %p61 = por %p59, %p60
      %p62 = scmp.ne.s32.totalorder %s54, %s56
      %p63 = scmp.eq.s32.totalorder %s30, 1
      %p64 = por %p62, %p63
      %p65 = scmp.ne.s32.totalorder %s56, %s57
      %p66 = scmp.eq.s32.totalorder %s30, 0
      %p67 = por %p65, %p66
      %p68 = scmp.ne.s32.totalorder %s56, %s57
      %p69 = scmp.eq.s32.totalorder %s31, 1
      %p70 = por %p68, %p69
      %p72 = scmp.ne.s32.totalorder %s57, %s71
      %p73 = scmp.eq.s32.totalorder %s31, 0
      %p74 = por %p72, %p73
      %s76 = sadd.s32 %s75, 1
      %p79 = scmp.eq.s32.totalorder %s25, 1
      %p80 = scmp.ne.s32.totalorder %s75, %s77
      %p81 = scmp.eq.s32.totalorder %s25, 0
      %p82 = por %p80, %p81
      %p83 = scmp.ne.s32.totalorder %s75, %s77
      %p84 = scmp.eq.s32.totalorder %s30, 1
      %p85 = por %p83, %p84
      %p86 = scmp.ne.s32.totalorder %s77, %s78
      %p87 = scmp.eq.s32.totalorder %s30, 0
      %p88 = por %p86, %p87
      %p89 = scmp.ne.s32.totalorder %s77, %s78
      %p90 = scmp.eq.s32.totalorder %s31, 1
      %p91 = por %p89, %p90
      %p93 = scmp.ne.s32.totalorder %s78, %s92
      %p94 = scmp.eq.s32.totalorder %s31, 0
      %p95 = por %p93, %p94
      %s97 = sadd.s32 %s96, 1
      %p100 = scmp.eq.s32.totalorder %s25, 1
      %p101 = scmp.ne.s32.totalorder %s96, %s98
      %p102 = scmp.eq.s32.totalorder %s25, 0
      %p103 = por %p101, %p102
      %p104 = scmp.ne.s32.totalorder %s96, %s98
      %p105 = scmp.eq.s32.totalorder %s30, 1
      %p106 = por %p104, %p105
      %p107 = scmp.ne.s32.totalorder %s98, %s99
      %p108 = scmp.eq.s32.totalorder %s30, 0
      %p109 = por %p107, %p108
      %p110 = scmp.ne.s32.totalorder %s98, %s99
      %p111 = scmp.eq.s32.totalorder %s31, 1
      %p112 = por %p110, %p111
      %p114 = scmp.ne.s32.totalorder %s99, %s113
      %p115 = scmp.eq.s32.totalorder %s31, 0
      %p116 = por %p114, %p115
      %s118 = sadd.s32 %s117, 1
      %p121 = scmp.eq.s32.totalorder %s25, 1
      %p122 = scmp.ne.s32.totalorder %s117, %s119
      %p123 = scmp.eq.s32.totalorder %s25, 0
      %p124 = por %p122, %p123
      %p125 = scmp.ne.s32.totalorder %s117, %s119
      %p126 = scmp.eq.s32.totalorder %s30, 1
      %p127 = por %p125, %p126
      %p128 = scmp.ne.s32.totalorder %s119, %s120
      %p129 = scmp.eq.s32.totalorder %s30, 0
      %p130 = por %p128, %p129
      %p131 = scmp.ne.s32.totalorder %s119, %s120
      %p132 = scmp.eq.s32.totalorder %s31, 1
      %p133 = por %p131, %p132
      %p135 = scmp.ne.s32.totalorder %s120, %s134
      %p136 = scmp.eq.s32.totalorder %s31, 0
      %p137 = por %p135, %p136
      %s138 = ssub.s32 %s25, %s32
      %p139 = scmp.eq.s32.totalorder %s138, 0
      %s141 = sadd.s32 %s140, 1
      %s142 = scalar_select %p139, %s140, %s141
      %p145 = pneg %p139
      %p146 = scmp.eq.s32.totalorder %s25, 1
      %p147 = por %p145, %p146
      %p148 = scmp.ne.s32.totalorder %s140, %s143
      %p149 = scmp.eq.s32.totalorder %s25, 0
      %p150 = por %p148, %p149
      %p151 = scmp.ne.s32.totalorder %s140, %s143
      %p152 = scmp.eq.s32.totalorder %s30, 1
      %p153 = por %p151, %p152
      %p154 = scmp.ne.s32.totalorder %s143, %s144
      %p155 = scmp.eq.s32.totalorder %s30, 0
      %p156 = por %p154, %p155
      %p157 = scmp.ne.s32.totalorder %s143, %s144
      %p158 = scmp.eq.s32.totalorder %s31, 1
      %p159 = por %p157, %p158
      %p161 = scmp.ne.s32.totalorder %s144, %s160
      %p162 = scmp.eq.s32.totalorder %s31, 0
      %p163 = por %p161, %p162
      %s164 = ssub.s32 %s25, %s32
      %p165 = scmp.eq.s32.totalorder %s164, 0
      %s167 = sadd.s32 %s166, 1
      %s168 = scalar_select %p165, %s166, %s167
      %p171 = pneg %p165
      %p172 = scmp.eq.s32.totalorder %s25, 1
      %p173 = por %p171, %p172
      %p174 = scmp.ne.s32.totalorder %s166, %s169
      %p175 = scmp.eq.s32.totalorder %s25, 0
      %p176 = por %p174, %p175
      %p177 = scmp.ne.s32.totalorder %s166, %s169
      %p178 = scmp.eq.s32.totalorder %s30, 1
      %p179 = por %p177, %p178
      %p180 = scmp.ne.s32.totalorder %s169, %s170
      %p181 = scmp.eq.s32.totalorder %s30, 0
      %p182 = por %p180, %p181
      %p183 = scmp.ne.s32.totalorder %s169, %s170
      %p184 = scmp.eq.s32.totalorder %s31, 1
      %p185 = por %p183, %p184
      %p187 = scmp.ne.s32.totalorder %s170, %s186
      %p188 = scmp.eq.s32.totalorder %s31, 0
      %p189 = por %p187, %p188
      %s190 = ssub.s32 %s25, %s32
      %p191 = scmp.eq.s32.totalorder %s190, 0
      %s193 = sadd.s32 %s192, 1
      %s194 = scalar_select %p191, %s192, %s193
      %p197 = pneg %p191
      %p198 = scmp.eq.s32.totalorder %s25, 1
      %p199 = por %p197, %p198
      %p200 = scmp.ne.s32.totalorder %s192, %s195
      %p201 = scmp.eq.s32.totalorder %s25, 0
      %p202 = por %p200, %p201
      %p203 = scmp.ne.s32.totalorder %s192, %s195
      %p204 = scmp.eq.s32.totalorder %s30, 1
      %p205 = por %p203, %p204
      %p206 = scmp.ne.s32.totalorder %s195, %s196
      %p207 = scmp.eq.s32.totalorder %s30, 0
      %p208 = por %p206, %p207
      %p209 = scmp.ne.s32.totalorder %s195, %s196
      %p210 = scmp.eq.s32.totalorder %s31, 1
      %p211 = por %p209, %p210
      %p213 = scmp.ne.s32.totalorder %s196, %s212
      %p214 = scmp.eq.s32.totalorder %s31, 0
      %p215 = por %p213, %p214
      %s216 = ssub.s32 %s25, %s32
      %p217 = scmp.eq.s32.totalorder %s216, 0
      %s219 = sadd.s32 %s218, 1
      %s220 = scalar_select %p217, %s218, %s219
      %p223 = pneg %p217
      %p224 = scmp.eq.s32.totalorder %s25, 1
      %p225 = por %p223, %p224
      %p226 = scmp.ne.s32.totalorder %s218, %s221
      %p227 = scmp.eq.s32.totalorder %s25, 0
      %p228 = por %p226, %p227
      %p229 = scmp.ne.s32.totalorder %s218, %s221
      %p230 = scmp.eq.s32.totalorder %s30, 1
      %p231 = por %p229, %p230
      %p232 = scmp.ne.s32.totalorder %s221, %s222
      %p233 = scmp.eq.s32.totalorder %s30, 0
      %p234 = por %p232, %p233
      %p235 = scmp.ne.s32.totalorder %s221, %s222
      %p236 = scmp.eq.s32.totalorder %s31, 1
      %p237 = por %p235, %p236
      %p239 = scmp.ne.s32.totalorder %s222, %s238
      %p240 = scmp.eq.s32.totalorder %s31, 0
      %p241 = por %p239, %p240
      %s242 = ssub.s32 %s25, %s32
      %p243 = scmp.eq.s32.totalorder %s242, 0
      %s245 = sadd.s32 %s244, 1
      %s246 = scalar_select %p243, %s244, %s245
      %p249 = pneg %p243
      %p250 = scmp.eq.s32.totalorder %s25, 1
      %p251 = por %p249, %p250
      %p252 = scmp.ne.s32.totalorder %s244, %s247
      %p253 = scmp.eq.s32.totalorder %s25, 0
      %p254 = por %p252, %p253
      %p255 = scmp.ne.s32.totalorder %s244, %s247
      %p256 = scmp.eq.s32.totalorder %s30, 1
      %p257 = por %p255, %p256
      %p258 = scmp.ne.s32.totalorder %s247, %s248
      %p259 = scmp.eq.s32.totalorder %s30, 0
      %p260 = por %p258, %p259
      %p261 = scmp.ne.s32.totalorder %s247, %s248
      %p262 = scmp.eq.s32.totalorder %s31, 1
      %p263 = por %p261, %p262
      %p265 = scmp.ne.s32.totalorder %s248, %s264
      %p266 = scmp.eq.s32.totalorder %s31, 0
      %p267 = por %p265, %p266
      %s268 = ssub.s32 %s25, %s32
      %p269 = scmp.eq.s32.totalorder %s268, 0
      %s271 = sadd.s32 %s270, 1
      %s272 = scalar_select %p269, %s270, %s271
      %p275 = pneg %p269
      %p276 = scmp.eq.s32.totalorder %s25, 1
      %p277 = por %p275, %p276
      %p278 = scmp.ne.s32.totalorder %s270, %s273
      %p279 = scmp.eq.s32.totalorder %s25, 0
      %p280 = por %p278, %p279
      %p281 = scmp.ne.s32.totalorder %s270, %s273
      %p282 = scmp.eq.s32.totalorder %s30, 1
      %p283 = por %p281, %p282
      %p284 = scmp.ne.s32.totalorder %s273, %s274
      %p285 = scmp.eq.s32.totalorder %s30, 0
      %p286 = por %p284, %p285
      %p287 = scmp.ne.s32.totalorder %s273, %s274
      %p288 = scmp.eq.s32.totalorder %s31, 1
      %p289 = por %p287, %p288
      %p291 = scmp.ne.s32.totalorder %s274, %s290
      %p292 = scmp.eq.s32.totalorder %s31, 0
      %p293 = por %p291, %p292
      %s294 = ssub.s32 %s25, %s32
      %p295 = scmp.eq.s32.totalorder %s294, 0
      %s297 = sadd.s32 %s296, 1
      %s298 = scalar_select %p295, %s296, %s297
      %p301 = pneg %p295
      %p302 = scmp.eq.s32.totalorder %s25, 1
      %p303 = por %p301, %p302
      %p304 = scmp.ne.s32.totalorder %s296, %s299
      %p305 = scmp.eq.s32.totalorder %s25, 0
      %p306 = por %p304, %p305
      %p307 = scmp.ne.s32.totalorder %s296, %s299
      %p308 = scmp.eq.s32.totalorder %s30, 1
      %p309 = por %p307, %p308
      %p310 = scmp.ne.s32.totalorder %s299, %s300
      %p311 = scmp.eq.s32.totalorder %s30, 0
      %p312 = por %p310, %p311
      %p313 = scmp.ne.s32.totalorder %s299, %s300
      %p314 = scmp.eq.s32.totalorder %s31, 1
      %p315 = por %p313, %p314
      %p317 = scmp.ne.s32.totalorder %s300, %s316
      %p318 = scmp.eq.s32.totalorder %s31, 0
      %p319 = por %p317, %p318
      %s320 = ssub.s32 %s25, %s32
      %p321 = scmp.eq.s32.totalorder %s320, 0
      %s323 = sadd.s32 %s322, 1
      %s324 = scalar_select %p321, %s322, %s323
      %p327 = pneg %p321
      %p328 = scmp.eq.s32.totalorder %s25, 1
      %p329 = por %p327, %p328
      %p330 = scmp.ne.s32.totalorder %s322, %s325
      %p331 = scmp.eq.s32.totalorder %s25, 0
      %p332 = por %p330, %p331
      %p333 = scmp.ne.s32.totalorder %s322, %s325
      %p334 = scmp.eq.s32.totalorder %s30, 1
      %p335 = por %p333, %p334
      %p336 = scmp.ne.s32.totalorder %s325, %s326
      %p337 = scmp.eq.s32.totalorder %s30, 0
      %p338 = por %p336, %p337
      %p339 = scmp.ne.s32.totalorder %s325, %s326
      %p340 = scmp.eq.s32.totalorder %s31, 1
      %p341 = por %p339, %p340
      %p343 = scmp.ne.s32.totalorder %s326, %s342
      %p344 = scmp.eq.s32.totalorder %s31, 0
      %p345 = por %p343, %p344
      %s346 = ssub.s32 %s25, %s32
      %p347 = scmp.eq.s32.totalorder %s346, 0
      %s349 = sadd.s32 %s348, 1
      %s350 = scalar_select %p347, %s348, %s349
      %p353 = pneg %p347
      %p354 = scmp.eq.s32.totalorder %s25, 1
      %p355 = por %p353, %p354
      %p356 = scmp.ne.s32.totalorder %s348, %s351
      %p357 = scmp.eq.s32.totalorder %s25, 0
      %p358 = por %p356, %p357
      %p359 = scmp.ne.s32.totalorder %s348, %s351
      %p360 = scmp.eq.s32.totalorder %s30, 1
      %p361 = por %p359, %p360
      %p362 = scmp.ne.s32.totalorder %s351, %s352
      %p363 = scmp.eq.s32.totalorder %s30, 0
      %p364 = por %p362, %p363
      %p365 = scmp.ne.s32.totalorder %s351, %s352
      %p366 = scmp.eq.s32.totalorder %s31, 1
      %p367 = por %p365, %p366
      %p369 = scmp.ne.s32.totalorder %s352, %s368
      %p370 = scmp.eq.s32.totalorder %s31, 0
      %p371 = por %p369, %p370
      %s372 = ssub.s32 %s25, %s32
      %p373 = scmp.eq.s32.totalorder %s372, 0
      %s375 = sadd.s32 %s374, 1
      %s376 = scalar_select %p373, %s374, %s375
      %p379 = pneg %p373
      %p380 = scmp.eq.s32.totalorder %s25, 1
      %p381 = por %p379, %p380
      %p382 = scmp.ne.s32.totalorder %s374, %s377
      %p383 = scmp.eq.s32.totalorder %s25, 0
      %p384 = por %p382, %p383
      %p385 = scmp.ne.s32.totalorder %s374, %s377
      %p386 = scmp.eq.s32.totalorder %s30, 1
      %p387 = por %p385, %p386
      %p388 = scmp.ne.s32.totalorder %s377, %s378
      %p389 = scmp.eq.s32.totalorder %s30, 0
      %p390 = por %p388, %p389
      %p391 = scmp.ne.s32.totalorder %s377, %s378
      %p392 = scmp.eq.s32.totalorder %s31, 1
      %p393 = por %p391, %p392
      %p395 = scmp.ne.s32.totalorder %s378, %s394
      %p396 = scmp.eq.s32.totalorder %s31, 0
      %p397 = por %p395, %p396
      %s398 = ssub.s32 %s25, %s32
      %p399 = scmp.eq.s32.totalorder %s398, 0
      %s401 = sadd.s32 %s400, 1
      %s402 = scalar_select %p399, %s400, %s401
      %p405 = pneg %p399
      %p406 = scmp.eq.s32.totalorder %s25, 1
      %p407 = por %p405, %p406
      %p408 = scmp.ne.s32.totalorder %s400, %s403
      %p409 = scmp.eq.s32.totalorder %s25, 0
      %p410 = por %p408, %p409
      %p411 = scmp.ne.s32.totalorder %s400, %s403
      %p412 = scmp.eq.s32.totalorder %s30, 1
      %p413 = por %p411, %p412
      %p414 = scmp.ne.s32.totalorder %s403, %s404
      %p415 = scmp.eq.s32.totalorder %s30, 0
      %p416 = por %p414, %p415
      %p417 = scmp.ne.s32.totalorder %s403, %s404
      %p418 = scmp.eq.s32.totalorder %s31, 1
      %p419 = por %p417, %p418
      %p421 = scmp.ne.s32.totalorder %s404, %s420
      %p422 = scmp.eq.s32.totalorder %s31, 0
      %p423 = por %p421, %p422
      %s425 = sadd.s32 %s424, 1
      %p428 = scmp.eq.s32.totalorder %s25, 1
      %p429 = scmp.ne.s32.totalorder %s424, %s426
      %p430 = scmp.eq.s32.totalorder %s25, 0
      %p431 = por %p429, %p430
      %p432 = scmp.ne.s32.totalorder %s424, %s426
      %p433 = scmp.eq.s32.totalorder %s30, 1
      %p434 = por %p432, %p433
      %p435 = scmp.ne.s32.totalorder %s426, %s427
      %p436 = scmp.eq.s32.totalorder %s30, 0
      %p437 = por %p435, %p436
      %p438 = scmp.ne.s32.totalorder %s426, %s427
      %p439 = scmp.eq.s32.totalorder %s31, 1
      %p440 = por %p438, %p439
      %p442 = scmp.ne.s32.totalorder %s427, %s441
      %p443 = scmp.eq.s32.totalorder %s31, 0
      %p444 = por %p442, %p443
      %s446 = sadd.s32 %s445, 1
      %p449 = scmp.eq.s32.totalorder %s25, 1
      %p450 = scmp.ne.s32.totalorder %s445, %s447
      %p451 = scmp.eq.s32.totalorder %s25, 0
      %p452 = por %p450, %p451
      %p453 = scmp.ne.s32.totalorder %s445, %s447
      %p454 = scmp.eq.s32.totalorder %s30, 1
      %p455 = por %p453, %p454
      %p456 = scmp.ne.s32.totalorder %s447, %s448
      %p457 = scmp.eq.s32.totalorder %s30, 0
      %p458 = por %p456, %p457
      %p459 = scmp.ne.s32.totalorder %s447, %s448
      %p460 = scmp.eq.s32.totalorder %s31, 1
      %p461 = por %p459, %p460
      %p463 = scmp.ne.s32.totalorder %s448, %s462
      %p464 = scmp.eq.s32.totalorder %s31, 0
      %p465 = por %p463, %p464
      %s467 = sadd.s32 %s466, 1
      %p470 = scmp.eq.s32.totalorder %s25, 1
      %p471 = scmp.ne.s32.totalorder %s466, %s468
      %p472 = scmp.eq.s32.totalorder %s25, 0
      %p473 = por %p471, %p472
      %p474 = scmp.ne.s32.totalorder %s466, %s468
      %p475 = scmp.eq.s32.totalorder %s30, 1
      %p476 = por %p474, %p475
      %p477 = scmp.ne.s32.totalorder %s468, %s469
      %p478 = scmp.eq.s32.totalorder %s30, 0
      %p479 = por %p477, %p478
      %p480 = scmp.ne.s32.totalorder %s468, %s469
      %p481 = scmp.eq.s32.totalorder %s31, 1
      %p482 = por %p480, %p481
      %p484 = scmp.ne.s32.totalorder %s469, %s483
      %p485 = scmp.eq.s32.totalorder %s31, 0
      %p486 = por %p484, %p485
      %p487 = scmp.le.s32.totalorder 1, %s25
      %p488 = scmp.lt.s32.totalorder %s25, 3
      %p489 = pnand %p487, %p488
      %p490 = pneg %p489
      // Predicated region
      $region9: #{tpu_custom_call.1} parent=5 // pred_check
        _
      $region10: #{tpu_custom_call.1} parent=5 // pred_check_branch
        %492 = sbr.rel (%p489) target = $region12
      $region11: #{tpu_custom_call.1} parent=5 // pred_region
        %s493 = ssub.s32 %s25, 1
        // Predicated region
        $region13: #{tpu_custom_call.1} parent=11 // pred_check
          %p494 = pneg %p46
        $region14: #{tpu_custom_call.1} parent=11 // pred_check_branch
          %496 = sbr.rel (%p494) target = $region16
        $region15: #{tpu_custom_call.1} parent=11 // pred_region
          _
        $region16: #{tpu_custom_call.1} parent=11 // pred_fallthru
          _
        // Predicated region
        $region17: #{tpu_custom_call.1} parent=11 // pred_check
          %p497 = pneg %p67
        $region18: #{tpu_custom_call.1} parent=11 // pred_check_branch
          %499 = sbr.rel (%p497) target = $region20
        $region19: #{tpu_custom_call.1} parent=11 // pred_region
          _
        $region20: #{tpu_custom_call.1} parent=11 // pred_fallthru
          _
        // Predicated region
        $region21: #{tpu_custom_call.1} parent=11 // pred_check
          %p500 = pneg %p88
        $region22: #{tpu_custom_call.1} parent=11 // pred_check_branch
          %502 = sbr.rel (%p500) target = $region24
        $region23: #{tpu_custom_call.1} parent=11 // pred_region
          _
        $region24: #{tpu_custom_call.1} parent=11 // pred_fallthru
          _
        // Predicated region
        $region25: #{tpu_custom_call.1} parent=11 // pred_check
          %p503 = pneg %p109
        $region26: #{tpu_custom_call.1} parent=11 // pred_check_branch
          %505 = sbr.rel (%p503) target = $region28
        $region27: #{tpu_custom_call.1} parent=11 // pred_region
          _
        $region28: #{tpu_custom_call.1} parent=11 // pred_fallthru
          _
        // Predicated region
        $region29: #{tpu_custom_call.1} parent=11 // pred_check
          %p506 = pneg %p130
        $region30: #{tpu_custom_call.1} parent=11 // pred_check_branch
          %508 = sbr.rel (%p506) target = $region32
        $region31: #{tpu_custom_call.1} parent=11 // pred_region
          _
        $region32: #{tpu_custom_call.1} parent=11 // pred_fallthru
          _
        // Predicated region
        $region33: #{tpu_custom_call.1} parent=11 // pred_check
          %p509 = pneg %p437
        $region34: #{tpu_custom_call.1} parent=11 // pred_check_branch
          %511 = sbr.rel (%p509) target = $region36
        $region35: #{tpu_custom_call.1} parent=11 // pred_region
          _
        $region36: #{tpu_custom_call.1} parent=11 // pred_fallthru
          _
        // Predicated region
        $region37: #{tpu_custom_call.1} parent=11 // pred_check
          %p512 = pneg %p458
        $region38: #{tpu_custom_call.1} parent=11 // pred_check_branch
          %514 = sbr.rel (%p512) target = $region40
        $region39: #{tpu_custom_call.1} parent=11 // pred_region
          _
        $region40: #{tpu_custom_call.1} parent=11 // pred_fallthru
          _
      $region12: #{tpu_custom_call.1} parent=5 // pred_fallthru
        _
      %p515 = scmp.lt.s32.totalorder %s25, 2
      // Predicated region
      $region41: #{tpu_custom_call.1} parent=5 // pred_check
        %p516 = pneg %p515
      $region42: #{tpu_custom_call.1} parent=5 // pred_check_branch
        %518 = sbr.rel (%p516) target = $region44
      $region43: #{tpu_custom_call.1} parent=5 // pred_region
        // Predicated region
        $region45: #{tpu_custom_call.1} parent=43 // pred_check
          %p519 = pneg %p150
        $region46: #{tpu_custom_call.1} parent=43 // pred_check_branch
          %521 = sbr.rel (%p519) target = $region48
        $region47: #{tpu_custom_call.1} parent=43 // pred_region
          %p522 = scmp.lt.s32.totalorder %s25, 1
          %s523 = scalar_select %p522, %s25, 1
          %s524 = scalar_lea.vmem %s5, %s523
        $region48: #{tpu_custom_call.1} parent=43 // pred_fallthru
          _
        // Predicated region
        $region49: #{tpu_custom_call.1} parent=43 // pred_check
          %p525 = pneg %p176
        $region50: #{tpu_custom_call.1} parent=43 // pred_check_branch
          %527 = sbr.rel (%p525) target = $region52
        $region51: #{tpu_custom_call.1} parent=43 // pred_region
          %p528 = scmp.lt.s32.totalorder %s25, 1
          %s529 = scalar_select %p528, %s25, 1
          %s530 = scalar_lea.vmem %s6, %s529
        $region52: #{tpu_custom_call.1} parent=43 // pred_fallthru
          _
        // Predicated region
        $region53: #{tpu_custom_call.1} parent=43 // pred_check
          %p531 = pneg %p202
        $region54: #{tpu_custom_call.1} parent=43 // pred_check_branch
          %533 = sbr.rel (%p531) target = $region56
        $region55: #{tpu_custom_call.1} parent=43 // pred_region
          %p534 = scmp.lt.s32.totalorder %s25, 1
          %s535 = scalar_select %p534, %s25, 1
          %s536 = smul.addr %s535, 16
          %s537 = smul.addr %s536, 4
          %s538 = scalar_lea.vmem %s7, %s537
        $region56: #{tpu_custom_call.1} parent=43 // pred_fallthru
          _
        // Predicated region
        $region57: #{tpu_custom_call.1} parent=43 // pred_check
          %p539 = pneg %p228
        $region58: #{tpu_custom_call.1} parent=43 // pred_check_branch
          %541 = sbr.rel (%p539) target = $region60
        $region59: #{tpu_custom_call.1} parent=43 // pred_region
          %p542 = scmp.lt.s32.totalorder %s25, 1
          %s543 = scalar_select %p542, %s25, 1
          %s544 = smul.addr %s543, 4
          %s545 = smul.addr %s544, 4
          %s546 = scalar_lea.vmem %s8, %s545
        $region60: #{tpu_custom_call.1} parent=43 // pred_fallthru
          _
        // Predicated region
        $region61: #{tpu_custom_call.1} parent=43 // pred_check
          %p547 = pneg %p254
        $region62: #{tpu_custom_call.1} parent=43 // pred_check_branch
          %549 = sbr.rel (%p547) target = $region64
        $region63: #{tpu_custom_call.1} parent=43 // pred_region
          %p550 = scmp.lt.s32.totalorder %s25, 1
          %s551 = scalar_select %p550, %s25, 1
          %s552 = scalar_lea.vmem %s9, %s551
        $region64: #{tpu_custom_call.1} parent=43 // pred_fallthru
          _
        // Predicated region
        $region65: #{tpu_custom_call.1} parent=43 // pred_check
          %p553 = pneg %p280
        $region66: #{tpu_custom_call.1} parent=43 // pred_check_branch
          %555 = sbr.rel (%p553) target = $region68
        $region67: #{tpu_custom_call.1} parent=43 // pred_region
          %p556 = scmp.lt.s32.totalorder %s25, 1
          %s557 = scalar_select %p556, %s25, 1
          %s558 = scalar_lea.vmem %s10, %s557
        $region68: #{tpu_custom_call.1} parent=43 // pred_fallthru
          _
        // Predicated region
        $region69: #{tpu_custom_call.1} parent=43 // pred_check
          %p559 = pneg %p306
        $region70: #{tpu_custom_call.1} parent=43 // pred_check_branch
          %561 = sbr.rel (%p559) target = $region72
        $region71: #{tpu_custom_call.1} parent=43 // pred_region
          %p562 = scmp.lt.s32.totalorder %s25, 1
          %s563 = scalar_select %p562, %s25, 1
          %s564 = scalar_lea.vmem %s11, %s563
        $region72: #{tpu_custom_call.1} parent=43 // pred_fallthru
          _
        // Predicated region
        $region73: #{tpu_custom_call.1} parent=43 // pred_check
          %p565 = pneg %p332
        $region74: #{tpu_custom_call.1} parent=43 // pred_check_branch
          %567 = sbr.rel (%p565) target = $region76
        $region75: #{tpu_custom_call.1} parent=43 // pred_region
          %p568 = scmp.lt.s32.totalorder %s25, 1
          %s569 = scalar_select %p568, %s25, 1
          %s570 = smul.addr %s569, 4
          %s571 = smul.addr %s570, 4
          %s572 = scalar_lea.vmem %s12, %s571
        $region76: #{tpu_custom_call.1} parent=43 // pred_fallthru
          _
        // Predicated region
        $region77: #{tpu_custom_call.1} parent=43 // pred_check
          %p573 = pneg %p358
        $region78: #{tpu_custom_call.1} parent=43 // pred_check_branch
          %575 = sbr.rel (%p573) target = $region80
        $region79: #{tpu_custom_call.1} parent=43 // pred_region
          %p576 = scmp.lt.s32.totalorder %s25, 1
          %s577 = scalar_select %p576, %s25, 1
          %s578 = scalar_lea.vmem %s13, %s577
        $region80: #{tpu_custom_call.1} parent=43 // pred_fallthru
          _
        // Predicated region
        $region81: #{tpu_custom_call.1} parent=43 // pred_check
          %p579 = pneg %p384
        $region82: #{tpu_custom_call.1} parent=43 // pred_check_branch
          %581 = sbr.rel (%p579) target = $region84
        $region83: #{tpu_custom_call.1} parent=43 // pred_region
          %p582 = scmp.lt.s32.totalorder %s25, 1
          %s583 = scalar_select %p582, %s25, 1
          %s584 = smul.addr %s583, 8
          %s585 = smul.addr %s584, 4
          %s586 = scalar_lea.vmem %s14, %s585
        $region84: #{tpu_custom_call.1} parent=43 // pred_fallthru
          _
        // Predicated region
        $region85: #{tpu_custom_call.1} parent=43 // pred_check
          %p587 = pneg %p410
        $region86: #{tpu_custom_call.1} parent=43 // pred_check_branch
          %589 = sbr.rel (%p587) target = $region88
        $region87: #{tpu_custom_call.1} parent=43 // pred_region
          %p590 = scmp.lt.s32.totalorder %s25, 1
          %s591 = scalar_select %p590, %s25, 1
          %s592 = scalar_lea.vmem %s15, %s591
        $region88: #{tpu_custom_call.1} parent=43 // pred_fallthru
          _
      $region44: #{tpu_custom_call.1} parent=5 // pred_fallthru
        _
      %p593 = scmp.le.s32.totalorder 1, %s25
      %p594 = scmp.lt.s32.totalorder %s25, 3
      %p595 = pnand %p593, %p594
      %p596 = pneg %p595
      // Predicated region
      $region89: #{tpu_custom_call.1} parent=5 // pred_check
        _
      $region90: #{tpu_custom_call.1} parent=5 // pred_check_branch
        %598 = sbr.rel (%p595) target = $region92
      $region91: #{tpu_custom_call.1} parent=5 // pred_region
        %s599 = ssub.s32 %s25, 1
        %p600 = pneg %p46
        %p601 = pneg %p43
        %p602 = pneg %p67
        %p603 = pneg %p64
        %p604 = pneg %p88
        %p605 = pneg %p85
        %p606 = pneg %p109
        %p607 = pneg %p106
        %p608 = pneg %p130
        %p609 = pneg %p127
        %p610 = scmp.lt.s32.totalorder %s30, 1
        %s611 = scalar_select %p610, %s30, 1
        %s612 = scalar_lea.vmem %s5, %s611
        %p613 = pneg %p156
        %p614 = pneg %p153
        %p615 = scmp.lt.s32.totalorder %s30, 1
        %s616 = scalar_select %p615, %s30, 1
        %s617 = scalar_lea.vmem %s6, %s616
        %p618 = pneg %p182
        %p619 = pneg %p179
        %p620 = scmp.lt.s32.totalorder %s30, 1
        %s621 = scalar_select %p620, %s30, 1
        %s622 = smul.addr %s621, 16
        %s623 = smul.addr %s622, 4
        %s624 = scalar_lea.vmem %s7, %s623
        %p625 = pneg %p208
        %p626 = pneg %p205
        %p627 = scmp.lt.s32.totalorder %s30, 1
        %s628 = scalar_select %p627, %s30, 1
        %s629 = smul.addr %s628, 4
        %s630 = smul.addr %s629, 4
        %s631 = scalar_lea.vmem %s8, %s630
        %p632 = pneg %p234
        %p633 = pneg %p231
        %p634 = scmp.lt.s32.totalorder %s30, 1
        %s635 = scalar_select %p634, %s30, 1
        %s636 = scalar_lea.vmem %s9, %s635
        %p637 = pneg %p260
        %p638 = pneg %p257
        %p639 = scmp.lt.s32.totalorder %s30, 1
        %s640 = scalar_select %p639, %s30, 1
        %s641 = scalar_lea.vmem %s10, %s640
        %p642 = pneg %p286
        %p643 = pneg %p283
        %p644 = scmp.lt.s32.totalorder %s30, 1
        %s645 = scalar_select %p644, %s30, 1
        %s646 = scalar_lea.vmem %s11, %s645
        %p647 = pneg %p312
        %p648 = pneg %p309
        %p649 = scmp.lt.s32.totalorder %s30, 1
        %s650 = scalar_select %p649, %s30, 1
        %s651 = smul.addr %s650, 4
        %s652 = smul.addr %s651, 4
        %s653 = scalar_lea.vmem %s12, %s652
        %p654 = pneg %p338
        %p655 = pneg %p335
        %p656 = scmp.lt.s32.totalorder %s30, 1
        %s657 = scalar_select %p656, %s30, 1
        %s658 = scalar_lea.vmem %s13, %s657
        %p659 = pneg %p364
        %p660 = pneg %p361
        %p661 = scmp.lt.s32.totalorder %s30, 1
        %s662 = scalar_select %p661, %s30, 1
        %s663 = smul.addr %s662, 8
        %s664 = smul.addr %s663, 4
        %s665 = scalar_lea.vmem %s14, %s664
        %p666 = pneg %p390
        %p667 = pneg %p387
        %p668 = scmp.lt.s32.totalorder %s30, 1
        %s669 = scalar_select %p668, %s30, 1
        %s670 = scalar_lea.vmem %s15, %s669
        %p671 = pneg %p416
        %p672 = pneg %p413
        %p673 = pneg %p437
        %p674 = pneg %p434
        %p675 = pneg %p458
        %p676 = pneg %p455
        %p677 = pneg %p479
        %p678 = pneg %p476
        %p679 = scmp.lt.s32.totalorder %s30, 1
        %s680 = scalar_select %p679, %s30, 1
        %s681 = scalar_lea.vmem %s5, %s680
        %p682 = scmp.lt.s32.totalorder %s30, 1
        %s683 = scalar_select %p682, %s30, 1
        %s684 = scalar_lea.vmem %s6, %s683
        %p685 = scmp.lt.s32.totalorder %s30, 1
        %s686 = scalar_select %p685, %s30, 1
        %s687 = smul.addr %s686, 16
        %s688 = smul.addr %s687, 4
        %s689 = scalar_lea.vmem %s7, %s688
        %p690 = scmp.lt.s32.totalorder %s30, 1
        %s691 = scalar_select %p690, %s30, 1
        %s692 = smul.addr %s691, 4
        %s693 = smul.addr %s692, 4
        %s694 = scalar_lea.vmem %s8, %s693
        %p695 = scmp.lt.s32.totalorder %s30, 1
        %s696 = scalar_select %p695, %s30, 1
        %s697 = scalar_lea.vmem %s9, %s696
        %p698 = scmp.lt.s32.totalorder %s30, 1
        %s699 = scalar_select %p698, %s30, 1
        %s700 = scalar_lea.vmem %s10, %s699
        %p701 = scmp.lt.s32.totalorder %s30, 1
        %s702 = scalar_select %p701, %s30, 1
        %s703 = scalar_lea.vmem %s11, %s702
        %p704 = scmp.lt.s32.totalorder %s30, 1
        %s705 = scalar_select %p704, %s30, 1
        %s706 = smul.addr %s705, 4
        %s707 = smul.addr %s706, 4
        %s708 = scalar_lea.vmem %s12, %s707
        %p709 = scmp.lt.s32.totalorder %s30, 1
        %s710 = scalar_select %p709, %s30, 1
        %s711 = scalar_lea.vmem %s13, %s710
        %p712 = scmp.lt.s32.totalorder %s30, 1
        %s713 = scalar_select %p712, %s30, 1
        %s714 = smul.addr %s713, 8
        %s715 = smul.addr %s714, 4
        %s716 = scalar_lea.vmem %s14, %s715
        %p717 = scmp.lt.s32.totalorder %s30, 1
        %s718 = scalar_select %p717, %s30, 1
        %s719 = scalar_lea.vmem %s15, %s718
        %p721 = scmp.eq.s32.totalorder %s30, 0
        // Predicated region
        $region93: #{tpu_custom_call.1} parent=91 // pred_check
          %p722 = pneg %p721
        $region94: #{tpu_custom_call.1} parent=91 // pred_check_branch
          %724 = sbr.rel (%p722) target = $region96
        $region95: #{tpu_custom_call.1} parent=91 // pred_region
          %v725 = vld [vmem:[%s1] sm:$0xf]
          %v726 = vld [vmem:[%s1 + $0x4] sm:$0xf]
          %v727 = vld [vmem:[%s1 + $0x8] sm:$0xf]
          %v728 = vld [vmem:[%s1 + $0xc] sm:$0xf]
          %v729 = vld [vmem:[%s1 + $0x10] sm:$0xf]
          %v730 = vld [vmem:[%s1 + $0x14] sm:$0xf]
          %v731 = vld [vmem:[%s1 + $0x18] sm:$0xf]
          %v732 = vld [vmem:[%s1 + $0x1c] sm:$0xf]
          %v733 = vld [vmem:[%s1 + $0x20] sm:$0xf]
          %v734 = vld [vmem:[%s1 + $0x24] sm:$0xf]
          %v735 = vld [vmem:[%s1 + $0x28] sm:$0xf]
          %v736 = vld [vmem:[%s1 + $0x2c] sm:$0xf]
          %v737 = vld [vmem:[%s1 + $0x30] sm:$0xf]
          %v738 = vld [vmem:[%s1 + $0x34] sm:$0xf]
          %v739 = vld [vmem:[%s1 + $0x38] sm:$0xf]
          %v740 = vld [vmem:[%s1 + $0x3c] sm:$0xf]
          %v741 = vld [vmem:[%s1 + $0x40] sm:$0xf]
          %v742 = vld [vmem:[%s1 + $0x44] sm:$0xf]
          %v743 = vld [vmem:[%s1 + $0x48] sm:$0xf]
          %v744 = vld [vmem:[%s1 + $0x4c] sm:$0xf]
          %v745 = vld [vmem:[%s1 + $0x50] sm:$0xf]
          %v746 = vld [vmem:[%s1 + $0x54] sm:$0xf]
          %v747 = vld [vmem:[%s1 + $0x58] sm:$0xf]
          %v748 = vld [vmem:[%s1 + $0x5c] sm:$0xf]
          %v749 = vld [vmem:[%s1 + $0x60] sm:$0xf]
          %v750 = vld [vmem:[%s1 + $0x64] sm:$0xf]
          %v751 = vld [vmem:[%s1 + $0x68] sm:$0xf]
          %v752 = vld [vmem:[%s1 + $0x6c] sm:$0xf]
          %v753 = vld [vmem:[%s1 + $0x70] sm:$0xf]
          %v754 = vld [vmem:[%s1 + $0x74] sm:$0xf]
          %v755 = vld [vmem:[%s1 + $0x78] sm:$0xf]
          %v756 = vld [vmem:[%s1 + $0x7c] sm:$0xf]
          %v757 = vld [vmem:[%s0] sm:$0xf]
          %v758 = vld [vmem:[%s0 + $0x4] sm:$0xf]
          %v759 = vld [vmem:[%s2] sm:$0x1]
          %v761 = vlaneseq
          %v762 = vshrl.u32 %v761, 7
          %v763 = vsub.s32 0, %v762
          %v764 = vrot.slane %v759, %v763
          %v768 = vunpack.c.l.s4 1983009808
          %v769 = vunpack.c.0.s8 %v768
          %v770 = vlaneseq
          %v771 = vshrl.u32 %v770, 7
          %v772 = vsub.s32 %v769, %v771
          %v773 = vrot.slane %v757, %v772
          %v774 = vcombine.high %v773, %v773
          %v809 = vunpack.c.l.b16 %v725
          %v810 = vunpack.c.l.b16 %v726
          %v811 = vunpack.c.l.b16 %v727
          %v812 = vunpack.c.l.b16 %v728
          %v813 = vunpack.c.l.b16 %v729
          %v814 = vunpack.c.l.b16 %v730
          %v815 = vunpack.c.l.b16 %v731
          %v816 = vunpack.c.l.b16 %v732
          %v817 = vunpack.c.l.b16 %v733
          %v818 = vunpack.c.l.b16 %v734
          %v819 = vunpack.c.l.b16 %v735
          %v820 = vunpack.c.l.b16 %v736
          %v821 = vunpack.c.l.b16 %v737
          %v822 = vunpack.c.l.b16 %v738
          %v823 = vunpack.c.l.b16 %v739
          %v824 = vunpack.c.l.b16 %v740
          %v825 = vunpack.c.l.b16 %v741
          %v826 = vunpack.c.l.b16 %v742
          %v827 = vunpack.c.l.b16 %v743
          %v828 = vunpack.c.l.b16 %v744
          %v829 = vunpack.c.l.b16 %v745
          %v830 = vunpack.c.l.b16 %v746
          %v831 = vunpack.c.l.b16 %v747
          %v832 = vunpack.c.l.b16 %v748
          %v833 = vunpack.c.l.b16 %v749
          %v834 = vunpack.c.l.b16 %v750
          %v835 = vunpack.c.l.b16 %v751
          %v836 = vunpack.c.l.b16 %v752
          %v837 = vunpack.c.l.b16 %v753
          %v838 = vunpack.c.l.b16 %v754
          %v839 = vunpack.c.l.b16 %v755
          %v840 = vunpack.c.l.b16 %v756
          %v841 = vpack.c.b16 %v810, %v809
          %v842 = vpack.c.b16 %v812, %v811
          %v843 = vpack.c.b16 %v814, %v813
          %v844 = vpack.c.b16 %v816, %v815
          %v845 = vpack.c.b16 %v818, %v817
          %v846 = vpack.c.b16 %v820, %v819
          %v847 = vpack.c.b16 %v822, %v821
          %v848 = vpack.c.b16 %v824, %v823
          %v849 = vpack.c.b16 %v826, %v825
          %v850 = vpack.c.b16 %v828, %v827
          %v851 = vpack.c.b16 %v830, %v829
          %v852 = vpack.c.b16 %v832, %v831
          %v853 = vpack.c.b16 %v834, %v833
          %v854 = vpack.c.b16 %v836, %v835
          %v855 = vpack.c.b16 %v838, %v837
          %v856 = vpack.c.b16 %v840, %v839
          %873 = vmatprep.subr.bf16.mxu0 0
          %874 = vmatpush1.bf16.msra.mxu0 %v848
          %875 = vmatprep.subr.bf16.mxu0 0
          %876 = vmatpush1.bf16.msra.mxu0 %v847
          %877 = vmatprep.subr.bf16.mxu0 0
          %878 = vmatpush1.bf16.msra.mxu0 %v846
          %879 = vmatprep.subr.bf16.mxu0 0
          %880 = vmatpush1.bf16.msra.mxu0 %v845
          %881 = vmatprep.subr.bf16.mxu0 0
          %882 = vmatpush1.bf16.msra.mxu0 %v844
          %883 = vmatprep.subr.bf16.mxu0 0
          %884 = vmatpush1.bf16.msra.mxu0 %v843
          %885 = vmatprep.subr.bf16.mxu0 0
          %886 = vmatpush1.bf16.msra.mxu0 %v842
          %887 = vmatprep.subr.bf16.mxu0 0
          %888 = vmatpush1.bf16.msra.mxu0 %v841
          %889 = vmatprep.subr.bf16.mxu0 0
          %890 = vmatpush2.bf16.msra.mxu0 %v856
          %891 = vmatprep.subr.bf16.mxu0 0
          %892 = vmatpush2.bf16.msra.mxu0 %v855
          %893 = vmatprep.subr.bf16.mxu0 0
          %894 = vmatpush2.bf16.msra.mxu0 %v854
          %895 = vmatprep.subr.bf16.mxu0 0
          %896 = vmatpush2.bf16.msra.mxu0 %v853
          %897 = vmatprep.subr.bf16.mxu0 0
          %898 = vmatpush2.bf16.msra.mxu0 %v852
          %899 = vmatprep.subr.bf16.mxu0 0
          %900 = vmatpush2.bf16.msra.mxu0 %v851
          %901 = vmatprep.subr.bf16.mxu0 0
          %902 = vmatpush2.bf16.msra.mxu0 %v850
          %903 = vmatprep.subr.bf16.mxu0 0
          %904 = vmatpush2.bf16.msra.mxu0 %v849
          %905 = vmatprep.mubr.bf16.mxu0 %v774
          %906 = vmatmul.mubr.bf16.gmra.mxu0 %v773
          %v907 = vpop.f32.mrf.mxu0
          %v908 = vadd.f32 %v764, %v907
          %v909 = vpop.f32.mrf.mxu0
          %v910 = vpop.f32.mrf.mxu0
          %v911 = vpop.f32.mrf.mxu0
          %912 = vdwg.mxu0
          %v915 = vunpack.c.l.s4 1983009808
          %v916 = vunpack.c.0.s8 %v915
          %v917 = vlaneseq
          %v918 = vshrl.u32 %v917, 7
          %v919 = vsub.s32 %v916, %v918
          %v920 = vrot.slane %v758, %v919
          %v921 = vcombine.high %v920, %v920
          %924 = vmatprep.subr.bf16.mxu0 0
          %925 = vmatpush1.bf16.msra.mxu0 %v848
          %926 = vmatprep.subr.bf16.mxu0 0
          %927 = vmatpush1.bf16.msra.mxu0 %v847
          %928 = vmatprep.subr.bf16.mxu0 0
          %929 = vmatpush1.bf16.msra.mxu0 %v846
          %930 = vmatprep.subr.bf16.mxu0 0
          %931 = vmatpush1.bf16.msra.mxu0 %v845
          %932 = vmatprep.subr.bf16.mxu0 0
          %933 = vmatpush1.bf16.msra.mxu0 %v844
          %934 = vmatprep.subr.bf16.mxu0 0
          %935 = vmatpush1.bf16.msra.mxu0 %v843
          %936 = vmatprep.subr.bf16.mxu0 0
          %937 = vmatpush1.bf16.msra.mxu0 %v842
          %938 = vmatprep.subr.bf16.mxu0 0
          %939 = vmatpush1.bf16.msra.mxu0 %v841
          %940 = vmatprep.subr.bf16.mxu0 0
          %941 = vmatpush2.bf16.msra.mxu0 %v856
          %942 = vmatprep.subr.bf16.mxu0 0
          %943 = vmatpush2.bf16.msra.mxu0 %v855
          %944 = vmatprep.subr.bf16.mxu0 0
          %945 = vmatpush2.bf16.msra.mxu0 %v854
          %946 = vmatprep.subr.bf16.mxu0 0
          %947 = vmatpush2.bf16.msra.mxu0 %v853
          %948 = vmatprep.subr.bf16.mxu0 0
          %949 = vmatpush2.bf16.msra.mxu0 %v852
          %950 = vmatprep.subr.bf16.mxu0 0
          %951 = vmatpush2.bf16.msra.mxu0 %v851
          %952 = vmatprep.subr.bf16.mxu0 0
          %953 = vmatpush2.bf16.msra.mxu0 %v850
          %954 = vmatprep.subr.bf16.mxu0 0
          %955 = vmatpush2.bf16.msra.mxu0 %v849
          %956 = vmatprep.mubr.bf16.mxu0 %v921
          %957 = vmatmul.mubr.bf16.gmra.mxu0 %v920
          %v958 = vpop.f32.mrf.mxu0
          %v959 = vadd.f32 %v764, %v958
          %v960 = vpop.f32.mrf.mxu0
          %v961 = vpop.f32.mrf.mxu0
          %v962 = vpop.f32.mrf.mxu0
          %963 = vdwg.mxu0
          %v964 = vld [vmem:[%s3] sm:$0x1]
          %v967 = vrot.slane %v908, 7
          %v968 = vrot.slane %v959, 7
          %vm971 = vcmask 1040384
          %v972 = vsel %vm971, %v964, %v967
          %v973 = vsel %vm971, %v964, %v968
          %v974 = vld [vmem:[%s4] sm:$0x1f]
          %v975 = vadd.f32 %v972, %v974
          %v976 = vadd.f32 %v973, %v974
          %vm977 = vcmask 258048
          %978 = vst.msk [vmem:[#allocation2] sm:$0x1f] %vm977, %v975
          %979 = vst.msk [vmem:[#allocation2 + $0x8] sm:$0x1f] %vm977, %v976
        $region96: #{tpu_custom_call.1} parent=91 // pred_fallthru
          _
        %v980 = vld [vmem:[#allocation2] sm:$0x1f]
        %v981 = vld [vmem:[#allocation2 + $0x8] sm:$0x1f]
        %v982 = vld [vmem:[%s681] sm:$0x1]
        %v983 = vld [vmem:[%s684] sm:$0x1]
        %vm984 = vcmask 258048
        %v985 = vsel %vm984, %v980, 0.0
        %986 = vadd.xlane.f32.xlu0 %v985
        %v987 = vpop.xlane.xlu0 %986
        %v988 = vsel %vm984, %v981, 0.0
        %989 = vadd.xlane.f32.xlu0 %v988
        %v990 = vpop.xlane.xlu0 %989
        %v991 = vrcp.pop 32.0
        %v992 = vmul.f32 %v987, %v991
        %v993 = vmul.f32 %v990, %v991
        %v994 = vsub.f32 %v980, %v992
        %v995 = vsub.f32 %v981, %v993
        %v996 = vmul.f32 %v994, %v994
        %v997 = vmul.f32 %v995, %v995
        %v998 = vsel %vm984, %v996, 0.0
        %999 = vadd.xlane.f32.xlu0 %v998
        %v1000 = vpop.xlane.xlu0 %999
        %v1001 = vsel %vm984, %v997, 0.0
        %1002 = vadd.xlane.f32.xlu0 %v1001
        %v1003 = vpop.xlane.xlu0 %1002
        %v1004 = vmul.f32 %v1000, %v991
        %v1005 = vmul.f32 %v1003, %v991
        %v1006 = vadd.f32 %v1004, 1e-05
        %v1007 = vadd.f32 %v1005, 1e-05
        %v1008 = vrsqrt.pop %v1006
        %v1009 = vrsqrt.pop %v1007
        %v1010 = vmul.f32 %v994, %v1008
        %v1011 = vmul.f32 %v995, %v1009
        %v1013 = vlaneseq
        %v1014 = vshrl.u32 %v1013, 7
        %v1015 = vsub.s32 0, %v1014
        %v1016 = vrot.slane %v982, %v1015
        %v1018 = vmul.f32 %v1010, %v1016
        %v1019 = vmul.f32 %v1011, %v1016
        %v1021 = vlaneseq
        %v1022 = vshrl.u32 %v1021, 7
        %v1023 = vsub.s32 0, %v1022
        %v1024 = vrot.slane %v983, %v1023
        %v1026 = vadd.f32 %v1018, %v1024
        %v1027 = vadd.f32 %v1019, %v1024
        %v1028 = vpack.c.bf16 %v1026, %v1026
        %v1029 = vpack.c.bf16 %v1027, %v1027
        %v1030 = vld [vmem:[%s689] sm:$0xf]
        %v1031 = vld [vmem:[%s689 + $0x4] sm:$0xf]
        %v1032 = vld [vmem:[%s689 + $0x8] sm:$0xf]
        %v1033 = vld [vmem:[%s689 + $0xc] sm:$0xf]
        %v1034 = vld [vmem:[%s689 + $0x10] sm:$0xf]
        %v1035 = vld [vmem:[%s689 + $0x14] sm:$0xf]
        %v1036 = vld [vmem:[%s689 + $0x18] sm:$0xf]
        %v1037 = vld [vmem:[%s689 + $0x1c] sm:$0xf]
        %v1038 = vld [vmem:[%s689 + $0x20] sm:$0xf]
        %v1039 = vld [vmem:[%s689 + $0x24] sm:$0xf]
        %v1040 = vld [vmem:[%s689 + $0x28] sm:$0xf]
        %v1041 = vld [vmem:[%s689 + $0x2c] sm:$0xf]
        %v1042 = vld [vmem:[%s689 + $0x30] sm:$0xf]
        %v1043 = vld [vmem:[%s689 + $0x34] sm:$0xf]
        %v1044 = vld [vmem:[%s689 + $0x38] sm:$0xf]
        %v1045 = vld [vmem:[%s689 + $0x3c] sm:$0xf]
        %v1050 = vunpack.c.l.b16 %v1030
        %v1051 = vunpack.c.l.b16 %v1031
        %v1052 = vunpack.c.l.b16 %v1032
        %v1053 = vunpack.c.l.b16 %v1033
        %v1054 = vpack.c.b16 %v1051, %v1050
        %v1055 = vpack.c.b16 %v1053, %v1052
        %vm1058 = vcmask 261120
        %v1060 = vsel %vm1058, %v1028, 0
        %1062 = vmatprep.subr.bf16.mxu0 0
        %1063 = vmatpush1.bf16.msra.mxu0 0
        %1064 = vmatprep.subr.bf16.mxu0 0
        %1065 = vmatpush1.bf16.msra.mxu0 0
        %1066 = vmatprep.subr.bf16.mxu0 0
        %1067 = vmatpush1.bf16.msra.mxu0 0
        %1068 = vmatprep.subr.bf16.mxu0 0
        %1069 = vmatpush1.bf16.msra.mxu0 0
        %1070 = vmatprep.subr.bf16.mxu0 0
        %1071 = vmatpush1.bf16.msra.mxu0 0
        %1072 = vmatprep.subr.bf16.mxu0 0
        %1073 = vmatpush1.bf16.msra.mxu0 0
        %1074 = vmatprep.subr.bf16.mxu0 0
        %1075 = vmatpush1.bf16.msra.mxu0 %v1055
        %1076 = vmatprep.subr.bf16.mxu0 0
        %1077 = vmatpush1.bf16.msra.mxu0 %v1054
        %1078 = vmatprep.subr.bf16.mxu0 0
        %1079 = vmatpush2.bf16.msra.mxu0 0
        %1080 = vmatprep.subr.bf16.mxu0 0
        %1081 = vmatpush2.bf16.msra.mxu0 0
        %1082 = vmatprep.subr.bf16.mxu0 0
        %1083 = vmatpush2.bf16.msra.mxu0 0
        %1084 = vmatprep.subr.bf16.mxu0 0
        %1085 = vmatpush2.bf16.msra.mxu0 0
        %1086 = vmatprep.subr.bf16.mxu0 0
        %1087 = vmatpush2.bf16.msra.mxu0 0
        %1088 = vmatprep.subr.bf16.mxu0 0
        %1089 = vmatpush2.bf16.msra.mxu0 0
        %1090 = vmatprep.subr.bf16.mxu0 0
        %1091 = vmatpush2.bf16.msra.mxu0 0
        %1092 = vmatprep.subr.bf16.mxu0 0
        %1093 = vmatpush2.bf16.msra.mxu0 0
        %1094 = vmatprep.mubr.bf16.mxu0 0
        %1095 = vmatmul.mubr.bf16.gmra.mxu0 %v1060
        %v1096 = vpop.f32.mrf.mxu0
        %v1097 = vadd.f32 0.0, %v1096
        %v1098 = vpop.f32.mrf.mxu0
        %v1099 = vpop.f32.mrf.mxu0
        %v1100 = vpop.f32.mrf.mxu0
        %1101 = vdwg.mxu0
        %v1106 = vunpack.c.l.b16 %v1034
        %v1107 = vunpack.c.l.b16 %v1035
        %v1108 = vunpack.c.l.b16 %v1036
        %v1109 = vunpack.c.l.b16 %v1037
        %v1110 = vpack.c.b16 %v1107, %v1106
        %v1111 = vpack.c.b16 %v1109, %v1108
        %1114 = vmatprep.subr.bf16.mxu0 0
        %1115 = vmatpush1.bf16.msra.mxu0 0
        %1116 = vmatprep.subr.bf16.mxu0 0
        %1117 = vmatpush1.bf16.msra.mxu0 0
        %1118 = vmatprep.subr.bf16.mxu0 0
        %1119 = vmatpush1.bf16.msra.mxu0 0
        %1120 = vmatprep.subr.bf16.mxu0 0
        %1121 = vmatpush1.bf16.msra.mxu0 0
        %1122 = vmatprep.subr.bf16.mxu0 0
        %1123 = vmatpush1.bf16.msra.mxu0 0
        %1124 = vmatprep.subr.bf16.mxu0 0
        %1125 = vmatpush1.bf16.msra.mxu0 0
        %1126 = vmatprep.subr.bf16.mxu0 0
        %1127 = vmatpush1.bf16.msra.mxu0 %v1111
        %1128 = vmatprep.subr.bf16.mxu0 0
        %1129 = vmatpush1.bf16.msra.mxu0 %v1110
        %1130 = vmatprep.subr.bf16.mxu0 0
        %1131 = vmatpush2.bf16.msra.mxu0 0
        %1132 = vmatprep.subr.bf16.mxu0 0
        %1133 = vmatpush2.bf16.msra.mxu0 0
        %1134 = vmatprep.subr.bf16.mxu0 0
        %1135 = vmatpush2.bf16.msra.mxu0 0
        %1136 = vmatprep.subr.bf16.mxu0 0
        %1137 = vmatpush2.bf16.msra.mxu0 0
        %1138 = vmatprep.subr.bf16.mxu0 0
        %1139 = vmatpush2.bf16.msra.mxu0 0
        %1140 = vmatprep.subr.bf16.mxu0 0
        %1141 = vmatpush2.bf16.msra.mxu0 0
        %1142 = vmatprep.subr.bf16.mxu0 0
        %1143 = vmatpush2.bf16.msra.mxu0 0
        %1144 = vmatprep.subr.bf16.mxu0 0
        %1145 = vmatpush2.bf16.msra.mxu0 0
        %1146 = vmatprep.mubr.bf16.mxu0 0
        %1147 = vmatmul.mubr.bf16.gmra.mxu0 %v1060
        %v1148 = vpop.f32.mrf.mxu0
        %v1149 = vadd.f32 0.0, %v1148
        %v1150 = vpop.f32.mrf.mxu0
        %v1151 = vpop.f32.mrf.mxu0
        %v1152 = vpop.f32.mrf.mxu0
        %1153 = vdwg.mxu0
        %v1158 = vunpack.c.l.b16 %v1038
        %v1159 = vunpack.c.l.b16 %v1039
        %v1160 = vunpack.c.l.b16 %v1040
        %v1161 = vunpack.c.l.b16 %v1041
        %v1162 = vpack.c.b16 %v1159, %v1158
        %v1163 = vpack.c.b16 %v1161, %v1160
        %1166 = vmatprep.subr.bf16.mxu0 0
        %1167 = vmatpush1.bf16.msra.mxu0 0
        %1168 = vmatprep.subr.bf16.mxu0 0
        %1169 = vmatpush1.bf16.msra.mxu0 0
        %1170 = vmatprep.subr.bf16.mxu0 0
        %1171 = vmatpush1.bf16.msra.mxu0 0
        %1172 = vmatprep.subr.bf16.mxu0 0
        %1173 = vmatpush1.bf16.msra.mxu0 0
        %1174 = vmatprep.subr.bf16.mxu0 0
        %1175 = vmatpush1.bf16.msra.mxu0 0
        %1176 = vmatprep.subr.bf16.mxu0 0
        %1177 = vmatpush1.bf16.msra.mxu0 0
        %1178 = vmatprep.subr.bf16.mxu0 0
        %1179 = vmatpush1.bf16.msra.mxu0 %v1163
        %1180 = vmatprep.subr.bf16.mxu0 0
        %1181 = vmatpush1.bf16.msra.mxu0 %v1162
        %1182 = vmatprep.subr.bf16.mxu0 0
        %1183 = vmatpush2.bf16.msra.mxu0 0
        %1184 = vmatprep.subr.bf16.mxu0 0
        %1185 = vmatpush2.bf16.msra.mxu0 0
        %1186 = vmatprep.subr.bf16.mxu0 0
        %1187 = vmatpush2.bf16.msra.mxu0 0
        %1188 = vmatprep.subr.bf16.mxu0 0
        %1189 = vmatpush2.bf16.msra.mxu0 0
        %1190 = vmatprep.subr.bf16.mxu0 0
        %1191 = vmatpush2.bf16.msra.mxu0 0
        %1192 = vmatprep.subr.bf16.mxu0 0
        %1193 = vmatpush2.bf16.msra.mxu0 0
        %1194 = vmatprep.subr.bf16.mxu0 0
        %1195 = vmatpush2.bf16.msra.mxu0 0
        %1196 = vmatprep.subr.bf16.mxu0 0
        %1197 = vmatpush2.bf16.msra.mxu0 0
        %1198 = vmatprep.mubr.bf16.mxu0 0
        %1199 = vmatmul.mubr.bf16.gmra.mxu0 %v1060
        %v1200 = vpop.f32.mrf.mxu0
        %v1201 = vadd.f32 0.0, %v1200
        %v1202 = vpop.f32.mrf.mxu0
        %v1203 = vpop.f32.mrf.mxu0
        %v1204 = vpop.f32.mrf.mxu0
        %1205 = vdwg.mxu0
        %v1210 = vunpack.c.l.b16 %v1042
        %v1211 = vunpack.c.l.b16 %v1043
        %v1212 = vunpack.c.l.b16 %v1044
        %v1213 = vunpack.c.l.b16 %v1045
        %v1214 = vpack.c.b16 %v1211, %v1210
        %v1215 = vpack.c.b16 %v1213, %v1212
        %1218 = vmatprep.subr.bf16.mxu0 0
        %1219 = vmatpush1.bf16.msra.mxu0 0
        %1220 = vmatprep.subr.bf16.mxu0 0
        %1221 = vmatpush1.bf16.msra.mxu0 0
        %1222 = vmatprep.subr.bf16.mxu0 0
        %1223 = vmatpush1.bf16.msra.mxu0 0
        %1224 = vmatprep.subr.bf16.mxu0 0
        %1225 = vmatpush1.bf16.msra.mxu0 0
        %1226 = vmatprep.subr.bf16.mxu0 0
        %1227 = vmatpush1.bf16.msra.mxu0 0
        %1228 = vmatprep.subr.bf16.mxu0 0
        %1229 = vmatpush1.bf16.msra.mxu0 0
        %1230 = vmatprep.subr.bf16.mxu0 0
        %1231 = vmatpush1.bf16.msra.mxu0 %v1215
        %1232 = vmatprep.subr.bf16.mxu0 0
        %1233 = vmatpush1.bf16.msra.mxu0 %v1214
        %1234 = vmatprep.subr.bf16.mxu0 0
        %1235 = vmatpush2.bf16.msra.mxu0 0
        %1236 = vmatprep.subr.bf16.mxu0 0
        %1237 = vmatpush2.bf16.msra.mxu0 0
        %1238 = vmatprep.subr.bf16.mxu0 0
        %1239 = vmatpush2.bf16.msra.mxu0 0
        %1240 = vmatprep.subr.bf16.mxu0 0
        %1241 = vmatpush2.bf16.msra.mxu0 0
        %1242 = vmatprep.subr.bf16.mxu0 0
        %1243 = vmatpush2.bf16.msra.mxu0 0
        %1244 = vmatprep.subr.bf16.mxu0 0
        %1245 = vmatpush2.bf16.msra.mxu0 0
        %1246 = vmatprep.subr.bf16.mxu0 0
        %1247 = vmatpush2.bf16.msra.mxu0 0
        %1248 = vmatprep.subr.bf16.mxu0 0
        %1249 = vmatpush2.bf16.msra.mxu0 0
        %1250 = vmatprep.mubr.bf16.mxu0 0
        %1251 = vmatmul.mubr.bf16.gmra.mxu0 %v1060
        %v1252 = vpop.f32.mrf.mxu0
        %v1253 = vadd.f32 0.0, %v1252
        %v1254 = vpop.f32.mrf.mxu0
        %v1255 = vpop.f32.mrf.mxu0
        %v1256 = vpop.f32.mrf.mxu0
        %1257 = vdwg.mxu0
        %v1259 = vsel %vm1058, %v1029, 0
        %1261 = vmatprep.subr.bf16.mxu0 0
        %1262 = vmatpush1.bf16.msra.mxu0 0
        %1263 = vmatprep.subr.bf16.mxu0 0
        %1264 = vmatpush1.bf16.msra.mxu0 0
        %1265 = vmatprep.subr.bf16.mxu0 0
        %1266 = vmatpush1.bf16.msra.mxu0 0
        %1267 = vmatprep.subr.bf16.mxu0 0
        %1268 = vmatpush1.bf16.msra.mxu0 0
        %1269 = vmatprep.subr.bf16.mxu0 0
        %1270 = vmatpush1.bf16.msra.mxu0 0
        %1271 = vmatprep.subr.bf16.mxu0 0
        %1272 = vmatpush1.bf16.msra.mxu0 0
        %1273 = vmatprep.subr.bf16.mxu0 0
        %1274 = vmatpush1.bf16.msra.mxu0 %v1055
        %1275 = vmatprep.subr.bf16.mxu0 0
        %1276 = vmatpush1.bf16.msra.mxu0 %v1054
        %1277 = vmatprep.subr.bf16.mxu0 0
        %1278 = vmatpush2.bf16.msra.mxu0 0
        %1279 = vmatprep.subr.bf16.mxu0 0
        %1280 = vmatpush2.bf16.msra.mxu0 0
        %1281 = vmatprep.subr.bf16.mxu0 0
        %1282 = vmatpush2.bf16.msra.mxu0 0
        %1283 = vmatprep.subr.bf16.mxu0 0
        %1284 = vmatpush2.bf16.msra.mxu0 0
        %1285 = vmatprep.subr.bf16.mxu0 0
        %1286 = vmatpush2.bf16.msra.mxu0 0
        %1287 = vmatprep.subr.bf16.mxu0 0
        %1288 = vmatpush2.bf16.msra.mxu0 0
        %1289 = vmatprep.subr.bf16.mxu0 0
        %1290 = vmatpush2.bf16.msra.mxu0 0
        %1291 = vmatprep.subr.bf16.mxu0 0
        %1292 = vmatpush2.bf16.msra.mxu0 0
        %1293 = vmatprep.mubr.bf16.mxu0 0
        %1294 = vmatmul.mubr.bf16.gmra.mxu0 %v1259
        %v1295 = vpop.f32.mrf.mxu0
        %v1296 = vadd.f32 0.0, %v1295
        %v1297 = vpop.f32.mrf.mxu0
        %v1298 = vpop.f32.mrf.mxu0
        %v1299 = vpop.f32.mrf.mxu0
        %1300 = vdwg.mxu0
        %1301 = vmatprep.subr.bf16.mxu0 0
        %1302 = vmatpush1.bf16.msra.mxu0 0
        %1303 = vmatprep.subr.bf16.mxu0 0
        %1304 = vmatpush1.bf16.msra.mxu0 0
        %1305 = vmatprep.subr.bf16.mxu0 0
        %1306 = vmatpush1.bf16.msra.mxu0 0
        %1307 = vmatprep.subr.bf16.mxu0 0
        %1308 = vmatpush1.bf16.msra.mxu0 0
        %1309 = vmatprep.subr.bf16.mxu0 0
        %1310 = vmatpush1.bf16.msra.mxu0 0
        %1311 = vmatprep.subr.bf16.mxu0 0
        %1312 = vmatpush1.bf16.msra.mxu0 0
        %1313 = vmatprep.subr.bf16.mxu0 0
        %1314 = vmatpush1.bf16.msra.mxu0 %v1111
        %1315 = vmatprep.subr.bf16.mxu0 0
        %1316 = vmatpush1.bf16.msra.mxu0 %v1110
        %1317 = vmatprep.subr.bf16.mxu0 0
        %1318 = vmatpush2.bf16.msra.mxu0 0
        %1319 = vmatprep.subr.bf16.mxu0 0
        %1320 = vmatpush2.bf16.msra.mxu0 0
        %1321 = vmatprep.subr.bf16.mxu0 0
        %1322 = vmatpush2.bf16.msra.mxu0 0
        %1323 = vmatprep.subr.bf16.mxu0 0
        %1324 = vmatpush2.bf16.msra.mxu0 0
        %1325 = vmatprep.subr.bf16.mxu0 0
        %1326 = vmatpush2.bf16.msra.mxu0 0
        %1327 = vmatprep.subr.bf16.mxu0 0
        %1328 = vmatpush2.bf16.msra.mxu0 0
        %1329 = vmatprep.subr.bf16.mxu0 0
        %1330 = vmatpush2.bf16.msra.mxu0 0
        %1331 = vmatprep.subr.bf16.mxu0 0
        %1332 = vmatpush2.bf16.msra.mxu0 0
        %1333 = vmatprep.mubr.bf16.mxu0 0
        %1334 = vmatmul.mubr.bf16.gmra.mxu0 %v1259
        %v1335 = vpop.f32.mrf.mxu0
        %v1336 = vadd.f32 0.0, %v1335
        %v1337 = vpop.f32.mrf.mxu0
        %v1338 = vpop.f32.mrf.mxu0
        %v1339 = vpop.f32.mrf.mxu0
        %1340 = vdwg.mxu0
        %1341 = vmatprep.subr.bf16.mxu0 0
        %1342 = vmatpush1.bf16.msra.mxu0 0
        %1343 = vmatprep.subr.bf16.mxu0 0
        %1344 = vmatpush1.bf16.msra.mxu0 0
        %1345 = vmatprep.subr.bf16.mxu0 0
        %1346 = vmatpush1.bf16.msra.mxu0 0
        %1347 = vmatprep.subr.bf16.mxu0 0
        %1348 = vmatpush1.bf16.msra.mxu0 0
        %1349 = vmatprep.subr.bf16.mxu0 0
        %1350 = vmatpush1.bf16.msra.mxu0 0
        %1351 = vmatprep.subr.bf16.mxu0 0
        %1352 = vmatpush1.bf16.msra.mxu0 0
        %1353 = vmatprep.subr.bf16.mxu0 0
        %1354 = vmatpush1.bf16.msra.mxu0 %v1163
        %1355 = vmatprep.subr.bf16.mxu0 0
        %1356 = vmatpush1.bf16.msra.mxu0 %v1162
        %1357 = vmatprep.subr.bf16.mxu0 0
        %1358 = vmatpush2.bf16.msra.mxu0 0
        %1359 = vmatprep.subr.bf16.mxu0 0
        %1360 = vmatpush2.bf16.msra.mxu0 0
        %1361 = vmatprep.subr.bf16.mxu0 0
        %1362 = vmatpush2.bf16.msra.mxu0 0
        %1363 = vmatprep.subr.bf16.mxu0 0
        %1364 = vmatpush2.bf16.msra.mxu0 0
        %1365 = vmatprep.subr.bf16.mxu0 0
        %1366 = vmatpush2.bf16.msra.mxu0 0
        %1367 = vmatprep.subr.bf16.mxu0 0
        %1368 = vmatpush2.bf16.msra.mxu0 0
        %1369 = vmatprep.subr.bf16.mxu0 0
        %1370 = vmatpush2.bf16.msra.mxu0 0
        %1371 = vmatprep.subr.bf16.mxu0 0
        %1372 = vmatpush2.bf16.msra.mxu0 0
        %1373 = vmatprep.mubr.bf16.mxu0 0
        %1374 = vmatmul.mubr.bf16.gmra.mxu0 %v1259
        %v1375 = vpop.f32.mrf.mxu0
        %v1376 = vadd.f32 0.0, %v1375
        %v1377 = vpop.f32.mrf.mxu0
        %v1378 = vpop.f32.mrf.mxu0
        %v1379 = vpop.f32.mrf.mxu0
        %1380 = vdwg.mxu0
        %1381 = vmatprep.subr.bf16.mxu0 0
        %1382 = vmatpush1.bf16.msra.mxu0 0
        %1383 = vmatprep.subr.bf16.mxu0 0
        %1384 = vmatpush1.bf16.msra.mxu0 0
        %1385 = vmatprep.subr.bf16.mxu0 0
        %1386 = vmatpush1.bf16.msra.mxu0 0
        %1387 = vmatprep.subr.bf16.mxu0 0
        %1388 = vmatpush1.bf16.msra.mxu0 0
        %1389 = vmatprep.subr.bf16.mxu0 0
        %1390 = vmatpush1.bf16.msra.mxu0 0
        %1391 = vmatprep.subr.bf16.mxu0 0
        %1392 = vmatpush1.bf16.msra.mxu0 0
        %1393 = vmatprep.subr.bf16.mxu0 0
        %1394 = vmatpush1.bf16.msra.mxu0 %v1215
        %1395 = vmatprep.subr.bf16.mxu0 0
        %1396 = vmatpush1.bf16.msra.mxu0 %v1214
        %1397 = vmatprep.subr.bf16.mxu0 0
        %1398 = vmatpush2.bf16.msra.mxu0 0
        %1399 = vmatprep.subr.bf16.mxu0 0
        %1400 = vmatpush2.bf16.msra.mxu0 0
        %1401 = vmatprep.subr.bf16.mxu0 0
        %1402 = vmatpush2.bf16.msra.mxu0 0
        %1403 = vmatprep.subr.bf16.mxu0 0
        %1404 = vmatpush2.bf16.msra.mxu0 0
        %1405 = vmatprep.subr.bf16.mxu0 0
        %1406 = vmatpush2.bf16.msra.mxu0 0
        %1407 = vmatprep.subr.bf16.mxu0 0
        %1408 = vmatpush2.bf16.msra.mxu0 0
        %1409 = vmatprep.subr.bf16.mxu0 0
        %1410 = vmatpush2.bf16.msra.mxu0 0
        %1411 = vmatprep.subr.bf16.mxu0 0
        %1412 = vmatpush2.bf16.msra.mxu0 0
        %1413 = vmatprep.mubr.bf16.mxu0 0
        %1414 = vmatmul.mubr.bf16.gmra.mxu0 %v1259
        %v1415 = vpop.f32.mrf.mxu0
        %v1416 = vadd.f32 0.0, %v1415
        %v1417 = vpop.f32.mrf.mxu0
        %v1418 = vpop.f32.mrf.mxu0
        %v1419 = vpop.f32.mrf.mxu0
        %1420 = vdwg.mxu0
        %v1421 = vmul.f32 %v1097, 0.35355338
        %v1422 = vmul.f32 %v1149, 0.35355338
        %v1423 = vmul.f32 %v1201, 0.35355338
        %v1424 = vmul.f32 %v1253, 0.35355338
        %v1425 = vmul.f32 %v1296, 0.35355338
        %v1426 = vmul.f32 %v1336, 0.35355338
        %v1427 = vmul.f32 %v1376, 0.35355338
        %v1428 = vmul.f32 %v1416, 0.35355338
        %v1429 = vpack.c.bf16 %v1421, %v1421
        %v1430 = vpack.c.bf16 %v1422, %v1422
        %v1431 = vpack.c.bf16 %v1423, %v1423
        %v1432 = vpack.c.bf16 %v1424, %v1424
        %v1433 = vpack.c.bf16 %v1425, %v1425
        %v1434 = vpack.c.bf16 %v1426, %v1426
        %v1435 = vpack.c.bf16 %v1427, %v1427
        %v1436 = vpack.c.bf16 %v1428, %v1428
        %v1437 = vpack.c.bf16 %v1097, %v1097
        %v1438 = vpack.c.bf16 %v1149, %v1149
        %v1439 = vpack.c.bf16 %v1201, %v1201
        %v1440 = vpack.c.bf16 %v1253, %v1253
        %v1441 = vpack.c.bf16 %v1296, %v1296
        %v1442 = vpack.c.bf16 %v1336, %v1336
        %v1443 = vpack.c.bf16 %v1376, %v1376
        %v1444 = vpack.c.bf16 %v1416, %v1416
        %1446 = vrot.lane.b32.xlu0 %v1437, 120
        %v1447 = vpop.permute.xlu0 %1446
        %vm1448 = vcmask 64512
        %v1450 = vsel %vm1448, %v1429, 0
        %v1453 = vsel %vm1448, %v1447, 0
        %1455 = vmatprep.subr.bf16.mxu0 0
        %1456 = vmatpush1.bf16.xpose.msra.mxu0 0
        %1457 = vmatprep.subr.bf16.mxu0 0
        %1458 = vmatpush1.bf16.xpose.msra.mxu0 0
        %1459 = vmatprep.subr.bf16.mxu0 0
        %1460 = vmatpush1.bf16.xpose.msra.mxu0 0
        %1461 = vmatprep.subr.bf16.mxu0 0
        %1462 = vmatpush1.bf16.xpose.msra.mxu0 0
        %1463 = vmatprep.subr.bf16.mxu0 0
        %1464 = vmatpush1.bf16.xpose.msra.mxu0 0
        %1465 = vmatprep.subr.bf16.mxu0 0
        %1466 = vmatpush1.bf16.xpose.msra.mxu0 0
        %1467 = vmatprep.subr.bf16.mxu0 0
        %1468 = vmatpush1.bf16.xpose.msra.mxu0 0
        %1469 = vmatprep.subr.bf16.mxu0 0
        %1470 = vmatpush1.bf16.xpose.msra.mxu0 %v1453
        %1471 = vmatprep.subr.bf16.mxu0 0
        %1472 = vmatpush2.bf16.xpose.msra.mxu0 0
        %1473 = vmatprep.subr.bf16.mxu0 0
        %1474 = vmatpush2.bf16.xpose.msra.mxu0 0
        %1475 = vmatprep.subr.bf16.mxu0 0
        %1476 = vmatpush2.bf16.xpose.msra.mxu0 0
        %1477 = vmatprep.subr.bf16.mxu0 0
        %1478 = vmatpush2.bf16.xpose.msra.mxu0 0
        %1479 = vmatprep.subr.bf16.mxu0 0
        %1480 = vmatpush2.bf16.xpose.msra.mxu0 0
        %1481 = vmatprep.subr.bf16.mxu0 0
        %1482 = vmatpush2.bf16.xpose.msra.mxu0 0
        %1483 = vmatprep.subr.bf16.mxu0 0
        %1484 = vmatpush2.bf16.xpose.msra.mxu0 0
        %1485 = vmatprep.subr.bf16.mxu0 0
        %1486 = vmatpush2.bf16.xpose.msra.mxu0 0
        %1487 = vmatprep.mubr.bf16.mxu0 0
        %1488 = vmatmul.mubr.bf16.gmra.mxu0 %v1450
        %v1489 = vpop.f32.mrf.mxu0
        %v1490 = vadd.f32 0.0, %v1489
        %v1491 = vpop.f32.mrf.mxu0
        %v1492 = vpop.f32.mrf.mxu0
        %v1493 = vpop.f32.mrf.mxu0
        %1494 = vdwg.mxu0
        %1496 = vrot.lane.b32.xlu0 %v1438, 120
        %v1497 = vpop.permute.xlu0 %1496
        %v1499 = vsel %vm1448, %v1430, 0
        %v1502 = vsel %vm1448, %v1497, 0
        %1504 = vmatprep.subr.bf16.mxu0 0
        %1505 = vmatpush1.bf16.xpose.msra.mxu0 0
        %1506 = vmatprep.subr.bf16.mxu0 0
        %1507 = vmatpush1.bf16.xpose.msra.mxu0 0
        %1508 = vmatprep.subr.bf16.mxu0 0
        %1509 = vmatpush1.bf16.xpose.msra.mxu0 0
        %1510 = vmatprep.subr.bf16.mxu0 0
        %1511 = vmatpush1.bf16.xpose.msra.mxu0 0
        %1512 = vmatprep.subr.bf16.mxu0 0
        %1513 = vmatpush1.bf16.xpose.msra.mxu0 0
        %1514 = vmatprep.subr.bf16.mxu0 0
        %1515 = vmatpush1.bf16.xpose.msra.mxu0 0
        %1516 = vmatprep.subr.bf16.mxu0 0
        %1517 = vmatpush1.bf16.xpose.msra.mxu0 0
        %1518 = vmatprep.subr.bf16.mxu0 0
        %1519 = vmatpush1.bf16.xpose.msra.mxu0 %v1502
        %1520 = vmatprep.subr.bf16.mxu0 0
        %1521 = vmatpush2.bf16.xpose.msra.mxu0 0
        %1522 = vmatprep.subr.bf16.mxu0 0
        %1523 = vmatpush2.bf16.xpose.msra.mxu0 0
        %1524 = vmatprep.subr.bf16.mxu0 0
        %1525 = vmatpush2.bf16.xpose.msra.mxu0 0
        %1526 = vmatprep.subr.bf16.mxu0 0
        %1527 = vmatpush2.bf16.xpose.msra.mxu0 0
        %1528 = vmatprep.subr.bf16.mxu0 0
        %1529 = vmatpush2.bf16.xpose.msra.mxu0 0
        %1530 = vmatprep.subr.bf16.mxu0 0
        %1531 = vmatpush2.bf16.xpose.msra.mxu0 0
        %1532 = vmatprep.subr.bf16.mxu0 0
        %1533 = vmatpush2.bf16.xpose.msra.mxu0 0
        %1534 = vmatprep.subr.bf16.mxu0 0
        %1535 = vmatpush2.bf16.xpose.msra.mxu0 0
        %1536 = vmatprep.mubr.bf16.mxu0 0
        %1537 = vmatmul.mubr.bf16.gmra.mxu0 %v1499
        %v1538 = vpop.f32.mrf.mxu0
        %v1539 = vadd.f32 0.0, %v1538
        %v1540 = vpop.f32.mrf.mxu0
        %v1541 = vpop.f32.mrf.mxu0
        %v1542 = vpop.f32.mrf.mxu0
        %1543 = vdwg.mxu0
        %1545 = vrot.lane.b32.xlu0 %v1439, 120
        %v1546 = vpop.permute.xlu0 %1545
        %v1548 = vsel %vm1448, %v1431, 0
        %v1551 = vsel %vm1448, %v1546, 0
        %1553 = vmatprep.subr.bf16.mxu0 0
        %1554 = vmatpush1.bf16.xpose.msra.mxu0 0
        %1555 = vmatprep.subr.bf16.mxu0 0
        %1556 = vmatpush1.bf16.xpose.msra.mxu0 0
        %1557 = vmatprep.subr.bf16.mxu0 0
        %1558 = vmatpush1.bf16.xpose.msra.mxu0 0
        %1559 = vmatprep.subr.bf16.mxu0 0
        %1560 = vmatpush1.bf16.xpose.msra.mxu0 0
        %1561 = vmatprep.subr.bf16.mxu0 0
        %1562 = vmatpush1.bf16.xpose.msra.mxu0 0
        %1563 = vmatprep.subr.bf16.mxu0 0
        %1564 = vmatpush1.bf16.xpose.msra.mxu0 0
        %1565 = vmatprep.subr.bf16.mxu0 0
        %1566 = vmatpush1.bf16.xpose.msra.mxu0 0
        %1567 = vmatprep.subr.bf16.mxu0 0
        %1568 = vmatpush1.bf16.xpose.msra.mxu0 %v1551
        %1569 = vmatprep.subr.bf16.mxu0 0
        %1570 = vmatpush2.bf16.xpose.msra.mxu0 0
        %1571 = vmatprep.subr.bf16.mxu0 0
        %1572 = vmatpush2.bf16.xpose.msra.mxu0 0
        %1573 = vmatprep.subr.bf16.mxu0 0
        %1574 = vmatpush2.bf16.xpose.msra.mxu0 0
        %1575 = vmatprep.subr.bf16.mxu0 0
        %1576 = vmatpush2.bf16.xpose.msra.mxu0 0
        %1577 = vmatprep.subr.bf16.mxu0 0
        %1578 = vmatpush2.bf16.xpose.msra.mxu0 0
        %1579 = vmatprep.subr.bf16.mxu0 0
        %1580 = vmatpush2.bf16.xpose.msra.mxu0 0
        %1581 = vmatprep.subr.bf16.mxu0 0
        %1582 = vmatpush2.bf16.xpose.msra.mxu0 0
        %1583 = vmatprep.subr.bf16.mxu0 0
        %1584 = vmatpush2.bf16.xpose.msra.mxu0 0
        %1585 = vmatprep.mubr.bf16.mxu0 0
        %1586 = vmatmul.mubr.bf16.gmra.mxu0 %v1548
        %v1587 = vpop.f32.mrf.mxu0
        %v1588 = vadd.f32 0.0, %v1587
        %v1589 = vpop.f32.mrf.mxu0
        %v1590 = vpop.f32.mrf.mxu0
        %v1591 = vpop.f32.mrf.mxu0
        %1592 = vdwg.mxu0
        %1594 = vrot.lane.b32.xlu0 %v1440, 120
        %v1595 = vpop.permute.xlu0 %1594
        %v1597 = vsel %vm1448, %v1432, 0
        %v1600 = vsel %vm1448, %v1595, 0
        %1602 = vmatprep.subr.bf16.mxu0 0
        %1603 = vmatpush1.bf16.xpose.msra.mxu0 0
        %1604 = vmatprep.subr.bf16.mxu0 0
        %1605 = vmatpush1.bf16.xpose.msra.mxu0 0
        %1606 = vmatprep.subr.bf16.mxu0 0
        %1607 = vmatpush1.bf16.xpose.msra.mxu0 0
        %1608 = vmatprep.subr.bf16.mxu0 0
        %1609 = vmatpush1.bf16.xpose.msra.mxu0 0
        %1610 = vmatprep.subr.bf16.mxu0 0
        %1611 = vmatpush1.bf16.xpose.msra.mxu0 0
        %1612 = vmatprep.subr.bf16.mxu0 0
        %1613 = vmatpush1.bf16.xpose.msra.mxu0 0
        %1614 = vmatprep.subr.bf16.mxu0 0
        %1615 = vmatpush1.bf16.xpose.msra.mxu0 0
        %1616 = vmatprep.subr.bf16.mxu0 0
        %1617 = vmatpush1.bf16.xpose.msra.mxu0 %v1600
        %1618 = vmatprep.subr.bf16.mxu0 0
        %1619 = vmatpush2.bf16.xpose.msra.mxu0 0
        %1620 = vmatprep.subr.bf16.mxu0 0
        %1621 = vmatpush2.bf16.xpose.msra.mxu0 0
        %1622 = vmatprep.subr.bf16.mxu0 0
        %1623 = vmatpush2.bf16.xpose.msra.mxu0 0
        %1624 = vmatprep.subr.bf16.mxu0 0
        %1625 = vmatpush2.bf16.xpose.msra.mxu0 0
        %1626 = vmatprep.subr.bf16.mxu0 0
        %1627 = vmatpush2.bf16.xpose.msra.mxu0 0
        %1628 = vmatprep.subr.bf16.mxu0 0
        %1629 = vmatpush2.bf16.xpose.msra.mxu0 0
        %1630 = vmatprep.subr.bf16.mxu0 0
        %1631 = vmatpush2.bf16.xpose.msra.mxu0 0
        %1632 = vmatprep.subr.bf16.mxu0 0
        %1633 = vmatpush2.bf16.xpose.msra.mxu0 0
        %1634 = vmatprep.mubr.bf16.mxu0 0
        %1635 = vmatmul.mubr.bf16.gmra.mxu0 %v1597
        %v1636 = vpop.f32.mrf.mxu0
        %v1637 = vadd.f32 0.0, %v1636
        %v1638 = vpop.f32.mrf.mxu0
        %v1639 = vpop.f32.mrf.mxu0
        %v1640 = vpop.f32.mrf.mxu0
        %1641 = vdwg.mxu0
        %1643 = vrot.lane.b32.xlu0 %v1441, 120
        %v1644 = vpop.permute.xlu0 %1643
        %v1646 = vsel %vm1448, %v1433, 0
        %v1649 = vsel %vm1448, %v1644, 0
        %1651 = vmatprep.subr.bf16.mxu0 0
        %1652 = vmatpush1.bf16.xpose.msra.mxu0 0
        %1653 = vmatprep.subr.bf16.mxu0 0
        %1654 = vmatpush1.bf16.xpose.msra.mxu0 0
        %1655 = vmatprep.subr.bf16.mxu0 0
        %1656 = vmatpush1.bf16.xpose.msra.mxu0 0
        %1657 = vmatprep.subr.bf16.mxu0 0
        %1658 = vmatpush1.bf16.xpose.msra.mxu0 0
        %1659 = vmatprep.subr.bf16.mxu0 0
        %1660 = vmatpush1.bf16.xpose.msra.mxu0 0
        %1661 = vmatprep.subr.bf16.mxu0 0
        %1662 = vmatpush1.bf16.xpose.msra.mxu0 0
        %1663 = vmatprep.subr.bf16.mxu0 0
        %1664 = vmatpush1.bf16.xpose.msra.mxu0 0
        %1665 = vmatprep.subr.bf16.mxu0 0
        %1666 = vmatpush1.bf16.xpose.msra.mxu0 %v1649
        %1667 = vmatprep.subr.bf16.mxu0 0
        %1668 = vmatpush2.bf16.xpose.msra.mxu0 0
        %1669 = vmatprep.subr.bf16.mxu0 0
        %1670 = vmatpush2.bf16.xpose.msra.mxu0 0
        %1671 = vmatprep.subr.bf16.mxu0 0
        %1672 = vmatpush2.bf16.xpose.msra.mxu0 0
        %1673 = vmatprep.subr.bf16.mxu0 0
        %1674 = vmatpush2.bf16.xpose.msra.mxu0 0
        %1675 = vmatprep.subr.bf16.mxu0 0
        %1676 = vmatpush2.bf16.xpose.msra.mxu0 0
        %1677 = vmatprep.subr.bf16.mxu0 0
        %1678 = vmatpush2.bf16.xpose.msra.mxu0 0
        %1679 = vmatprep.subr.bf16.mxu0 0
        %1680 = vmatpush2.bf16.xpose.msra.mxu0 0
        %1681 = vmatprep.subr.bf16.mxu0 0
        %1682 = vmatpush2.bf16.xpose.msra.mxu0 0
        %1683 = vmatprep.mubr.bf16.mxu0 0
        %1684 = vmatmul.mubr.bf16.gmra.mxu0 %v1646
        %v1685 = vpop.f32.mrf.mxu0
        %v1686 = vadd.f32 0.0, %v1685
        %v1687 = vpop.f32.mrf.mxu0
        %v1688 = vpop.f32.mrf.mxu0
        %v1689 = vpop.f32.mrf.mxu0
        %1690 = vdwg.mxu0
        %1692 = vrot.lane.b32.xlu0 %v1442, 120
        %v1693 = vpop.permute.xlu0 %1692
        %v1695 = vsel %vm1448, %v1434, 0
        %v1698 = vsel %vm1448, %v1693, 0
        %1700 = vmatprep.subr.bf16.mxu0 0
        %1701 = vmatpush1.bf16.xpose.msra.mxu0 0
        %1702 = vmatprep.subr.bf16.mxu0 0
        %1703 = vmatpush1.bf16.xpose.msra.mxu0 0
        %1704 = vmatprep.subr.bf16.mxu0 0
        %1705 = vmatpush1.bf16.xpose.msra.mxu0 0
        %1706 = vmatprep.subr.bf16.mxu0 0
        %1707 = vmatpush1.bf16.xpose.msra.mxu0 0
        %1708 = vmatprep.subr.bf16.mxu0 0
        %1709 = vmatpush1.bf16.xpose.msra.mxu0 0
        %1710 = vmatprep.subr.bf16.mxu0 0
        %1711 = vmatpush1.bf16.xpose.msra.mxu0 0
        %1712 = vmatprep.subr.bf16.mxu0 0
        %1713 = vmatpush1.bf16.xpose.msra.mxu0 0
        %1714 = vmatprep.subr.bf16.mxu0 0
        %1715 = vmatpush1.bf16.xpose.msra.mxu0 %v1698
        %1716 = vmatprep.subr.bf16.mxu0 0
        %1717 = vmatpush2.bf16.xpose.msra.mxu0 0
        %1718 = vmatprep.subr.bf16.mxu0 0
        %1719 = vmatpush2.bf16.xpose.msra.mxu0 0
        %1720 = vmatprep.subr.bf16.mxu0 0
        %1721 = vmatpush2.bf16.xpose.msra.mxu0 0
        %1722 = vmatprep.subr.bf16.mxu0 0
        %1723 = vmatpush2.bf16.xpose.msra.mxu0 0
        %1724 = vmatprep.subr.bf16.mxu0 0
        %1725 = vmatpush2.bf16.xpose.msra.mxu0 0
        %1726 = vmatprep.subr.bf16.mxu0 0
        %1727 = vmatpush2.bf16.xpose.msra.mxu0 0
        %1728 = vmatprep.subr.bf16.mxu0 0
        %1729 = vmatpush2.bf16.xpose.msra.mxu0 0
        %1730 = vmatprep.subr.bf16.mxu0 0
        %1731 = vmatpush2.bf16.xpose.msra.mxu0 0
        %1732 = vmatprep.mubr.bf16.mxu0 0
        %1733 = vmatmul.mubr.bf16.gmra.mxu0 %v1695
        %v1734 = vpop.f32.mrf.mxu0
        %v1735 = vadd.f32 0.0, %v1734
        %v1736 = vpop.f32.mrf.mxu0
        %v1737 = vpop.f32.mrf.mxu0
        %v1738 = vpop.f32.mrf.mxu0
        %1739 = vdwg.mxu0
        %1741 = vrot.lane.b32.xlu0 %v1443, 120
        %v1742 = vpop.permute.xlu0 %1741
        %v1744 = vsel %vm1448, %v1435, 0
        %v1747 = vsel %vm1448, %v1742, 0
        %1749 = vmatprep.subr.bf16.mxu0 0
        %1750 = vmatpush1.bf16.xpose.msra.mxu0 0
        %1751 = vmatprep.subr.bf16.mxu0 0
        %1752 = vmatpush1.bf16.xpose.msra.mxu0 0
        %1753 = vmatprep.subr.bf16.mxu0 0
        %1754 = vmatpush1.bf16.xpose.msra.mxu0 0
        %1755 = vmatprep.subr.bf16.mxu0 0
        %1756 = vmatpush1.bf16.xpose.msra.mxu0 0
        %1757 = vmatprep.subr.bf16.mxu0 0
        %1758 = vmatpush1.bf16.xpose.msra.mxu0 0
        %1759 = vmatprep.subr.bf16.mxu0 0
        %1760 = vmatpush1.bf16.xpose.msra.mxu0 0
        %1761 = vmatprep.subr.bf16.mxu0 0
        %1762 = vmatpush1.bf16.xpose.msra.mxu0 0
        %1763 = vmatprep.subr.bf16.mxu0 0
        %1764 = vmatpush1.bf16.xpose.msra.mxu0 %v1747
        %1765 = vmatprep.subr.bf16.mxu0 0
        %1766 = vmatpush2.bf16.xpose.msra.mxu0 0
        %1767 = vmatprep.subr.bf16.mxu0 0
        %1768 = vmatpush2.bf16.xpose.msra.mxu0 0
        %1769 = vmatprep.subr.bf16.mxu0 0
        %1770 = vmatpush2.bf16.xpose.msra.mxu0 0
        %1771 = vmatprep.subr.bf16.mxu0 0
        %1772 = vmatpush2.bf16.xpose.msra.mxu0 0
        %1773 = vmatprep.subr.bf16.mxu0 0
        %1774 = vmatpush2.bf16.xpose.msra.mxu0 0
        %1775 = vmatprep.subr.bf16.mxu0 0
        %1776 = vmatpush2.bf16.xpose.msra.mxu0 0
        %1777 = vmatprep.subr.bf16.mxu0 0
        %1778 = vmatpush2.bf16.xpose.msra.mxu0 0
        %1779 = vmatprep.subr.bf16.mxu0 0
        %1780 = vmatpush2.bf16.xpose.msra.mxu0 0
        %1781 = vmatprep.mubr.bf16.mxu0 0
        %1782 = vmatmul.mubr.bf16.gmra.mxu0 %v1744
        %v1783 = vpop.f32.mrf.mxu0
        %v1784 = vadd.f32 0.0, %v1783
        %v1785 = vpop.f32.mrf.mxu0
        %v1786 = vpop.f32.mrf.mxu0
        %v1787 = vpop.f32.mrf.mxu0
        %1788 = vdwg.mxu0
        %1790 = vrot.lane.b32.xlu0 %v1444, 120
        %v1791 = vpop.permute.xlu0 %1790
        %v1793 = vsel %vm1448, %v1436, 0
        %v1796 = vsel %vm1448, %v1791, 0
        %1798 = vmatprep.subr.bf16.mxu0 0
        %1799 = vmatpush1.bf16.xpose.msra.mxu0 0
        %1800 = vmatprep.subr.bf16.mxu0 0
        %1801 = vmatpush1.bf16.xpose.msra.mxu0 0
        %1802 = vmatprep.subr.bf16.mxu0 0
        %1803 = vmatpush1.bf16.xpose.msra.mxu0 0
        %1804 = vmatprep.subr.bf16.mxu0 0
        %1805 = vmatpush1.bf16.xpose.msra.mxu0 0
        %1806 = vmatprep.subr.bf16.mxu0 0
        %1807 = vmatpush1.bf16.xpose.msra.mxu0 0
        %1808 = vmatprep.subr.bf16.mxu0 0
        %1809 = vmatpush1.bf16.xpose.msra.mxu0 0
        %1810 = vmatprep.subr.bf16.mxu0 0
        %1811 = vmatpush1.bf16.xpose.msra.mxu0 0
        %1812 = vmatprep.subr.bf16.mxu0 0
        %1813 = vmatpush1.bf16.xpose.msra.mxu0 %v1796
        %1814 = vmatprep.subr.bf16.mxu0 0
        %1815 = vmatpush2.bf16.xpose.msra.mxu0 0
        %1816 = vmatprep.subr.bf16.mxu0 0
        %1817 = vmatpush2.bf16.xpose.msra.mxu0 0
        %1818 = vmatprep.subr.bf16.mxu0 0
        %1819 = vmatpush2.bf16.xpose.msra.mxu0 0
        %1820 = vmatprep.subr.bf16.mxu0 0
        %1821 = vmatpush2.bf16.xpose.msra.mxu0 0
        %1822 = vmatprep.subr.bf16.mxu0 0
        %1823 = vmatpush2.bf16.xpose.msra.mxu0 0
        %1824 = vmatprep.subr.bf16.mxu0 0
        %1825 = vmatpush2.bf16.xpose.msra.mxu0 0
        %1826 = vmatprep.subr.bf16.mxu0 0
        %1827 = vmatpush2.bf16.xpose.msra.mxu0 0
        %1828 = vmatprep.subr.bf16.mxu0 0
        %1829 = vmatpush2.bf16.xpose.msra.mxu0 0
        %1830 = vmatprep.mubr.bf16.mxu0 0
        %1831 = vmatmul.mubr.bf16.gmra.mxu0 %v1793
        %v1832 = vpop.f32.mrf.mxu0
        %v1833 = vadd.f32 0.0, %v1832
        %v1834 = vpop.f32.mrf.mxu0
        %v1835 = vpop.f32.mrf.mxu0
        %v1836 = vpop.f32.mrf.mxu0
        %1837 = vdwg.mxu0
        %vm1838 = vcmask 36864
        %v1839 = vsel %vm1838, %v1490, -inf
        %1840 = vmax.xlane.f32.xlu0 %v1839
        %v1841 = vpop.xlane.xlu0 %1840
        %v1842 = vsel %vm1838, %v1539, -inf
        %1843 = vmax.xlane.f32.xlu0 %v1842
        %v1844 = vpop.xlane.xlu0 %1843
        %v1845 = vsel %vm1838, %v1588, -inf
        %1846 = vmax.xlane.f32.xlu0 %v1845
        %v1847 = vpop.xlane.xlu0 %1846
        %v1848 = vsel %vm1838, %v1637, -inf
        %1849 = vmax.xlane.f32.xlu0 %v1848
        %v1850 = vpop.xlane.xlu0 %1849
        %v1851 = vsel %vm1838, %v1686, -inf
        %1852 = vmax.xlane.f32.xlu0 %v1851
        %v1853 = vpop.xlane.xlu0 %1852
        %v1854 = vsel %vm1838, %v1735, -inf
        %1855 = vmax.xlane.f32.xlu0 %v1854
        %v1856 = vpop.xlane.xlu0 %1855
        %v1857 = vsel %vm1838, %v1784, -inf
        %1858 = vmax.xlane.f32.xlu0 %v1857
        %v1859 = vpop.xlane.xlu0 %1858
        %v1860 = vsel %vm1838, %v1833, -inf
        %1861 = vmax.xlane.f32.xlu0 %v1860
        %v1862 = vpop.xlane.xlu0 %1861
        %v1863 = vsub.f32 %v1490, %v1841
        %v1864 = vsub.f32 %v1539, %v1844
        %v1865 = vsub.f32 %v1588, %v1847
        %v1866 = vsub.f32 %v1637, %v1850
        %v1867 = vsub.f32 %v1686, %v1853
        %v1868 = vsub.f32 %v1735, %v1856
        %v1869 = vsub.f32 %v1784, %v1859
        %v1870 = vsub.f32 %v1833, %v1862
        %v1871 = vmul.f32 %v1863, 1.442695
        %v1872 = vpow.pop %v1871
        %v1873 = vmul.f32 %v1864, 1.442695
        %v1874 = vpow.pop %v1873
        %v1875 = vmul.f32 %v1865, 1.442695
        %v1876 = vpow.pop %v1875
        %v1877 = vmul.f32 %v1866, 1.442695
        %v1878 = vpow.pop %v1877
        %v1879 = vmul.f32 %v1867, 1.442695
        %v1880 = vpow.pop %v1879
        %v1881 = vmul.f32 %v1868, 1.442695
        %v1882 = vpow.pop %v1881
        %v1883 = vmul.f32 %v1869, 1.442695
        %v1884 = vpow.pop %v1883
        %v1885 = vmul.f32 %v1870, 1.442695
        %v1886 = vpow.pop %v1885
        %v1887 = vsel %vm1838, %v1872, 0.0
        %1888 = vadd.xlane.f32.xlu0 %v1887
        %v1889 = vpop.xlane.xlu0 %1888
        %v1890 = vsel %vm1838, %v1874, 0.0
        %1891 = vadd.xlane.f32.xlu0 %v1890
        %v1892 = vpop.xlane.xlu0 %1891
        %v1893 = vsel %vm1838, %v1876, 0.0
        %1894 = vadd.xlane.f32.xlu0 %v1893
        %v1895 = vpop.xlane.xlu0 %1894
        %v1896 = vsel %vm1838, %v1878, 0.0
        %1897 = vadd.xlane.f32.xlu0 %v1896
        %v1898 = vpop.xlane.xlu0 %1897
        %v1899 = vsel %vm1838, %v1880, 0.0
        %1900 = vadd.xlane.f32.xlu0 %v1899
        %v1901 = vpop.xlane.xlu0 %1900
        %v1902 = vsel %vm1838, %v1882, 0.0
        %1903 = vadd.xlane.f32.xlu0 %v1902
        %v1904 = vpop.xlane.xlu0 %1903
        %v1905 = vsel %vm1838, %v1884, 0.0
        %1906 = vadd.xlane.f32.xlu0 %v1905
        %v1907 = vpop.xlane.xlu0 %1906
        %v1908 = vsel %vm1838, %v1886, 0.0
        %1909 = vadd.xlane.f32.xlu0 %v1908
        %v1910 = vpop.xlane.xlu0 %1909
        %v1911 = vrcp.pop %v1889
        %v1912 = vrcp.pop %v1892
        %v1913 = vrcp.pop %v1895
        %v1914 = vrcp.pop %v1898
        %v1915 = vrcp.pop %v1901
        %v1916 = vrcp.pop %v1904
        %v1917 = vrcp.pop %v1907
        %v1918 = vrcp.pop %v1910
        %v1919 = vmul.f32 %v1872, %v1911
        %v1920 = vmul.f32 %v1874, %v1912
        %v1921 = vmul.f32 %v1876, %v1913
        %v1922 = vmul.f32 %v1878, %v1914
        %v1923 = vmul.f32 %v1880, %v1915
        %v1924 = vmul.f32 %v1882, %v1916
        %v1925 = vmul.f32 %v1884, %v1917
        %v1926 = vmul.f32 %v1886, %v1918
        %v1927 = vpack.c.bf16 %v1919, %v1919
        %v1928 = vpack.c.bf16 %v1920, %v1920
        %v1929 = vpack.c.bf16 %v1921, %v1921
        %v1930 = vpack.c.bf16 %v1922, %v1922
        %v1931 = vpack.c.bf16 %v1923, %v1923
        %v1932 = vpack.c.bf16 %v1924, %v1924
        %v1933 = vpack.c.bf16 %v1925, %v1925
        %v1934 = vpack.c.bf16 %v1926, %v1926
        %1935 = vrot.lane.b32.xlu0 %v1437, 112
        %v1936 = vpop.permute.xlu0 %1935
        %vm1937 = vcmask 39936
        %v1939 = vsel %vm1937, %v1927, 0
        %vm1941 = vcmask 1041408
        %vm1942 = vcmask 1042432
        %v1943 = vsel %vm1941, 4294967295, 65535
        %v1944 = vsel %vm1942, %v1943, 0
        %v1946 = vand.u32 %v1936, %v1944
        %1948 = vmatprep.subr.bf16.mxu0 0
        %1949 = vmatpush1.bf16.msra.mxu0 0
        %1950 = vmatprep.subr.bf16.mxu0 0
        %1951 = vmatpush1.bf16.msra.mxu0 0
        %1952 = vmatprep.subr.bf16.mxu0 0
        %1953 = vmatpush1.bf16.msra.mxu0 0
        %1954 = vmatprep.subr.bf16.mxu0 0
        %1955 = vmatpush1.bf16.msra.mxu0 0
        %1956 = vmatprep.subr.bf16.mxu0 0
        %1957 = vmatpush1.bf16.msra.mxu0 0
        %1958 = vmatprep.subr.bf16.mxu0 0
        %1959 = vmatpush1.bf16.msra.mxu0 0
        %1960 = vmatprep.subr.bf16.mxu0 0
        %1961 = vmatpush1.bf16.msra.mxu0 0
        %1962 = vmatprep.subr.bf16.mxu0 0
        %1963 = vmatpush1.bf16.msra.mxu0 %v1946
        %1964 = vmatprep.subr.bf16.mxu0 0
        %1965 = vmatpush2.bf16.msra.mxu0 0
        %1966 = vmatprep.subr.bf16.mxu0 0
        %1967 = vmatpush2.bf16.msra.mxu0 0
        %1968 = vmatprep.subr.bf16.mxu0 0
        %1969 = vmatpush2.bf16.msra.mxu0 0
        %1970 = vmatprep.subr.bf16.mxu0 0
        %1971 = vmatpush2.bf16.msra.mxu0 0
        %1972 = vmatprep.subr.bf16.mxu0 0
        %1973 = vmatpush2.bf16.msra.mxu0 0
        %1974 = vmatprep.subr.bf16.mxu0 0
        %1975 = vmatpush2.bf16.msra.mxu0 0
        %1976 = vmatprep.subr.bf16.mxu0 0
        %1977 = vmatpush2.bf16.msra.mxu0 0
        %1978 = vmatprep.subr.bf16.mxu0 0
        %1979 = vmatpush2.bf16.msra.mxu0 0
        %1980 = vmatprep.mubr.bf16.mxu0 0
        %1981 = vmatmul.mubr.bf16.gmra.mxu0 %v1939
        %v1982 = vpop.f32.mrf.mxu0
        %v1983 = vadd.f32 0.0, %v1982
        %v1984 = vpop.f32.mrf.mxu0
        %v1985 = vpop.f32.mrf.mxu0
        %v1986 = vpop.f32.mrf.mxu0
        %1987 = vdwg.mxu0
        %1988 = vrot.lane.b32.xlu0 %v1438, 112
        %v1989 = vpop.permute.xlu0 %1988
        %v1991 = vsel %vm1937, %v1928, 0
        %v1994 = vand.u32 %v1989, %v1944
        %1996 = vmatprep.subr.bf16.mxu0 0
        %1997 = vmatpush1.bf16.msra.mxu0 0
        %1998 = vmatprep.subr.bf16.mxu0 0
        %1999 = vmatpush1.bf16.msra.mxu0 0
        %2000 = vmatprep.subr.bf16.mxu0 0
        %2001 = vmatpush1.bf16.msra.mxu0 0
        %2002 = vmatprep.subr.bf16.mxu0 0
        %2003 = vmatpush1.bf16.msra.mxu0 0
        %2004 = vmatprep.subr.bf16.mxu0 0
        %2005 = vmatpush1.bf16.msra.mxu0 0
        %2006 = vmatprep.subr.bf16.mxu0 0
        %2007 = vmatpush1.bf16.msra.mxu0 0
        %2008 = vmatprep.subr.bf16.mxu0 0
        %2009 = vmatpush1.bf16.msra.mxu0 0
        %2010 = vmatprep.subr.bf16.mxu0 0
        %2011 = vmatpush1.bf16.msra.mxu0 %v1994
        %2012 = vmatprep.subr.bf16.mxu0 0
        %2013 = vmatpush2.bf16.msra.mxu0 0
        %2014 = vmatprep.subr.bf16.mxu0 0
        %2015 = vmatpush2.bf16.msra.mxu0 0
        %2016 = vmatprep.subr.bf16.mxu0 0
        %2017 = vmatpush2.bf16.msra.mxu0 0
        %2018 = vmatprep.subr.bf16.mxu0 0
        %2019 = vmatpush2.bf16.msra.mxu0 0
        %2020 = vmatprep.subr.bf16.mxu0 0
        %2021 = vmatpush2.bf16.msra.mxu0 0
        %2022 = vmatprep.subr.bf16.mxu0 0
        %2023 = vmatpush2.bf16.msra.mxu0 0
        %2024 = vmatprep.subr.bf16.mxu0 0
        %2025 = vmatpush2.bf16.msra.mxu0 0
        %2026 = vmatprep.subr.bf16.mxu0 0
        %2027 = vmatpush2.bf16.msra.mxu0 0
        %2028 = vmatprep.mubr.bf16.mxu0 0
        %2029 = vmatmul.mubr.bf16.gmra.mxu0 %v1991
        %v2030 = vpop.f32.mrf.mxu0
        %v2031 = vadd.f32 0.0, %v2030
        %v2032 = vpop.f32.mrf.mxu0
        %v2033 = vpop.f32.mrf.mxu0
        %v2034 = vpop.f32.mrf.mxu0
        %2035 = vdwg.mxu0
        %2036 = vrot.lane.b32.xlu0 %v1439, 112
        %v2037 = vpop.permute.xlu0 %2036
        %v2039 = vsel %vm1937, %v1929, 0
        %v2042 = vand.u32 %v2037, %v1944
        %2044 = vmatprep.subr.bf16.mxu0 0
        %2045 = vmatpush1.bf16.msra.mxu0 0
        %2046 = vmatprep.subr.bf16.mxu0 0
        %2047 = vmatpush1.bf16.msra.mxu0 0
        %2048 = vmatprep.subr.bf16.mxu0 0
        %2049 = vmatpush1.bf16.msra.mxu0 0
        %2050 = vmatprep.subr.bf16.mxu0 0
        %2051 = vmatpush1.bf16.msra.mxu0 0
        %2052 = vmatprep.subr.bf16.mxu0 0
        %2053 = vmatpush1.bf16.msra.mxu0 0
        %2054 = vmatprep.subr.bf16.mxu0 0
        %2055 = vmatpush1.bf16.msra.mxu0 0
        %2056 = vmatprep.subr.bf16.mxu0 0
        %2057 = vmatpush1.bf16.msra.mxu0 0
        %2058 = vmatprep.subr.bf16.mxu0 0
        %2059 = vmatpush1.bf16.msra.mxu0 %v2042
        %2060 = vmatprep.subr.bf16.mxu0 0
        %2061 = vmatpush2.bf16.msra.mxu0 0
        %2062 = vmatprep.subr.bf16.mxu0 0
        %2063 = vmatpush2.bf16.msra.mxu0 0
        %2064 = vmatprep.subr.bf16.mxu0 0
        %2065 = vmatpush2.bf16.msra.mxu0 0
        %2066 = vmatprep.subr.bf16.mxu0 0
        %2067 = vmatpush2.bf16.msra.mxu0 0
        %2068 = vmatprep.subr.bf16.mxu0 0
        %2069 = vmatpush2.bf16.msra.mxu0 0
        %2070 = vmatprep.subr.bf16.mxu0 0
        %2071 = vmatpush2.bf16.msra.mxu0 0
        %2072 = vmatprep.subr.bf16.mxu0 0
        %2073 = vmatpush2.bf16.msra.mxu0 0
        %2074 = vmatprep.subr.bf16.mxu0 0
        %2075 = vmatpush2.bf16.msra.mxu0 0
        %2076 = vmatprep.mubr.bf16.mxu0 0
        %2077 = vmatmul.mubr.bf16.gmra.mxu0 %v2039
        %v2078 = vpop.f32.mrf.mxu0
        %v2079 = vadd.f32 0.0, %v2078
        %v2080 = vpop.f32.mrf.mxu0
        %v2081 = vpop.f32.mrf.mxu0
        %v2082 = vpop.f32.mrf.mxu0
        %2083 = vdwg.mxu0
        %2084 = vrot.lane.b32.xlu0 %v1440, 112
        %v2085 = vpop.permute.xlu0 %2084
        %v2087 = vsel %vm1937, %v1930, 0
        %v2090 = vand.u32 %v2085, %v1944
        %2092 = vmatprep.subr.bf16.mxu0 0
        %2093 = vmatpush1.bf16.msra.mxu0 0
        %2094 = vmatprep.subr.bf16.mxu0 0
        %2095 = vmatpush1.bf16.msra.mxu0 0
        %2096 = vmatprep.subr.bf16.mxu0 0
        %2097 = vmatpush1.bf16.msra.mxu0 0
        %2098 = vmatprep.subr.bf16.mxu0 0
        %2099 = vmatpush1.bf16.msra.mxu0 0
        %2100 = vmatprep.subr.bf16.mxu0 0
        %2101 = vmatpush1.bf16.msra.mxu0 0
        %2102 = vmatprep.subr.bf16.mxu0 0
        %2103 = vmatpush1.bf16.msra.mxu0 0
        %2104 = vmatprep.subr.bf16.mxu0 0
        %2105 = vmatpush1.bf16.msra.mxu0 0
        %2106 = vmatprep.subr.bf16.mxu0 0
        %2107 = vmatpush1.bf16.msra.mxu0 %v2090
        %2108 = vmatprep.subr.bf16.mxu0 0
        %2109 = vmatpush2.bf16.msra.mxu0 0
        %2110 = vmatprep.subr.bf16.mxu0 0
        %2111 = vmatpush2.bf16.msra.mxu0 0
        %2112 = vmatprep.subr.bf16.mxu0 0
        %2113 = vmatpush2.bf16.msra.mxu0 0
        %2114 = vmatprep.subr.bf16.mxu0 0
        %2115 = vmatpush2.bf16.msra.mxu0 0
        %2116 = vmatprep.subr.bf16.mxu0 0
        %2117 = vmatpush2.bf16.msra.mxu0 0
        %2118 = vmatprep.subr.bf16.mxu0 0
        %2119 = vmatpush2.bf16.msra.mxu0 0
        %2120 = vmatprep.subr.bf16.mxu0 0
        %2121 = vmatpush2.bf16.msra.mxu0 0
        %2122 = vmatprep.subr.bf16.mxu0 0
        %2123 = vmatpush2.bf16.msra.mxu0 0
        %2124 = vmatprep.mubr.bf16.mxu0 0
        %2125 = vmatmul.mubr.bf16.gmra.mxu0 %v2087
        %v2126 = vpop.f32.mrf.mxu0
        %v2127 = vadd.f32 0.0, %v2126
        %v2128 = vpop.f32.mrf.mxu0
        %v2129 = vpop.f32.mrf.mxu0
        %v2130 = vpop.f32.mrf.mxu0
        %2131 = vdwg.mxu0
        %2132 = vrot.lane.b32.xlu0 %v1441, 112
        %v2133 = vpop.permute.xlu0 %2132
        %v2135 = vsel %vm1937, %v1931, 0
        %v2138 = vand.u32 %v2133, %v1944
        %2140 = vmatprep.subr.bf16.mxu0 0
        %2141 = vmatpush1.bf16.msra.mxu0 0
        %2142 = vmatprep.subr.bf16.mxu0 0
        %2143 = vmatpush1.bf16.msra.mxu0 0
        %2144 = vmatprep.subr.bf16.mxu0 0
        %2145 = vmatpush1.bf16.msra.mxu0 0
        %2146 = vmatprep.subr.bf16.mxu0 0
        %2147 = vmatpush1.bf16.msra.mxu0 0
        %2148 = vmatprep.subr.bf16.mxu0 0
        %2149 = vmatpush1.bf16.msra.mxu0 0
        %2150 = vmatprep.subr.bf16.mxu0 0
        %2151 = vmatpush1.bf16.msra.mxu0 0
        %2152 = vmatprep.subr.bf16.mxu0 0
        %2153 = vmatpush1.bf16.msra.mxu0 0
        %2154 = vmatprep.subr.bf16.mxu0 0
        %2155 = vmatpush1.bf16.msra.mxu0 %v2138
        %2156 = vmatprep.subr.bf16.mxu0 0
        %2157 = vmatpush2.bf16.msra.mxu0 0
        %2158 = vmatprep.subr.bf16.mxu0 0
        %2159 = vmatpush2.bf16.msra.mxu0 0
        %2160 = vmatprep.subr.bf16.mxu0 0
        %2161 = vmatpush2.bf16.msra.mxu0 0
        %2162 = vmatprep.subr.bf16.mxu0 0
        %2163 = vmatpush2.bf16.msra.mxu0 0
        %2164 = vmatprep.subr.bf16.mxu0 0
        %2165 = vmatpush2.bf16.msra.mxu0 0
        %2166 = vmatprep.subr.bf16.mxu0 0
        %2167 = vmatpush2.bf16.msra.mxu0 0
        %2168 = vmatprep.subr.bf16.mxu0 0
        %2169 = vmatpush2.bf16.msra.mxu0 0
        %2170 = vmatprep.subr.bf16.mxu0 0
        %2171 = vmatpush2.bf16.msra.mxu0 0
        %2172 = vmatprep.mubr.bf16.mxu0 0
        %2173 = vmatmul.mubr.bf16.gmra.mxu0 %v2135
        %v2174 = vpop.f32.mrf.mxu0
        %v2175 = vadd.f32 0.0, %v2174
        %v2176 = vpop.f32.mrf.mxu0
        %v2177 = vpop.f32.mrf.mxu0
        %v2178 = vpop.f32.mrf.mxu0
        %2179 = vdwg.mxu0
        %2180 = vrot.lane.b32.xlu0 %v1442, 112
        %v2181 = vpop.permute.xlu0 %2180
        %v2183 = vsel %vm1937, %v1932, 0
        %v2186 = vand.u32 %v2181, %v1944
        %2188 = vmatprep.subr.bf16.mxu0 0
        %2189 = vmatpush1.bf16.msra.mxu0 0
        %2190 = vmatprep.subr.bf16.mxu0 0
        %2191 = vmatpush1.bf16.msra.mxu0 0
        %2192 = vmatprep.subr.bf16.mxu0 0
        %2193 = vmatpush1.bf16.msra.mxu0 0
        %2194 = vmatprep.subr.bf16.mxu0 0
        %2195 = vmatpush1.bf16.msra.mxu0 0
        %2196 = vmatprep.subr.bf16.mxu0 0
        %2197 = vmatpush1.bf16.msra.mxu0 0
        %2198 = vmatprep.subr.bf16.mxu0 0
        %2199 = vmatpush1.bf16.msra.mxu0 0
        %2200 = vmatprep.subr.bf16.mxu0 0
        %2201 = vmatpush1.bf16.msra.mxu0 0
        %2202 = vmatprep.subr.bf16.mxu0 0
        %2203 = vmatpush1.bf16.msra.mxu0 %v2186
        %2204 = vmatprep.subr.bf16.mxu0 0
        %2205 = vmatpush2.bf16.msra.mxu0 0
        %2206 = vmatprep.subr.bf16.mxu0 0
        %2207 = vmatpush2.bf16.msra.mxu0 0
        %2208 = vmatprep.subr.bf16.mxu0 0
        %2209 = vmatpush2.bf16.msra.mxu0 0
        %2210 = vmatprep.subr.bf16.mxu0 0
        %2211 = vmatpush2.bf16.msra.mxu0 0
        %2212 = vmatprep.subr.bf16.mxu0 0
        %2213 = vmatpush2.bf16.msra.mxu0 0
        %2214 = vmatprep.subr.bf16.mxu0 0
        %2215 = vmatpush2.bf16.msra.mxu0 0
        %2216 = vmatprep.subr.bf16.mxu0 0
        %2217 = vmatpush2.bf16.msra.mxu0 0
        %2218 = vmatprep.subr.bf16.mxu0 0
        %2219 = vmatpush2.bf16.msra.mxu0 0
        %2220 = vmatprep.mubr.bf16.mxu0 0
        %2221 = vmatmul.mubr.bf16.gmra.mxu0 %v2183
        %v2222 = vpop.f32.mrf.mxu0
        %v2223 = vadd.f32 0.0, %v2222
        %v2224 = vpop.f32.mrf.mxu0
        %v2225 = vpop.f32.mrf.mxu0
        %v2226 = vpop.f32.mrf.mxu0
        %2227 = vdwg.mxu0
        %2228 = vrot.lane.b32.xlu0 %v1443, 112
        %v2229 = vpop.permute.xlu0 %2228
        %v2231 = vsel %vm1937, %v1933, 0
        %v2234 = vand.u32 %v2229, %v1944
        %2236 = vmatprep.subr.bf16.mxu0 0
        %2237 = vmatpush1.bf16.msra.mxu0 0
        %2238 = vmatprep.subr.bf16.mxu0 0
        %2239 = vmatpush1.bf16.msra.mxu0 0
        %2240 = vmatprep.subr.bf16.mxu0 0
        %2241 = vmatpush1.bf16.msra.mxu0 0
        %2242 = vmatprep.subr.bf16.mxu0 0
        %2243 = vmatpush1.bf16.msra.mxu0 0
        %2244 = vmatprep.subr.bf16.mxu0 0
        %2245 = vmatpush1.bf16.msra.mxu0 0
        %2246 = vmatprep.subr.bf16.mxu0 0
        %2247 = vmatpush1.bf16.msra.mxu0 0
        %2248 = vmatprep.subr.bf16.mxu0 0
        %2249 = vmatpush1.bf16.msra.mxu0 0
        %2250 = vmatprep.subr.bf16.mxu0 0
        %2251 = vmatpush1.bf16.msra.mxu0 %v2234
        %2252 = vmatprep.subr.bf16.mxu0 0
        %2253 = vmatpush2.bf16.msra.mxu0 0
        %2254 = vmatprep.subr.bf16.mxu0 0
        %2255 = vmatpush2.bf16.msra.mxu0 0
        %2256 = vmatprep.subr.bf16.mxu0 0
        %2257 = vmatpush2.bf16.msra.mxu0 0
        %2258 = vmatprep.subr.bf16.mxu0 0
        %2259 = vmatpush2.bf16.msra.mxu0 0
        %2260 = vmatprep.subr.bf16.mxu0 0
        %2261 = vmatpush2.bf16.msra.mxu0 0
        %2262 = vmatprep.subr.bf16.mxu0 0
        %2263 = vmatpush2.bf16.msra.mxu0 0
        %2264 = vmatprep.subr.bf16.mxu0 0
        %2265 = vmatpush2.bf16.msra.mxu0 0
        %2266 = vmatprep.subr.bf16.mxu0 0
        %2267 = vmatpush2.bf16.msra.mxu0 0
        %2268 = vmatprep.mubr.bf16.mxu0 0
        %2269 = vmatmul.mubr.bf16.gmra.mxu0 %v2231
        %v2270 = vpop.f32.mrf.mxu0
        %v2271 = vadd.f32 0.0, %v2270
        %v2272 = vpop.f32.mrf.mxu0
        %v2273 = vpop.f32.mrf.mxu0
        %v2274 = vpop.f32.mrf.mxu0
        %2275 = vdwg.mxu0
        %2276 = vrot.lane.b32.xlu0 %v1444, 112
        %v2277 = vpop.permute.xlu0 %2276
        %v2279 = vsel %vm1937, %v1934, 0
        %v2282 = vand.u32 %v2277, %v1944
        %2284 = vmatprep.subr.bf16.mxu0 0
        %2285 = vmatpush1.bf16.msra.mxu0 0
        %2286 = vmatprep.subr.bf16.mxu0 0
        %2287 = vmatpush1.bf16.msra.mxu0 0
        %2288 = vmatprep.subr.bf16.mxu0 0
        %2289 = vmatpush1.bf16.msra.mxu0 0
        %2290 = vmatprep.subr.bf16.mxu0 0
        %2291 = vmatpush1.bf16.msra.mxu0 0
        %2292 = vmatprep.subr.bf16.mxu0 0
        %2293 = vmatpush1.bf16.msra.mxu0 0
        %2294 = vmatprep.subr.bf16.mxu0 0
        %2295 = vmatpush1.bf16.msra.mxu0 0
        %2296 = vmatprep.subr.bf16.mxu0 0
        %2297 = vmatpush1.bf16.msra.mxu0 0
        %2298 = vmatprep.subr.bf16.mxu0 0
        %2299 = vmatpush1.bf16.msra.mxu0 %v2282
        %2300 = vmatprep.subr.bf16.mxu0 0
        %2301 = vmatpush2.bf16.msra.mxu0 0
        %2302 = vmatprep.subr.bf16.mxu0 0
        %2303 = vmatpush2.bf16.msra.mxu0 0
        %2304 = vmatprep.subr.bf16.mxu0 0
        %2305 = vmatpush2.bf16.msra.mxu0 0
        %2306 = vmatprep.subr.bf16.mxu0 0
        %2307 = vmatpush2.bf16.msra.mxu0 0
        %2308 = vmatprep.subr.bf16.mxu0 0
        %2309 = vmatpush2.bf16.msra.mxu0 0
        %2310 = vmatprep.subr.bf16.mxu0 0
        %2311 = vmatpush2.bf16.msra.mxu0 0
        %2312 = vmatprep.subr.bf16.mxu0 0
        %2313 = vmatpush2.bf16.msra.mxu0 0
        %2314 = vmatprep.subr.bf16.mxu0 0
        %2315 = vmatpush2.bf16.msra.mxu0 0
        %2316 = vmatprep.mubr.bf16.mxu0 0
        %2317 = vmatmul.mubr.bf16.gmra.mxu0 %v2279
        %v2318 = vpop.f32.mrf.mxu0
        %v2319 = vadd.f32 0.0, %v2318
        %v2320 = vpop.f32.mrf.mxu0
        %v2321 = vpop.f32.mrf.mxu0
        %v2322 = vpop.f32.mrf.mxu0
        %2323 = vdwg.mxu0
        %v2324 = vld [vmem:[%s694] sm:$0xf]
        %v2325 = vld [vmem:[%s694 + $0x4] sm:$0xf]
        %v2326 = vld [vmem:[%s694 + $0x8] sm:$0xf]
        %v2327 = vld [vmem:[%s694 + $0xc] sm:$0xf]
        %v2328 = vpack.c.bf16 %v1983, %v1983
        %v2329 = vpack.c.bf16 %v2031, %v2031
        %v2330 = vpack.c.bf16 %v2079, %v2079
        %v2331 = vpack.c.bf16 %v2127, %v2127
        %v2332 = vpack.c.bf16 %v2175, %v2175
        %v2333 = vpack.c.bf16 %v2223, %v2223
        %v2334 = vpack.c.bf16 %v2271, %v2271
        %v2335 = vpack.c.bf16 %v2319, %v2319
        %v2337 = vsel %vm1448, %v2328, 0
        %vm2339 = vcmask 1043456
        %v2341 = vsel %vm2339, %v2324, 0
        %2343 = vmatprep.subr.bf16.mxu0 0
        %2344 = vmatpush1.bf16.msra.mxu0 0
        %2345 = vmatprep.subr.bf16.mxu0 0
        %2346 = vmatpush1.bf16.msra.mxu0 0
        %2347 = vmatprep.subr.bf16.mxu0 0
        %2348 = vmatpush1.bf16.msra.mxu0 0
        %2349 = vmatprep.subr.bf16.mxu0 0
        %2350 = vmatpush1.bf16.msra.mxu0 0
        %2351 = vmatprep.subr.bf16.mxu0 0
        %2352 = vmatpush1.bf16.msra.mxu0 0
        %2353 = vmatprep.subr.bf16.mxu0 0
        %2354 = vmatpush1.bf16.msra.mxu0 0
        %2355 = vmatprep.subr.bf16.mxu0 0
        %2356 = vmatpush1.bf16.msra.mxu0 0
        %2357 = vmatprep.subr.bf16.mxu0 0
        %2358 = vmatpush1.bf16.msra.mxu0 %v2341
        %2359 = vmatprep.subr.bf16.mxu0 0
        %2360 = vmatpush2.bf16.msra.mxu0 0
        %2361 = vmatprep.subr.bf16.mxu0 0
        %2362 = vmatpush2.bf16.msra.mxu0 0
        %2363 = vmatprep.subr.bf16.mxu0 0
        %2364 = vmatpush2.bf16.msra.mxu0 0
        %2365 = vmatprep.subr.bf16.mxu0 0
        %2366 = vmatpush2.bf16.msra.mxu0 0
        %2367 = vmatprep.subr.bf16.mxu0 0
        %2368 = vmatpush2.bf16.msra.mxu0 0
        %2369 = vmatprep.subr.bf16.mxu0 0
        %2370 = vmatpush2.bf16.msra.mxu0 0
        %2371 = vmatprep.subr.bf16.mxu0 0
        %2372 = vmatpush2.bf16.msra.mxu0 0
        %2373 = vmatprep.subr.bf16.mxu0 0
        %2374 = vmatpush2.bf16.msra.mxu0 0
        %2375 = vmatprep.mubr.bf16.mxu0 0
        %2376 = vmatmul.mubr.bf16.gmra.mxu0 %v2337
        %v2377 = vpop.f32.mrf.mxu0
        %v2378 = vadd.f32 0.0, %v2377
        %v2379 = vpop.f32.mrf.mxu0
        %v2380 = vpop.f32.mrf.mxu0
        %v2381 = vpop.f32.mrf.mxu0
        %2382 = vdwg.mxu0
        %v2384 = vsel %vm1448, %v2329, 0
        %v2387 = vsel %vm2339, %v2325, 0
        %2389 = vmatprep.subr.bf16.mxu0 0
        %2390 = vmatpush1.bf16.msra.mxu0 0
        %2391 = vmatprep.subr.bf16.mxu0 0
        %2392 = vmatpush1.bf16.msra.mxu0 0
        %2393 = vmatprep.subr.bf16.mxu0 0
        %2394 = vmatpush1.bf16.msra.mxu0 0
        %2395 = vmatprep.subr.bf16.mxu0 0
        %2396 = vmatpush1.bf16.msra.mxu0 0
        %2397 = vmatprep.subr.bf16.mxu0 0
        %2398 = vmatpush1.bf16.msra.mxu0 0
        %2399 = vmatprep.subr.bf16.mxu0 0
        %2400 = vmatpush1.bf16.msra.mxu0 0
        %2401 = vmatprep.subr.bf16.mxu0 0
        %2402 = vmatpush1.bf16.msra.mxu0 0
        %2403 = vmatprep.subr.bf16.mxu0 0
        %2404 = vmatpush1.bf16.msra.mxu0 %v2387
        %2405 = vmatprep.subr.bf16.mxu0 0
        %2406 = vmatpush2.bf16.msra.mxu0 0
        %2407 = vmatprep.subr.bf16.mxu0 0
        %2408 = vmatpush2.bf16.msra.mxu0 0
        %2409 = vmatprep.subr.bf16.mxu0 0
        %2410 = vmatpush2.bf16.msra.mxu0 0
        %2411 = vmatprep.subr.bf16.mxu0 0
        %2412 = vmatpush2.bf16.msra.mxu0 0
        %2413 = vmatprep.subr.bf16.mxu0 0
        %2414 = vmatpush2.bf16.msra.mxu0 0
        %2415 = vmatprep.subr.bf16.mxu0 0
        %2416 = vmatpush2.bf16.msra.mxu0 0
        %2417 = vmatprep.subr.bf16.mxu0 0
        %2418 = vmatpush2.bf16.msra.mxu0 0
        %2419 = vmatprep.subr.bf16.mxu0 0
        %2420 = vmatpush2.bf16.msra.mxu0 0
        %2421 = vmatprep.mubr.bf16.mxu0 0
        %2422 = vmatmul.mubr.bf16.gmra.mxu0 %v2384
        %v2423 = vpop.f32.mrf.mxu0
        %v2424 = vadd.f32 0.0, %v2423
        %v2425 = vpop.f32.mrf.mxu0
        %v2426 = vpop.f32.mrf.mxu0
        %v2427 = vpop.f32.mrf.mxu0
        %2428 = vdwg.mxu0
        %v2430 = vsel %vm1448, %v2330, 0
        %v2433 = vsel %vm2339, %v2326, 0
        %2435 = vmatprep.subr.bf16.mxu0 0
        %2436 = vmatpush1.bf16.msra.mxu0 0
        %2437 = vmatprep.subr.bf16.mxu0 0
        %2438 = vmatpush1.bf16.msra.mxu0 0
        %2439 = vmatprep.subr.bf16.mxu0 0
        %2440 = vmatpush1.bf16.msra.mxu0 0
        %2441 = vmatprep.subr.bf16.mxu0 0
        %2442 = vmatpush1.bf16.msra.mxu0 0
        %2443 = vmatprep.subr.bf16.mxu0 0
        %2444 = vmatpush1.bf16.msra.mxu0 0
        %2445 = vmatprep.subr.bf16.mxu0 0
        %2446 = vmatpush1.bf16.msra.mxu0 0
        %2447 = vmatprep.subr.bf16.mxu0 0
        %2448 = vmatpush1.bf16.msra.mxu0 0
        %2449 = vmatprep.subr.bf16.mxu0 0
        %2450 = vmatpush1.bf16.msra.mxu0 %v2433
        %2451 = vmatprep.subr.bf16.mxu0 0
        %2452 = vmatpush2.bf16.msra.mxu0 0
        %2453 = vmatprep.subr.bf16.mxu0 0
        %2454 = vmatpush2.bf16.msra.mxu0 0
        %2455 = vmatprep.subr.bf16.mxu0 0
        %2456 = vmatpush2.bf16.msra.mxu0 0
        %2457 = vmatprep.subr.bf16.mxu0 0
        %2458 = vmatpush2.bf16.msra.mxu0 0
        %2459 = vmatprep.subr.bf16.mxu0 0
        %2460 = vmatpush2.bf16.msra.mxu0 0
        %2461 = vmatprep.subr.bf16.mxu0 0
        %2462 = vmatpush2.bf16.msra.mxu0 0
        %2463 = vmatprep.subr.bf16.mxu0 0
        %2464 = vmatpush2.bf16.msra.mxu0 0
        %2465 = vmatprep.subr.bf16.mxu0 0
        %2466 = vmatpush2.bf16.msra.mxu0 0
        %2467 = vmatprep.mubr.bf16.mxu0 0
        %2468 = vmatmul.mubr.bf16.gmra.mxu0 %v2430
        %v2469 = vpop.f32.mrf.mxu0
        %v2470 = vadd.f32 0.0, %v2469
        %v2471 = vpop.f32.mrf.mxu0
        %v2472 = vpop.f32.mrf.mxu0
        %v2473 = vpop.f32.mrf.mxu0
        %2474 = vdwg.mxu0
        %v2476 = vsel %vm1448, %v2331, 0
        %v2479 = vsel %vm2339, %v2327, 0
        %2481 = vmatprep.subr.bf16.mxu0 0
        %2482 = vmatpush1.bf16.msra.mxu0 0
        %2483 = vmatprep.subr.bf16.mxu0 0
        %2484 = vmatpush1.bf16.msra.mxu0 0
        %2485 = vmatprep.subr.bf16.mxu0 0
        %2486 = vmatpush1.bf16.msra.mxu0 0
        %2487 = vmatprep.subr.bf16.mxu0 0
        %2488 = vmatpush1.bf16.msra.mxu0 0
        %2489 = vmatprep.subr.bf16.mxu0 0
        %2490 = vmatpush1.bf16.msra.mxu0 0
        %2491 = vmatprep.subr.bf16.mxu0 0
        %2492 = vmatpush1.bf16.msra.mxu0 0
        %2493 = vmatprep.subr.bf16.mxu0 0
        %2494 = vmatpush1.bf16.msra.mxu0 0
        %2495 = vmatprep.subr.bf16.mxu0 0
        %2496 = vmatpush1.bf16.msra.mxu0 %v2479
        %2497 = vmatprep.subr.bf16.mxu0 0
        %2498 = vmatpush2.bf16.msra.mxu0 0
        %2499 = vmatprep.subr.bf16.mxu0 0
        %2500 = vmatpush2.bf16.msra.mxu0 0
        %2501 = vmatprep.subr.bf16.mxu0 0
        %2502 = vmatpush2.bf16.msra.mxu0 0
        %2503 = vmatprep.subr.bf16.mxu0 0
        %2504 = vmatpush2.bf16.msra.mxu0 0
        %2505 = vmatprep.subr.bf16.mxu0 0
        %2506 = vmatpush2.bf16.msra.mxu0 0
        %2507 = vmatprep.subr.bf16.mxu0 0
        %2508 = vmatpush2.bf16.msra.mxu0 0
        %2509 = vmatprep.subr.bf16.mxu0 0
        %2510 = vmatpush2.bf16.msra.mxu0 0
        %2511 = vmatprep.subr.bf16.mxu0 0
        %2512 = vmatpush2.bf16.msra.mxu0 0
        %2513 = vmatprep.mubr.bf16.mxu0 0
        %2514 = vmatmul.mubr.bf16.gmra.mxu0 %v2476
        %v2515 = vpop.f32.mrf.mxu0
        %v2516 = vadd.f32 0.0, %v2515
        %v2517 = vpop.f32.mrf.mxu0
        %v2518 = vpop.f32.mrf.mxu0
        %v2519 = vpop.f32.mrf.mxu0
        %2520 = vdwg.mxu0
        %v2522 = vsel %vm1448, %v2332, 0
        %2524 = vmatprep.subr.bf16.mxu0 0
        %2525 = vmatpush1.bf16.msra.mxu0 0
        %2526 = vmatprep.subr.bf16.mxu0 0
        %2527 = vmatpush1.bf16.msra.mxu0 0
        %2528 = vmatprep.subr.bf16.mxu0 0
        %2529 = vmatpush1.bf16.msra.mxu0 0
        %2530 = vmatprep.subr.bf16.mxu0 0
        %2531 = vmatpush1.bf16.msra.mxu0 0
        %2532 = vmatprep.subr.bf16.mxu0 0
        %2533 = vmatpush1.bf16.msra.mxu0 0
        %2534 = vmatprep.subr.bf16.mxu0 0
        %2535 = vmatpush1.bf16.msra.mxu0 0
        %2536 = vmatprep.subr.bf16.mxu0 0
        %2537 = vmatpush1.bf16.msra.mxu0 0
        %2538 = vmatprep.subr.bf16.mxu0 0
        %2539 = vmatpush1.bf16.msra.mxu0 %v2341
        %2540 = vmatprep.subr.bf16.mxu0 0
        %2541 = vmatpush2.bf16.msra.mxu0 0
        %2542 = vmatprep.subr.bf16.mxu0 0
        %2543 = vmatpush2.bf16.msra.mxu0 0
        %2544 = vmatprep.subr.bf16.mxu0 0
        %2545 = vmatpush2.bf16.msra.mxu0 0
        %2546 = vmatprep.subr.bf16.mxu0 0
        %2547 = vmatpush2.bf16.msra.mxu0 0
        %2548 = vmatprep.subr.bf16.mxu0 0
        %2549 = vmatpush2.bf16.msra.mxu0 0
        %2550 = vmatprep.subr.bf16.mxu0 0
        %2551 = vmatpush2.bf16.msra.mxu0 0
        %2552 = vmatprep.subr.bf16.mxu0 0
        %2553 = vmatpush2.bf16.msra.mxu0 0
        %2554 = vmatprep.subr.bf16.mxu0 0
        %2555 = vmatpush2.bf16.msra.mxu0 0
        %2556 = vmatprep.mubr.bf16.mxu0 0
        %2557 = vmatmul.mubr.bf16.gmra.mxu0 %v2522
        %v2558 = vpop.f32.mrf.mxu0
        %v2559 = vadd.f32 0.0, %v2558
        %v2560 = vpop.f32.mrf.mxu0
        %v2561 = vpop.f32.mrf.mxu0
        %v2562 = vpop.f32.mrf.mxu0
        %2563 = vdwg.mxu0
        %v2565 = vsel %vm1448, %v2333, 0
        %2567 = vmatprep.subr.bf16.mxu0 0
        %2568 = vmatpush1.bf16.msra.mxu0 0
        %2569 = vmatprep.subr.bf16.mxu0 0
        %2570 = vmatpush1.bf16.msra.mxu0 0
        %2571 = vmatprep.subr.bf16.mxu0 0
        %2572 = vmatpush1.bf16.msra.mxu0 0
        %2573 = vmatprep.subr.bf16.mxu0 0
        %2574 = vmatpush1.bf16.msra.mxu0 0
        %2575 = vmatprep.subr.bf16.mxu0 0
        %2576 = vmatpush1.bf16.msra.mxu0 0
        %2577 = vmatprep.subr.bf16.mxu0 0
        %2578 = vmatpush1.bf16.msra.mxu0 0
        %2579 = vmatprep.subr.bf16.mxu0 0
        %2580 = vmatpush1.bf16.msra.mxu0 0
        %2581 = vmatprep.subr.bf16.mxu0 0
        %2582 = vmatpush1.bf16.msra.mxu0 %v2387
        %2583 = vmatprep.subr.bf16.mxu0 0
        %2584 = vmatpush2.bf16.msra.mxu0 0
        %2585 = vmatprep.subr.bf16.mxu0 0
        %2586 = vmatpush2.bf16.msra.mxu0 0
        %2587 = vmatprep.subr.bf16.mxu0 0
        %2588 = vmatpush2.bf16.msra.mxu0 0
        %2589 = vmatprep.subr.bf16.mxu0 0
        %2590 = vmatpush2.bf16.msra.mxu0 0
        %2591 = vmatprep.subr.bf16.mxu0 0
        %2592 = vmatpush2.bf16.msra.mxu0 0
        %2593 = vmatprep.subr.bf16.mxu0 0
        %2594 = vmatpush2.bf16.msra.mxu0 0
        %2595 = vmatprep.subr.bf16.mxu0 0
        %2596 = vmatpush2.bf16.msra.mxu0 0
        %2597 = vmatprep.subr.bf16.mxu0 0
        %2598 = vmatpush2.bf16.msra.mxu0 0
        %2599 = vmatprep.mubr.bf16.mxu0 0
        %2600 = vmatmul.mubr.bf16.gmra.mxu0 %v2565
        %v2601 = vpop.f32.mrf.mxu0
        %v2602 = vadd.f32 0.0, %v2601
        %v2603 = vpop.f32.mrf.mxu0
        %v2604 = vpop.f32.mrf.mxu0
        %v2605 = vpop.f32.mrf.mxu0
        %2606 = vdwg.mxu0
        %v2608 = vsel %vm1448, %v2334, 0
        %2610 = vmatprep.subr.bf16.mxu0 0
        %2611 = vmatpush1.bf16.msra.mxu0 0
        %2612 = vmatprep.subr.bf16.mxu0 0
        %2613 = vmatpush1.bf16.msra.mxu0 0
        %2614 = vmatprep.subr.bf16.mxu0 0
        %2615 = vmatpush1.bf16.msra.mxu0 0
        %2616 = vmatprep.subr.bf16.mxu0 0
        %2617 = vmatpush1.bf16.msra.mxu0 0
        %2618 = vmatprep.subr.bf16.mxu0 0
        %2619 = vmatpush1.bf16.msra.mxu0 0
        %2620 = vmatprep.subr.bf16.mxu0 0
        %2621 = vmatpush1.bf16.msra.mxu0 0
        %2622 = vmatprep.subr.bf16.mxu0 0
        %2623 = vmatpush1.bf16.msra.mxu0 0
        %2624 = vmatprep.subr.bf16.mxu0 0
        %2625 = vmatpush1.bf16.msra.mxu0 %v2433
        %2626 = vmatprep.subr.bf16.mxu0 0
        %2627 = vmatpush2.bf16.msra.mxu0 0
        %2628 = vmatprep.subr.bf16.mxu0 0
        %2629 = vmatpush2.bf16.msra.mxu0 0
        %2630 = vmatprep.subr.bf16.mxu0 0
        %2631 = vmatpush2.bf16.msra.mxu0 0
        %2632 = vmatprep.subr.bf16.mxu0 0
        %2633 = vmatpush2.bf16.msra.mxu0 0
        %2634 = vmatprep.subr.bf16.mxu0 0
        %2635 = vmatpush2.bf16.msra.mxu0 0
        %2636 = vmatprep.subr.bf16.mxu0 0
        %2637 = vmatpush2.bf16.msra.mxu0 0
        %2638 = vmatprep.subr.bf16.mxu0 0
        %2639 = vmatpush2.bf16.msra.mxu0 0
        %2640 = vmatprep.subr.bf16.mxu0 0
        %2641 = vmatpush2.bf16.msra.mxu0 0
        %2642 = vmatprep.mubr.bf16.mxu0 0
        %2643 = vmatmul.mubr.bf16.gmra.mxu0 %v2608
        %v2644 = vpop.f32.mrf.mxu0
        %v2645 = vadd.f32 0.0, %v2644
        %v2646 = vpop.f32.mrf.mxu0
        %v2647 = vpop.f32.mrf.mxu0
        %v2648 = vpop.f32.mrf.mxu0
        %2649 = vdwg.mxu0
        %v2651 = vsel %vm1448, %v2335, 0
        %2653 = vmatprep.subr.bf16.mxu0 0
        %2654 = vmatpush1.bf16.msra.mxu0 0
        %2655 = vmatprep.subr.bf16.mxu0 0
        %2656 = vmatpush1.bf16.msra.mxu0 0
        %2657 = vmatprep.subr.bf16.mxu0 0
        %2658 = vmatpush1.bf16.msra.mxu0 0
        %2659 = vmatprep.subr.bf16.mxu0 0
        %2660 = vmatpush1.bf16.msra.mxu0 0
        %2661 = vmatprep.subr.bf16.mxu0 0
        %2662 = vmatpush1.bf16.msra.mxu0 0
        %2663 = vmatprep.subr.bf16.mxu0 0
        %2664 = vmatpush1.bf16.msra.mxu0 0
        %2665 = vmatprep.subr.bf16.mxu0 0
        %2666 = vmatpush1.bf16.msra.mxu0 0
        %2667 = vmatprep.subr.bf16.mxu0 0
        %2668 = vmatpush1.bf16.msra.mxu0 %v2479
        %2669 = vmatprep.subr.bf16.mxu0 0
        %2670 = vmatpush2.bf16.msra.mxu0 0
        %2671 = vmatprep.subr.bf16.mxu0 0
        %2672 = vmatpush2.bf16.msra.mxu0 0
        %2673 = vmatprep.subr.bf16.mxu0 0
        %2674 = vmatpush2.bf16.msra.mxu0 0
        %2675 = vmatprep.subr.bf16.mxu0 0
        %2676 = vmatpush2.bf16.msra.mxu0 0
        %2677 = vmatprep.subr.bf16.mxu0 0
        %2678 = vmatpush2.bf16.msra.mxu0 0
        %2679 = vmatprep.subr.bf16.mxu0 0
        %2680 = vmatpush2.bf16.msra.mxu0 0
        %2681 = vmatprep.subr.bf16.mxu0 0
        %2682 = vmatpush2.bf16.msra.mxu0 0
        %2683 = vmatprep.subr.bf16.mxu0 0
        %2684 = vmatpush2.bf16.msra.mxu0 0
        %2685 = vmatprep.mubr.bf16.mxu0 0
        %2686 = vmatmul.mubr.bf16.gmra.mxu0 %v2651
        %v2687 = vpop.f32.mrf.mxu0
        %v2688 = vadd.f32 0.0, %v2687
        %v2689 = vpop.f32.mrf.mxu0
        %v2690 = vpop.f32.mrf.mxu0
        %v2691 = vpop.f32.mrf.mxu0
        %2692 = vdwg.mxu0
        %v2693 = vsel %vm984, %v2378, 0.0
        %v2694 = vsel %vm984, %v2424, 0.0
        %v2695 = vadd.f32 %v2693, %v2694
        %v2696 = vsel %vm984, %v2470, 0.0
        %v2697 = vadd.f32 %v2695, %v2696
        %v2698 = vsel %vm984, %v2516, 0.0
        %v2699 = vadd.f32 %v2697, %v2698
        %v2700 = vsel %vm984, %v2559, 0.0
        %v2701 = vsel %vm984, %v2602, 0.0
        %v2702 = vadd.f32 %v2700, %v2701
        %v2703 = vsel %vm984, %v2645, 0.0
        %v2704 = vadd.f32 %v2702, %v2703
        %v2705 = vsel %vm984, %v2688, 0.0
        %v2706 = vadd.f32 %v2704, %v2705
        %v2707 = vadd.f32 %v980, %v2699
        %v2708 = vadd.f32 %v981, %v2706
        %v2709 = vld [vmem:[%s697] sm:$0x1]
        %v2711 = vlaneseq
        %v2712 = vshrl.u32 %v2711, 7
        %v2713 = vsub.s32 0, %v2712
        %v2714 = vrot.slane %v2709, %v2713
        %v2716 = vadd.f32 %v2707, %v2714
        %v2717 = vadd.f32 %v2708, %v2714
        %v2718 = vld [vmem:[%s700] sm:$0x1]
        %v2719 = vld [vmem:[%s703] sm:$0x1]
        %v2720 = vsel %vm984, %v2716, 0.0
        %2721 = vadd.xlane.f32.xlu0 %v2720
        %v2722 = vpop.xlane.xlu0 %2721
        %v2723 = vsel %vm984, %v2717, 0.0
        %2724 = vadd.xlane.f32.xlu0 %v2723
        %v2725 = vpop.xlane.xlu0 %2724
        %v2726 = vmul.f32 %v2722, %v991
        %v2727 = vmul.f32 %v2725, %v991
        %v2728 = vsub.f32 %v2716, %v2726
        %v2729 = vsub.f32 %v2717, %v2727
        %v2730 = vmul.f32 %v2728, %v2728
        %v2731 = vmul.f32 %v2729, %v2729
        %v2732 = vsel %vm984, %v2730, 0.0
        %2733 = vadd.xlane.f32.xlu0 %v2732
        %v2734 = vpop.xlane.xlu0 %2733
        %v2735 = vsel %vm984, %v2731, 0.0
        %2736 = vadd.xlane.f32.xlu0 %v2735
        %v2737 = vpop.xlane.xlu0 %2736
        %v2738 = vmul.f32 %v2734, %v991
        %v2739 = vmul.f32 %v2737, %v991
        %v2740 = vadd.f32 %v2738, 1e-05
        %v2741 = vadd.f32 %v2739, 1e-05
        %v2742 = vrsqrt.pop %v2740
        %v2743 = vrsqrt.pop %v2741
        %v2744 = vmul.f32 %v2728, %v2742
        %v2745 = vmul.f32 %v2729, %v2743
        %v2747 = vlaneseq
        %v2748 = vshrl.u32 %v2747, 7
        %v2749 = vsub.s32 0, %v2748
        %v2750 = vrot.slane %v2718, %v2749
        %v2752 = vmul.f32 %v2744, %v2750
        %v2753 = vmul.f32 %v2745, %v2750
        %v2755 = vlaneseq
        %v2756 = vshrl.u32 %v2755, 7
        %v2757 = vsub.s32 0, %v2756
        %v2758 = vrot.slane %v2719, %v2757
        %v2760 = vadd.f32 %v2752, %v2758
        %v2761 = vadd.f32 %v2753, %v2758
        %v2762 = vpack.c.bf16 %v2760, %v2760
        %v2763 = vpack.c.bf16 %v2761, %v2761
        %v2764 = vld [vmem:[%s708] sm:$0xf]
        %v2765 = vld [vmem:[%s708 + $0x4] sm:$0xf]
        %v2766 = vld [vmem:[%s708 + $0x8] sm:$0xf]
        %v2767 = vld [vmem:[%s708 + $0xc] sm:$0xf]
        %v2768 = vld [vmem:[%s711] sm:$0x1]
        %v2770 = vlaneseq
        %v2771 = vshrl.u32 %v2770, 7
        %v2772 = vsub.s32 0, %v2771
        %v2773 = vrot.slane %v2768, %v2772
        %v2779 = vunpack.c.l.b16 %v2764
        %v2780 = vunpack.c.l.b16 %v2765
        %v2781 = vunpack.c.l.b16 %v2766
        %v2782 = vunpack.c.l.b16 %v2767
        %v2783 = vpack.c.b16 %v2780, %v2779
        %v2784 = vpack.c.b16 %v2782, %v2781
        %v2788 = vsel %vm1058, %v2762, 0
        %2790 = vmatprep.subr.bf16.mxu0 0
        %2791 = vmatpush1.bf16.msra.mxu0 0
        %2792 = vmatprep.subr.bf16.mxu0 0
        %2793 = vmatpush1.bf16.msra.mxu0 0
        %2794 = vmatprep.subr.bf16.mxu0 0
        %2795 = vmatpush1.bf16.msra.mxu0 0
        %2796 = vmatprep.subr.bf16.mxu0 0
        %2797 = vmatpush1.bf16.msra.mxu0 0
        %2798 = vmatprep.subr.bf16.mxu0 0
        %2799 = vmatpush1.bf16.msra.mxu0 0
        %2800 = vmatprep.subr.bf16.mxu0 0
        %2801 = vmatpush1.bf16.msra.mxu0 0
        %2802 = vmatprep.subr.bf16.mxu0 0
        %2803 = vmatpush1.bf16.msra.mxu0 %v2784
        %2804 = vmatprep.subr.bf16.mxu0 0
        %2805 = vmatpush1.bf16.msra.mxu0 %v2783
        %2806 = vmatprep.subr.bf16.mxu0 0
        %2807 = vmatpush2.bf16.msra.mxu0 0
        %2808 = vmatprep.subr.bf16.mxu0 0
        %2809 = vmatpush2.bf16.msra.mxu0 0
        %2810 = vmatprep.subr.bf16.mxu0 0
        %2811 = vmatpush2.bf16.msra.mxu0 0
        %2812 = vmatprep.subr.bf16.mxu0 0
        %2813 = vmatpush2.bf16.msra.mxu0 0
        %2814 = vmatprep.subr.bf16.mxu0 0
        %2815 = vmatpush2.bf16.msra.mxu0 0
        %2816 = vmatprep.subr.bf16.mxu0 0
        %2817 = vmatpush2.bf16.msra.mxu0 0
        %2818 = vmatprep.subr.bf16.mxu0 0
        %2819 = vmatpush2.bf16.msra.mxu0 0
        %2820 = vmatprep.subr.bf16.mxu0 0
        %2821 = vmatpush2.bf16.msra.mxu0 0
        %2822 = vmatprep.mubr.bf16.mxu0 0
        %2823 = vmatmul.mubr.bf16.gmra.mxu0 %v2788
        %v2824 = vpop.f32.mrf.mxu0
        %v2825 = vadd.f32 %v2773, %v2824
        %v2826 = vpop.f32.mrf.mxu0
        %v2827 = vpop.f32.mrf.mxu0
        %v2828 = vpop.f32.mrf.mxu0
        %2829 = vdwg.mxu0
        %v2831 = vsel %vm1058, %v2763, 0
        %2833 = vmatprep.subr.bf16.mxu0 0
        %2834 = vmatpush1.bf16.msra.mxu0 0
        %2835 = vmatprep.subr.bf16.mxu0 0
        %2836 = vmatpush1.bf16.msra.mxu0 0
        %2837 = vmatprep.subr.bf16.mxu0 0
        %2838 = vmatpush1.bf16.msra.mxu0 0
        %2839 = vmatprep.subr.bf16.mxu0 0
        %2840 = vmatpush1.bf16.msra.mxu0 0
        %2841 = vmatprep.subr.bf16.mxu0 0
        %2842 = vmatpush1.bf16.msra.mxu0 0
        %2843 = vmatprep.subr.bf16.mxu0 0
        %2844 = vmatpush1.bf16.msra.mxu0 0
        %2845 = vmatprep.subr.bf16.mxu0 0
        %2846 = vmatpush1.bf16.msra.mxu0 %v2784
        %2847 = vmatprep.subr.bf16.mxu0 0
        %2848 = vmatpush1.bf16.msra.mxu0 %v2783
        %2849 = vmatprep.subr.bf16.mxu0 0
        %2850 = vmatpush2.bf16.msra.mxu0 0
        %2851 = vmatprep.subr.bf16.mxu0 0
        %2852 = vmatpush2.bf16.msra.mxu0 0
        %2853 = vmatprep.subr.bf16.mxu0 0
        %2854 = vmatpush2.bf16.msra.mxu0 0
        %2855 = vmatprep.subr.bf16.mxu0 0
        %2856 = vmatpush2.bf16.msra.mxu0 0
        %2857 = vmatprep.subr.bf16.mxu0 0
        %2858 = vmatpush2.bf16.msra.mxu0 0
        %2859 = vmatprep.subr.bf16.mxu0 0
        %2860 = vmatpush2.bf16.msra.mxu0 0
        %2861 = vmatprep.subr.bf16.mxu0 0
        %2862 = vmatpush2.bf16.msra.mxu0 0
        %2863 = vmatprep.subr.bf16.mxu0 0
        %2864 = vmatpush2.bf16.msra.mxu0 0
        %2865 = vmatprep.mubr.bf16.mxu0 0
        %2866 = vmatmul.mubr.bf16.gmra.mxu0 %v2831
        %v2867 = vpop.f32.mrf.mxu0
        %v2868 = vadd.f32 %v2773, %v2867
        %v2869 = vpop.f32.mrf.mxu0
        %v2870 = vpop.f32.mrf.mxu0
        %v2871 = vpop.f32.mrf.mxu0
        %2872 = vdwg.mxu0
        %v2873 = vmul.f32 %v2825, 0.5
        %v2874 = vmul.f32 %v2868, 0.5
        %v2875 = vmul.f32 %v2825, 0.70710677
        %v2876 = vmul.f32 %v2868, 0.70710677
        %v2877 = vmax.f32 %v2875, -4.0
        %v2878 = vmax.f32 %v2876, -4.0
        %v2879 = vmin.f32 %v2877, 4.0
        %v2880 = vmin.f32 %v2878, 4.0
        %v2881 = vmul.f32 %v2879, %v2879
        %v2882 = vmul.f32 %v2880, %v2880
        %v2883 = vmul.f32 %v2881, -2.7261424e-10
        %v2884 = vmul.f32 %v2882, -2.7261424e-10
        %v2885 = vadd.f32 %v2883, 2.7706815e-08
        %v2886 = vadd.f32 %v2884, 2.7706815e-08
        %v2887 = vmul.f32 %v2881, %v2885
        %v2888 = vmul.f32 %v2882, %v2886
        %v2889 = vadd.f32 %v2887, -2.101024e-06
        %v2890 = vadd.f32 %v2888, -2.101024e-06
        %v2891 = vmul.f32 %v2881, %v2889
        %v2892 = vmul.f32 %v2882, %v2890
        %v2893 = vadd.f32 %v2891, -5.6925062e-05
        %v2894 = vadd.f32 %v2892, -5.6925062e-05
        %v2895 = vmul.f32 %v2881, %v2893
        %v2896 = vmul.f32 %v2882, %v2894
        %v2897 = vadd.f32 %v2895, -0.00073499064
        %v2898 = vadd.f32 %v2896, -0.00073499064
        %v2899 = vmul.f32 %v2881, %v2897
        %v2900 = vmul.f32 %v2882, %v2898
        %v2901 = vadd.f32 %v2899, -0.0029546
        %v2902 = vadd.f32 %v2900, -0.0029546
        %v2903 = vmul.f32 %v2881, %v2901
        %v2904 = vmul.f32 %v2882, %v2902
        %v2905 = vadd.f32 %v2903, -0.016096033
        %v2906 = vadd.f32 %v2904, -0.016096033
        %v2907 = vmul.f32 %v2879, %v2905
        %v2908 = vmul.f32 %v2880, %v2906
        %v2909 = vmul.f32 %v2881, -1.45660715e-05
        %v2910 = vmul.f32 %v2882, -1.45660715e-05
        %v2911 = vadd.f32 %v2909, -0.00021337405
        %v2912 = vadd.f32 %v2910, -0.00021337405
        %v2913 = vmul.f32 %v2881, %v2911
        %v2914 = vmul.f32 %v2882, %v2912
        %v2915 = vadd.f32 %v2913, -0.001682827
        %v2916 = vadd.f32 %v2914, -0.001682827
        %v2917 = vmul.f32 %v2881, %v2915
        %v2918 = vmul.f32 %v2882, %v2916
        %v2919 = vadd.f32 %v2917, -0.0073733293
        %v2920 = vadd.f32 %v2918, -0.0073733293
        %v2921 = vmul.f32 %v2881, %v2919
        %v2922 = vmul.f32 %v2882, %v2920
        %v2923 = vadd.f32 %v2921, -0.014264739
        %v2924 = vadd.f32 %v2922, -0.014264739
        %v2925 = vrcp.pop %v2923
        %v2926 = vrcp.pop %v2924
        %v2927 = vmul.f32 %v2907, %v2925
        %v2928 = vmul.f32 %v2908, %v2926
        %v2929 = vadd.f32 %v2927, 1.0
        %v2930 = vadd.f32 %v2928, 1.0
        %v2931 = vmul.f32 %v2873, %v2929
        %v2932 = vmul.f32 %v2874, %v2930
        %v2933 = vpack.c.bf16 %v2931, %v2931
        %v2934 = vpack.c.bf16 %v2932, %v2932
        %v2935 = vld [vmem:[%s716] sm:$0xf]
        %v2936 = vld [vmem:[%s716 + $0x4] sm:$0xf]
        %v2937 = vld [vmem:[%s716 + $0x8] sm:$0xf]
        %v2938 = vld [vmem:[%s716 + $0xc] sm:$0xf]
        %v2939 = vld [vmem:[%s716 + $0x10] sm:$0xf]
        %v2940 = vld [vmem:[%s716 + $0x14] sm:$0xf]
        %v2941 = vld [vmem:[%s716 + $0x18] sm:$0xf]
        %v2942 = vld [vmem:[%s716 + $0x1c] sm:$0xf]
        %v2951 = vunpack.c.l.b16 %v2935
        %v2952 = vunpack.c.l.b16 %v2936
        %v2953 = vunpack.c.l.b16 %v2937
        %v2954 = vunpack.c.l.b16 %v2938
        %v2955 = vunpack.c.l.b16 %v2939
        %v2956 = vunpack.c.l.b16 %v2940
        %v2957 = vunpack.c.l.b16 %v2941
        %v2958 = vunpack.c.l.b16 %v2942
        %v2959 = vpack.c.b16 %v2952, %v2951
        %v2960 = vpack.c.b16 %v2954, %v2953
        %v2961 = vpack.c.b16 %v2956, %v2955
        %v2962 = vpack.c.b16 %v2958, %v2957
        %vm2967 = vcmask 523264
        %v2969 = vsel %vm2967, %v2933, 0
        %2971 = vmatprep.subr.bf16.mxu0 0
        %2972 = vmatpush1.bf16.msra.mxu0 0
        %2973 = vmatprep.subr.bf16.mxu0 0
        %2974 = vmatpush1.bf16.msra.mxu0 0
        %2975 = vmatprep.subr.bf16.mxu0 0
        %2976 = vmatpush1.bf16.msra.mxu0 0
        %2977 = vmatprep.subr.bf16.mxu0 0
        %2978 = vmatpush1.bf16.msra.mxu0 0
        %2979 = vmatprep.subr.bf16.mxu0 0
        %2980 = vmatpush1.bf16.msra.mxu0 %v2962
        %2981 = vmatprep.subr.bf16.mxu0 0
        %2982 = vmatpush1.bf16.msra.mxu0 %v2961
        %2983 = vmatprep.subr.bf16.mxu0 0
        %2984 = vmatpush1.bf16.msra.mxu0 %v2960
        %2985 = vmatprep.subr.bf16.mxu0 0
        %2986 = vmatpush1.bf16.msra.mxu0 %v2959
        %2987 = vmatprep.subr.bf16.mxu0 0
        %2988 = vmatpush2.bf16.msra.mxu0 0
        %2989 = vmatprep.subr.bf16.mxu0 0
        %2990 = vmatpush2.bf16.msra.mxu0 0
        %2991 = vmatprep.subr.bf16.mxu0 0
        %2992 = vmatpush2.bf16.msra.mxu0 0
        %2993 = vmatprep.subr.bf16.mxu0 0
        %2994 = vmatpush2.bf16.msra.mxu0 0
        %2995 = vmatprep.subr.bf16.mxu0 0
        %2996 = vmatpush2.bf16.msra.mxu0 0
        %2997 = vmatprep.subr.bf16.mxu0 0
        %2998 = vmatpush2.bf16.msra.mxu0 0
        %2999 = vmatprep.subr.bf16.mxu0 0
        %3000 = vmatpush2.bf16.msra.mxu0 0
        %3001 = vmatprep.subr.bf16.mxu0 0
        %3002 = vmatpush2.bf16.msra.mxu0 0
        %3003 = vmatprep.mubr.bf16.mxu0 0
        %3004 = vmatmul.mubr.bf16.gmra.mxu0 %v2969
        %v3005 = vpop.f32.mrf.mxu0
        %v3006 = vadd.f32 0.0, %v3005
        %v3007 = vpop.f32.mrf.mxu0
        %v3008 = vpop.f32.mrf.mxu0
        %v3009 = vpop.f32.mrf.mxu0
        %3010 = vdwg.mxu0
        %v3012 = vsel %vm2967, %v2934, 0
        %3014 = vmatprep.subr.bf16.mxu0 0
        %3015 = vmatpush1.bf16.msra.mxu0 0
        %3016 = vmatprep.subr.bf16.mxu0 0
        %3017 = vmatpush1.bf16.msra.mxu0 0
        %3018 = vmatprep.subr.bf16.mxu0 0
        %3019 = vmatpush1.bf16.msra.mxu0 0
        %3020 = vmatprep.subr.bf16.mxu0 0
        %3021 = vmatpush1.bf16.msra.mxu0 0
        %3022 = vmatprep.subr.bf16.mxu0 0
        %3023 = vmatpush1.bf16.msra.mxu0 %v2962
        %3024 = vmatprep.subr.bf16.mxu0 0
        %3025 = vmatpush1.bf16.msra.mxu0 %v2961
        %3026 = vmatprep.subr.bf16.mxu0 0
        %3027 = vmatpush1.bf16.msra.mxu0 %v2960
        %3028 = vmatprep.subr.bf16.mxu0 0
        %3029 = vmatpush1.bf16.msra.mxu0 %v2959
        %3030 = vmatprep.subr.bf16.mxu0 0
        %3031 = vmatpush2.bf16.msra.mxu0 0
        %3032 = vmatprep.subr.bf16.mxu0 0
        %3033 = vmatpush2.bf16.msra.mxu0 0
        %3034 = vmatprep.subr.bf16.mxu0 0
        %3035 = vmatpush2.bf16.msra.mxu0 0
        %3036 = vmatprep.subr.bf16.mxu0 0
        %3037 = vmatpush2.bf16.msra.mxu0 0
        %3038 = vmatprep.subr.bf16.mxu0 0
        %3039 = vmatpush2.bf16.msra.mxu0 0
        %3040 = vmatprep.subr.bf16.mxu0 0
        %3041 = vmatpush2.bf16.msra.mxu0 0
        %3042 = vmatprep.subr.bf16.mxu0 0
        %3043 = vmatpush2.bf16.msra.mxu0 0
        %3044 = vmatprep.subr.bf16.mxu0 0
        %3045 = vmatpush2.bf16.msra.mxu0 0
        %3046 = vmatprep.mubr.bf16.mxu0 0
        %3047 = vmatmul.mubr.bf16.gmra.mxu0 %v3012
        %v3048 = vpop.f32.mrf.mxu0
        %v3049 = vadd.f32 0.0, %v3048
        %v3050 = vpop.f32.mrf.mxu0
        %v3051 = vpop.f32.mrf.mxu0
        %v3052 = vpop.f32.mrf.mxu0
        %3053 = vdwg.mxu0
        %v3054 = vadd.f32 %v2716, %v3006
        %v3055 = vadd.f32 %v2717, %v3049
        %v3056 = vld [vmem:[%s719] sm:$0x1]
        %v3058 = vlaneseq
        %v3059 = vshrl.u32 %v3058, 7
        %v3060 = vsub.s32 0, %v3059
        %v3061 = vrot.slane %v3056, %v3060
        %v3063 = vadd.f32 %v3054, %v3061
        %v3064 = vadd.f32 %v3055, %v3061
        %3065 = vst.msk [vmem:[#allocation2] sm:$0x1f] %vm984, %v3063
        %3066 = vst.msk [vmem:[#allocation2 + $0x8] sm:$0x1f] %vm984, %v3064
        %p3067 = scmp.eq.s32.totalorder %s30, 1
        // Predicated region
        $region97: #{tpu_custom_call.1} parent=91 // pred_check
          %p3068 = pneg %p3067
        $region98: #{tpu_custom_call.1} parent=91 // pred_check_branch
          %3070 = sbr.rel (%p3068) target = $region100
        $region99: #{tpu_custom_call.1} parent=91 // pred_region
          %v3071 = vld [vmem:[%s16] sm:$0x1]
          %v3072 = vld [vmem:[%s17] sm:$0x1]
          %vm3073 = vcmask 258049
          %v3074 = vsel %vm3073, %v3063, 0.0
          %3075 = vadd.xlane.f32.xlu0 %v3074
          %v3076 = vpop.xlane.xlu0 %3075
          %v3077 = vsel %vm3073, %v3064, 0.0
          %3078 = vadd.xlane.f32.xlu0 %v3077
          %v3079 = vpop.xlane.xlu0 %3078
          %v3080 = vmul.f32 %v3076, %v991
          %v3081 = vmul.f32 %v3079, %v991
          %v3082 = vsub.f32 %v3063, %v3080
          %v3083 = vsub.f32 %v3064, %v3081
          %v3084 = vmul.f32 %v3082, %v3082
          %v3085 = vmul.f32 %v3083, %v3083
          %v3086 = vsel %vm3073, %v3084, 0.0
          %3087 = vadd.xlane.f32.xlu0 %v3086
          %v3088 = vpop.xlane.xlu0 %3087
          %v3089 = vsel %vm3073, %v3085, 0.0
          %3090 = vadd.xlane.f32.xlu0 %v3089
          %v3091 = vpop.xlane.xlu0 %3090
          %v3092 = vmul.f32 %v3088, %v991
          %v3093 = vmul.f32 %v3091, %v991
          %v3094 = vadd.f32 %v3092, 1e-05
          %v3095 = vadd.f32 %v3093, 1e-05
          %v3096 = vrsqrt.pop %v3094
          %v3097 = vrsqrt.pop %v3095
          %v3098 = vmul.f32 %v3082, %v3096
          %v3099 = vmul.f32 %v3083, %v3097
          %v3101 = vlaneseq
          %v3102 = vshrl.u32 %v3101, 7
          %v3103 = vsub.s32 0, %v3102
          %v3104 = vrot.slane %v3071, %v3103
          %v3106 = vmul.f32 %v3098, %v3104
          %v3107 = vmul.f32 %v3099, %v3104
          %v3109 = vlaneseq
          %v3110 = vshrl.u32 %v3109, 7
          %v3111 = vsub.s32 0, %v3110
          %v3112 = vrot.slane %v3072, %v3111
          %v3114 = vadd.f32 %v3106, %v3112
          %v3115 = vadd.f32 %v3107, %v3112
          %3116 = vst.msk [vmem:[#allocation3 - $0x1] sm:$0x1e] %vm3073, %v3114
          %3117 = vst.msk [vmem:[#allocation3 + $0x3] sm:$0x1e] %vm3073, %v3115
        $region100: #{tpu_custom_call.1} parent=91 // pred_fallthru
          _
        // Predicated region
        $region101: #{tpu_custom_call.1} parent=91 // pred_check
          %p3118 = pneg %p476
        $region102: #{tpu_custom_call.1} parent=91 // pred_check_branch
          %3120 = sbr.rel (%p3118) target = $region104
        $region103: #{tpu_custom_call.1} parent=91 // pred_region
          %s3122 = ssub.s32 128, 128
          %3123 = vsyncadd [#allocation4], %s3122
          %s3124 = sshll.u32 [#allocation3], 4
          %s3125 = int_to_ptr.vmem [resolvable:$true] %s3124
          %3130 = dma.vmem_to_hbm [thread:$0]  %s3125, 128, %s18, [#allocation4], 64, 64, 4
        $region104: #{tpu_custom_call.1} parent=91 // pred_fallthru
          _
        // Predicated region
        $region105: #{tpu_custom_call.1} parent=91 // pred_check
          %p3131 = pneg %p476
        $region106: #{tpu_custom_call.1} parent=91 // pred_check_branch
          %3133 = sbr.rel (%p3131) target = $region108
        $region107: #{tpu_custom_call.1} parent=91 // pred_region
          %3134 = dma.done [#allocation4], 128
        $region108: #{tpu_custom_call.1} parent=91 // pred_fallthru
          _
      $region92: #{tpu_custom_call.1} parent=5 // pred_fallthru
        _
      %p3135 = scmp.le.s32.totalorder 2, %s25
      // Predicated region
      $region109: #{tpu_custom_call.1} parent=5 // pred_check
        %p3136 = pneg %p3135
      $region110: #{tpu_custom_call.1} parent=5 // pred_check_branch
        %3138 = sbr.rel (%p3136) target = $region112
      $region111: #{tpu_custom_call.1} parent=5 // pred_region
        %s3139 = ssub.s32 %s25, 2
      $region112: #{tpu_custom_call.1} parent=5 // pred_fallthru
        _
    $region6: #{tpu_custom_call.1} parent=1 // loop_footer
      %s29 = sadd.s32 1, %s25
    $region7: #{tpu_custom_call.1} parent=1 // loop_footer_branch
      %24 = sbr.rel target = $region3
    $region8: #{tpu_custom_call.1} parent=1 // loop_exit
      _
    %3140 = vsyncpa [#allocation4], 1
    %s3141 = scalar_lea.sflag [#allocation4], 1
    %3142 = vsyncpa %s3141, 1

</llo_original>
